<compile_context>
chip_gen: v7x
topology: tpu7x:2x2x1
jax: 0.10.0
libtpu: 0.0.40
codegen_flags: <defaults>
</compile_context>

<pallas_src>
import functools

import jax
import jax.numpy as jnp
from jax import lax
from jax.experimental import pallas as pl
from jax.experimental.pallas import tpu as pltpu

# ------------------------- small, structure-consistent config ---------------
CFG = dict(
    dim=64,
    n_layers=2,
    n_heads=4,
    n_kv_heads=2,
    head_dim=16,
    hidden_dim=128,          # expert intermediate size
    vocab_size=128,
    norm_eps=1e-5,
    rope_theta=10000.0,
    max_position_embeddings=32,
    short_factor=1.25,       # Phi3 LongRoPE short rescale factor (scalar -> broadcast)
    short_mscale=1.1,
    num_experts=4,
    num_experts_per_tok=2,
)

NEG_INF = -1e30


def _row_block(m):
    """Row-tile size for token-major kernels (grid over M for multi-TC scaling)."""
    return m if m <= 128 else 128


def _ln(x, g, b, eps):
    """LayerNorm in f32 (VPU math stays f32; only matmul inputs go bf16)."""
    mean = jnp.mean(x, axis=-1, keepdims=True)
    xc = x - mean
    var = jnp.mean(xc * xc, axis=-1, keepdims=True)
    return xc * lax.rsqrt(var + eps) * g + b


# ------------------------------- Pallas kernels ------------------------------
def _res_ln_qkv_kernel(h_ref, r_ref, g_ref, b_ref, w_ref, bias_ref,
                       hout_ref, qkv_ref, *, eps):
    # fused: h = h + r_moe ; xn = LN(h) ; qkv = xn @ [Wq|Wk|Wv] + [bq|bk|bv]
    h = h_ref[...] + r_ref[...]
    hout_ref[...] = h
    xn = _ln(h, g_ref[...], b_ref[...], eps)
    qkv_ref[...] = jnp.dot(xn.astype(jnp.bfloat16), w_ref[...],
                           preferred_element_type=jnp.float32) + bias_ref[...]


def res_ln_qkv(h, r, g, b, w, bias, eps):
    M, D = h.shape
    N = w.shape[1]
    bm = _row_block(M)
    return pl.pallas_call(
        functools.partial(_res_ln_qkv_kernel, eps=eps),
        out_shape=(jax.ShapeDtypeStruct((M, D), jnp.float32),
                   jax.ShapeDtypeStruct((M, N), jnp.float32)),
        grid=(pl.cdiv(M, bm),),
        in_specs=[
            pl.BlockSpec((bm, D), lambda i: (i, 0)),
            pl.BlockSpec((bm, D), lambda i: (i, 0)),
            pl.BlockSpec((1, D), lambda i: (0, 0)),
            pl.BlockSpec((1, D), lambda i: (0, 0)),
            pl.BlockSpec((D, N), lambda i: (0, 0)),
            pl.BlockSpec((1, N), lambda i: (0, 0)),
        ],
        out_specs=(pl.BlockSpec((bm, D), lambda i: (i, 0)),
                   pl.BlockSpec((bm, N), lambda i: (i, 0))),
        compiler_params=pltpu.CompilerParams(dimension_semantics=("parallel",)),
    )(h, r, g, b, w, bias)


def _attn_kernel(qkv_ref, cos_ref, sin_ref, mask_ref, o_ref, *, S, Hq, Hkv, Dh):
    # One batch element per grid step: all query heads processed here, K/V of each
    # kv head loaded (and roped) exactly once; single lane-dense output store.
    qkv = qkv_ref[0]                        # (S, Hq*Dh + 2*Hkv*Dh)  f32
    cos = cos_ref[...]
    sin = sin_ref[...]
    mask = mask_ref[...]
    half = Dh // 2
    rep = Hq // Hkv
    nq = Hq * Dh
    nk = Hkv * Dh
    scale = 1.0 / (float(Dh) ** 0.5)        # SDPA default scaling

    def rope(t):                            # rotate_half via static slices
        rot = jnp.concatenate([-t[:, half:], t[:, :half]], axis=-1)
        return t * cos + rot * sin

    outs = []
    for g in range(Hkv):
        k = rope(qkv[:, nq + g * Dh: nq + (g + 1) * Dh])            # (S, Dh)
        v = qkv[:, nq + nk + g * Dh: nq + nk + (g + 1) * Dh]        # (S, Dh)
        for rr in range(rep):               # repeat_kv folded into the head loop
            h_idx = g * rep + rr
            q = rope(qkv[:, h_idx * Dh: (h_idx + 1) * Dh])
            s = lax.dot_general(q, k, (((1,), (1,)), ((), ())),
                                preferred_element_type=jnp.float32) * scale
            s = s + mask
            s = s - jnp.max(s, axis=-1, keepdims=True)
            p = jnp.exp(s)
            p = p * pl.reciprocal(jnp.sum(p, axis=-1, keepdims=True), approx=True)
            outs.append(jnp.dot(p, v, preferred_element_type=jnp.float32))
    # single (S, Hq*Dh) head-major store (matches reference transpose+reshape layout)
    o_ref[0] = jnp.concatenate(outs, axis=-1).astype(o_ref.dtype)


def attention(qkv3, cos, sin, mask, Hq, Hkv, Dh):
    B, S, N = qkv3.shape
    return pl.pallas_call(
        functools.partial(_attn_kernel, S=S, Hq=Hq, Hkv=Hkv, Dh=Dh),
        out_shape=jax.ShapeDtypeStruct((B, S, Hq * Dh), jnp.float32),
        grid=(B,),
        in_specs=[
            pl.BlockSpec((1, S, N), lambda b: (b, 0, 0)),
            pl.BlockSpec((S, Dh), lambda b: (0, 0)),
            pl.BlockSpec((S, Dh), lambda b: (0, 0)),
            pl.BlockSpec((S, S), lambda b: (0, 0)),
        ],
        out_specs=pl.BlockSpec((1, S, Hq * Dh), lambda b: (b, 0, 0)),
        compiler_params=pltpu.CompilerParams(dimension_semantics=("parallel",)),
    )(qkv3, cos, sin, mask)


def _oproj_ln_gate_kernel(attn_ref, h_ref, wo_ref, bo_ref, g_ref, b_ref, wg_ref,
                          hout_ref, rn_ref, gl_ref, *, eps):
    # fused: r = attn @ Wo + bo ; h = h + r ; rn = LN(h) ; gate_logits = rn @ Wg
    r_attn = jnp.dot(attn_ref[...].astype(jnp.bfloat16), wo_ref[...],
                     preferred_element_type=jnp.float32) + bo_ref[...]
    h = h_ref[...] + r_attn
    hout_ref[...] = h
    xn = _ln(h, g_ref[...], b_ref[...], eps)
    xn_bf = xn.astype(jnp.bfloat16)
    rn_ref[...] = xn_bf
    gl_ref[...] = jnp.dot(xn_bf, wg_ref[...], preferred_element_type=jnp.float32)


def oproj_ln_gate(attn, h, wo, bo, g, b, wg, eps):
    M, D = h.shape
    Na = attn.shape[1]
    E = wg.shape[1]
    bm = _row_block(M)
    return pl.pallas_call(
        functools.partial(_oproj_ln_gate_kernel, eps=eps),
        out_shape=(jax.ShapeDtypeStruct((M, D), jnp.float32),
                   jax.ShapeDtypeStruct((M, D), jnp.bfloat16),
                   jax.ShapeDtypeStruct((M, E), jnp.float32)),
        grid=(pl.cdiv(M, bm),),
        in_specs=[
            pl.BlockSpec((bm, Na), lambda i: (i, 0)),
            pl.BlockSpec((bm, D), lambda i: (i, 0)),
            pl.BlockSpec((Na, D), lambda i: (0, 0)),
            pl.BlockSpec((1, D), lambda i: (0, 0)),
            pl.BlockSpec((1, D), lambda i: (0, 0)),
            pl.BlockSpec((1, D), lambda i: (0, 0)),
            pl.BlockSpec((D, E), lambda i: (0, 0)),
        ],
        out_specs=(pl.BlockSpec((bm, D), lambda i: (i, 0)),
                   pl.BlockSpec((bm, D), lambda i: (i, 0)),
                   pl.BlockSpec((bm, E), lambda i: (i, 0))),
        compiler_params=pltpu.CompilerParams(dimension_semantics=("parallel",)),
    )(attn, h, wo, bo, g, b, wg)


def _moe_kernel(x_ref, gw_ref, w1_ref, w3_ref, w2_ref, o_ref):
    # grid over experts (reduction axis): output block is resident and accumulates
    # weight_e * expert_e(x); non-selected experts carry weight 0 (dense routing).
    @pl.when(pl.program_id(0) == 0)
    def _():
        o_ref[...] = jnp.zeros_like(o_ref)

    x = x_ref[...]                                      # (M, D) bf16
    h1 = jnp.dot(x, w1_ref[0], preferred_element_type=jnp.float32)
    h3 = jnp.dot(x, w3_ref[0], preferred_element_type=jnp.float32)
    gsig = (h1 * jax.nn.sigmoid(h1)) * h3               # SiLU gate in f32 (VPU)
    out = jnp.dot(gsig.astype(jnp.bfloat16), w2_ref[0],
                  preferred_element_type=jnp.float32)
    o_ref[...] += gw_ref[0] * out                       # fused top-k weighted combine


def moe_experts_combine(x_bf, gw, w1, w3, w2):
    """x_bf:(M,D) bf16  gw:(E,M,1) f32  w1,w3:(E,D,F)  w2:(E,F,D)  ->  (M,D) f32."""
    E, D, F = w1.shape
    M = x_bf.shape[0]
    return pl.pallas_call(
        _moe_kernel,
        out_shape=jax.ShapeDtypeStruct((M, D), jnp.float32),
        grid=(E,),
        in_specs=[
            pl.BlockSpec((M, D), lambda e: (0, 0)),
            pl.BlockSpec((1, M, 1), lambda e: (e, 0, 0)),
            pl.BlockSpec((1, D, F), lambda e: (e, 0, 0)),
            pl.BlockSpec((1, D, F), lambda e: (e, 0, 0)),
            pl.BlockSpec((1, F, D), lambda e: (e, 0, 0)),
        ],
        out_specs=pl.BlockSpec((M, D), lambda e: (0, 0)),
        compiler_params=pltpu.CompilerParams(dimension_semantics=("arbitrary",)),
    )(x_bf, gw, w1, w3, w2)


def _final_kernel(h_ref, r_ref, g_ref, b_ref, w_ref, bias_ref, o_ref, *, eps):
    # fused: y = h + r ; yn = LN(y) ; logits = yn @ Wout + bout  (f32, lane-dense V)
    y = h_ref[...] + r_ref[...]
    yn = _ln(y, g_ref[...], b_ref[...], eps)
    o_ref[...] = jnp.dot(yn.astype(jnp.bfloat16), w_ref[...],
                         preferred_element_type=jnp.float32) + bias_ref[...]


def final_norm_head(h, r, g, b, w, bias, eps):
    M, D = h.shape
    V = w.shape[1]
    bm = _row_block(M)
    return pl.pallas_call(
        functools.partial(_final_kernel, eps=eps),
        out_shape=jax.ShapeDtypeStruct((M, V), jnp.float32),
        grid=(pl.cdiv(M, bm),),
        in_specs=[
            pl.BlockSpec((bm, D), lambda i: (i, 0)),
            pl.BlockSpec((bm, D), lambda i: (i, 0)),
            pl.BlockSpec((1, D), lambda i: (0, 0)),
            pl.BlockSpec((1, D), lambda i: (0, 0)),
            pl.BlockSpec((D, V), lambda i: (0, 0)),
            pl.BlockSpec((1, V), lambda i: (0, 0)),
        ],
        out_specs=pl.BlockSpec((bm, V), lambda i: (i, 0)),
        compiler_params=pltpu.CompilerParams(dimension_semantics=("parallel",)),
    )(h, r, g, b, w, bias)


# ------------------------------- parameter init ------------------------------
def init_params(key, cfg):
    D = cfg["dim"]
    Dh = cfg["head_dim"]
    Hq = cfg["n_heads"]
    Hkv = cfg["n_kv_heads"]
    Ff = cfg["hidden_dim"]
    E = cfg["num_experts"]
    V = cfg["vocab_size"]

    def nrm(k, shape, scale=0.02):
        return scale * jax.random.normal(k, shape, jnp.float32)

    keys = jax.random.split(key, 4 + cfg["n_layers"])
    params = {
        "embed": nrm(keys[0], (V, D)),
        "norm_w": jnp.ones((1, D), jnp.float32),
        "norm_b": jnp.zeros((1, D), jnp.float32),
        "out_w": nrm(keys[1], (D, V)).astype(jnp.bfloat16),
        "out_b": nrm(keys[2], (1, V)),
        "layers": [],
    }
    for li in range(cfg["n_layers"]):
        lk = jax.random.split(keys[4 + li], 12)
        wq, bq = nrm(lk[0], (D, Hq * Dh)), nrm(lk[1], (Hq * Dh,))
        wk, bk = nrm(lk[2], (D, Hkv * Dh)), nrm(lk[3], (Hkv * Dh,))
        wv, bv = nrm(lk[4], (D, Hkv * Dh)), nrm(lk[5], (Hkv * Dh,))
        params["layers"].append(dict(
            attn_norm_w=jnp.ones((1, D), jnp.float32),
            attn_norm_b=jnp.zeros((1, D), jnp.float32),
            ffn_norm_w=jnp.ones((1, D), jnp.float32),
            ffn_norm_b=jnp.zeros((1, D), jnp.float32),
            # fused QKV projection: one lane-dense (D, Hq*Dh + 2*Hkv*Dh)=(64,128) matmul
            w_qkv=jnp.concatenate([wq, wk, wv], axis=1).astype(jnp.bfloat16),
            b_qkv=jnp.concatenate([bq, bk, bv], axis=0).reshape(1, -1),
            wo=nrm(lk[6], (Hq * Dh, D)).astype(jnp.bfloat16),
            bo=nrm(lk[7], (1, D)),
            gate_w=nrm(lk[8], (D, E)).astype(jnp.bfloat16),
            w1=nrm(lk[9], (E, D, Ff)).astype(jnp.bfloat16),
            w3=nrm(lk[10], (E, D, Ff)).astype(jnp.bfloat16),
            w2=nrm(lk[11], (E, Ff, D)).astype(jnp.bfloat16),
        ))
    return params


def rope_cache(cfg):
    Dh = cfg["head_dim"]
    rescale = jnp.full((Dh // 2,), cfg["short_factor"], jnp.float32)
    inv_freq = 1.0 / (rescale * cfg["rope_theta"] **
                      (jnp.arange(0, Dh, 2, dtype=jnp.float32) / Dh))
    t = jnp.arange(cfg["max_position_embeddings"], dtype=jnp.float32)
    freqs = jnp.outer(t, inv_freq)
    emb = jnp.concatenate([freqs, freqs], axis=-1)
    mscale = cfg["short_mscale"]
    return jnp.cos(emb) * mscale, jnp.sin(emb) * mscale


# ------------------------------- forward pass --------------------------------
def transformer_forward(params, tokens):
    cfg = CFG
    B, S = tokens.shape
    D, Dh = cfg["dim"], cfg["head_dim"]
    Hq, Hkv = cfg["n_heads"], cfg["n_kv_heads"]
    E = cfg["num_experts"]
    eps = cfg["norm_eps"]
    topk = cfg["num_experts_per_tok"]
    M = B * S
    Nqkv = Hq * Dh + 2 * Hkv * Dh

    cos_full, sin_full = rope_cache(cfg)
    cos, sin = cos_full[:S], sin_full[:S]      # prefill storage_idx = arange(S)

    # mask[storage_idx] -> additive causal mask (prefill)
    causal = jnp.tril(jnp.ones((S, S), jnp.bool_))
    mask = jnp.where(causal, 0.0, NEG_INF).astype(jnp.float32)

    h = params["embed"][tokens].reshape(M, D)   # token-major (M, D) f32
    r = jnp.zeros((M, D), jnp.float32)          # MoE residual (zero before layer 0)

    for lp in params["layers"]:
        # --- fused: residual add (moe_allreduce, 1 rank) + attn LN + QKV ---
        h, qkv = res_ln_qkv(h, r, lp["attn_norm_w"], lp["attn_norm_b"],
                            lp["w_qkv"], lp["b_qkv"], eps)

        # --- attention (RoPE + SDPA), token-major in/out, grid over batch ---
        # TODO(synk): persistent KV cache write (index_copy_) / decode path not
        # materialized; prefill attends over exactly the keys written this step.
        attn = attention(qkv.reshape(B, S, Nqkv), cos, sin, mask, Hq, Hkv, Dh)
        attn = attn.reshape(M, Hq * Dh)

        # --- fused: O-proj + residual add + ffn LN + MoE gate logits ---
        h, rn_bf, gate_logits = oproj_ln_gate(attn, h, lp["wo"], lp["bo"],
                                              lp["ffn_norm_w"], lp["ffn_norm_b"],
                                              lp["gate_w"], eps)

        # --- top-k routing in JAX (tiny), fed to the MoE kernel as dense weights ---
        topk_w, topk_ids = lax.top_k(gate_logits, topk)
        topk_w = jax.nn.softmax(topk_w.astype(jnp.float32), axis=-1)
        dense_w = jnp.einsum("mke,mk->em",
                             jax.nn.one_hot(topk_ids, E, dtype=jnp.float32), topk_w)

        # --- fused: SwiGLU experts + weighted top-k combine, accumulated over E ---
        r = moe_experts_combine(rn_bf, dense_w[:, :, None],
                                lp["w1"], lp["w3"], lp["w2"])

    # --- fused: last_agg residual + final LayerNorm + vocab head (f32 logits) ---
    logits = final_norm_head(h, r, params["norm_w"], params["norm_b"],
                             params["out_w"], params["out_b"], eps)
    return logits.reshape(B, S, cfg["vocab_size"])


# ----------------------------------- main -------------------------------------
if __name__ == "__main__":
    key = jax.random.PRNGKey(0)
    pkey, tkey = jax.random.split(key)
    params = init_params(pkey, CFG)

    B, S = 2, 8
    tokens = jax.random.randint(tkey, (B, S), 0, CFG["vocab_size"], dtype=jnp.int32)

    logits = jax.jit(transformer_forward)(params, tokens)
    jax.block_until_ready(logits)
    assert logits.shape == (B, S, CFG["vocab_size"]) and logits.dtype == jnp.float32
    print("KERNEL_OK")
</pallas_src>

<mosaic_0001>
module attributes {stable_mosaic.version = 11 : i64} {
  func.func @_res_ln_qkv_kernel(%arg0: i32, %arg1: memref<16x64xf32, #tpu.memory_space<vmem>>, %arg2: memref<16x64xf32, #tpu.memory_space<vmem>>, %arg3: memref<1x64xf32, #tpu.memory_space<vmem>>, %arg4: memref<1x64xf32, #tpu.memory_space<vmem>>, %arg5: memref<64x128xbf16, #tpu.memory_space<vmem>>, %arg6: memref<1x128xf32, #tpu.memory_space<vmem>>, %arg7: memref<16x64xf32, #tpu.memory_space<vmem>>, %arg8: memref<16x128xf32, #tpu.memory_space<vmem>>) attributes {dimension_semantics = [#tpu.dimension_semantics<parallel>], iteration_bounds = array<i64: 1>, scalar_prefetch = 0 : i64, scratch_operands = 0 : i64, tpu.core_type = #tpu.core_type<tc>, window_params = [{transform_indices = @transform_0, window_bounds = array<i64: 16, 64>}, {transform_indices = @transform_1, window_bounds = array<i64: 16, 64>}, {pipeline_mode = #tpu.pipeline_mode<synchronous>, transform_indices = @transform_2, window_bounds = array<i64: 1, 64>}, {pipeline_mode = #tpu.pipeline_mode<synchronous>, transform_indices = @transform_3, window_bounds = array<i64: 1, 64>}, {pipeline_mode = #tpu.pipeline_mode<synchronous>, transform_indices = @transform_4, window_bounds = array<i64: 64, 128>}, {pipeline_mode = #tpu.pipeline_mode<synchronous>, transform_indices = @transform_5, window_bounds = array<i64: 1, 128>}, {transform_indices = @transform_6, window_bounds = array<i64: 16, 64>}, {transform_indices = @transform_7, window_bounds = array<i64: 16, 128>}]} {
    %c0 = arith.constant 0 : index
    %c0_0 = arith.constant 0 : index
    %0 = vector.load %arg1[%c0, %c0_0] : memref<16x64xf32, #tpu.memory_space<vmem>>, vector<16x64xf32>
    %c0_1 = arith.constant 0 : index
    %c0_2 = arith.constant 0 : index
    %1 = vector.load %arg2[%c0_1, %c0_2] : memref<16x64xf32, #tpu.memory_space<vmem>>, vector<16x64xf32>
    %2 = arith.addf %0, %1 : vector<16x64xf32>
    %c0_3 = arith.constant 0 : index
    %c0_4 = arith.constant 0 : index
    %3 = vector.load %arg7[%c0_3, %c0_4] : memref<16x64xf32, #tpu.memory_space<vmem>>, vector<16x64xf32>
    tpu.vector_store %arg7[%c0_3, %c0_4], %2 {strides = array<i32>} : memref<16x64xf32, #tpu.memory_space<vmem>>, vector<16x64xf32>,
    %c0_5 = arith.constant 0 : index
    %c0_6 = arith.constant 0 : index
    %4 = vector.load %arg3[%c0_5, %c0_6] : memref<1x64xf32, #tpu.memory_space<vmem>>, vector<1x64xf32>
    %c0_7 = arith.constant 0 : index
    %c0_8 = arith.constant 0 : index
    %5 = vector.load %arg4[%c0_7, %c0_8] : memref<1x64xf32, #tpu.memory_space<vmem>>, vector<1x64xf32>
    %cst = arith.constant dense<0.000000e+00> : vector<16xf32>
    %6 = vector.multi_reduction <add>, %2, %cst [1] : vector<16x64xf32> to vector<16xf32>
    %7 = vector.shape_cast %6 : vector<16xf32> to vector<16x1xf32>
    %cst_9 = arith.constant 6.400000e+01 : f32
    %8 = vector.broadcast %cst_9 : f32 to vector<16x1xf32>
    %9 = arith.divf %7, %8 : vector<16x1xf32>
    %10 = vector.broadcast %9 : vector<16x1xf32> to vector<16x64xf32>
    %11 = arith.subf %2, %10 : vector<16x64xf32>
    %12 = arith.mulf %11, %11 : vector<16x64xf32>
    %cst_10 = arith.constant dense<0.000000e+00> : vector<16xf32>
    %13 = vector.multi_reduction <add>, %12, %cst_10 [1] : vector<16x64xf32> to vector<16xf32>
    %14 = vector.shape_cast %13 : vector<16xf32> to vector<16x1xf32>
    %cst_11 = arith.constant 6.400000e+01 : f32
    %15 = vector.broadcast %cst_11 : f32 to vector<16x1xf32>
    %16 = arith.divf %14, %15 : vector<16x1xf32>
    %cst_12 = arith.constant 9.99999974E-6 : f32
    %17 = vector.broadcast %cst_12 : f32 to vector<16x1xf32>
    %18 = arith.addf %16, %17 : vector<16x1xf32>
    %19 = math.rsqrt %18 : vector<16x1xf32>
    %20 = vector.broadcast %19 : vector<16x1xf32> to vector<16x64xf32>
    %21 = arith.mulf %11, %20 : vector<16x64xf32>
    %22 = vector.broadcast %4 : vector<1x64xf32> to vector<16x64xf32>
    %23 = arith.mulf %21, %22 : vector<16x64xf32>
    %24 = vector.broadcast %5 : vector<1x64xf32> to vector<16x64xf32>
    %25 = arith.addf %23, %24 : vector<16x64xf32>
    %26 = arith.truncf %25 : vector<16x64xf32> to vector<16x64xbf16>
    %c0_13 = arith.constant 0 : index
    %c0_14 = arith.constant 0 : index
    %27 = vector.load %arg5[%c0_13, %c0_14] : memref<64x128xbf16, #tpu.memory_space<vmem>>, vector<64x128xbf16>
    %cst_15 = arith.constant dense<0.000000e+00> : vector<16x128xf32>
    %28 = tpu.matmul %26, %27, %cst_15 {dimension_numbers = #tpu.dot_dimension_numbers<[1], [0], [0], [1], [0, 0, 1, 1], [], []>} : vector<16x64xbf16>, vector<64x128xbf16>, vector<16x128xf32> -> vector<16x128xf32>
    %c0_16 = arith.constant 0 : index
    %c0_17 = arith.constant 0 : index
    %29 = vector.load %arg6[%c0_16, %c0_17] : memref<1x128xf32, #tpu.memory_space<vmem>>, vector<1x128xf32>
    %30 = vector.broadcast %29 : vector<1x128xf32> to vector<16x128xf32>
    %31 = arith.addf %28, %30 : vector<16x128xf32>
    %c0_18 = arith.constant 0 : index
    %c0_19 = arith.constant 0 : index
    %32 = vector.load %arg8[%c0_18, %c0_19] : memref<16x128xf32, #tpu.memory_space<vmem>>, vector<16x128xf32>
    tpu.vector_store %arg8[%c0_18, %c0_19], %31 {strides = array<i32>} : memref<16x128xf32, #tpu.memory_space<vmem>>, vector<16x128xf32>,
    return
  }
  func.func @transform_0(%arg0: i32) -> (i32, i32) {
    %c0_i32 = arith.constant 0 : i32
    %c0_i32_0 = arith.constant 0 : i32
    return %arg0, %c0_i32 : i32, i32
  }
  func.func @transform_1(%arg0: i32) -> (i32, i32) {
    %c0_i32 = arith.constant 0 : i32
    %c0_i32_0 = arith.constant 0 : i32
    return %arg0, %c0_i32 : i32, i32
  }
  func.func @transform_2(%arg0: i32) -> (i32, i32) {
    %c0_i32 = arith.constant 0 : i32
    %c0_i32_0 = arith.constant 0 : i32
    %c0_i32_1 = arith.constant 0 : i32
    return %c0_i32, %c0_i32_0 : i32, i32
  }
  func.func @transform_3(%arg0: i32) -> (i32, i32) {
    %c0_i32 = arith.constant 0 : i32
    %c0_i32_0 = arith.constant 0 : i32
    %c0_i32_1 = arith.constant 0 : i32
    return %c0_i32, %c0_i32_0 : i32, i32
  }
  func.func @transform_4(%arg0: i32) -> (i32, i32) {
    %c0_i32 = arith.constant 0 : i32
    %c0_i32_0 = arith.constant 0 : i32
    %c0_i32_1 = arith.constant 0 : i32
    return %c0_i32, %c0_i32_0 : i32, i32
  }
  func.func @transform_5(%arg0: i32) -> (i32, i32) {
    %c0_i32 = arith.constant 0 : i32
    %c0_i32_0 = arith.constant 0 : i32
    %c0_i32_1 = arith.constant 0 : i32
    return %c0_i32, %c0_i32_0 : i32, i32
  }
  func.func @transform_6(%arg0: i32) -> (i32, i32) {
    %c0_i32 = arith.constant 0 : i32
    %c0_i32_0 = arith.constant 0 : i32
    return %arg0, %c0_i32 : i32, i32
  }
  func.func @transform_7(%arg0: i32) -> (i32, i32) {
    %c0_i32 = arith.constant 0 : i32
    %c0_i32_0 = arith.constant 0 : i32
    return %arg0, %c0_i32 : i32, i32
  }
}

module attributes {stable_mosaic.version = 11 : i64} {
  func.func @_oproj_ln_gate_kernel(%arg0: i32, %arg1: memref<16x64xf32, #tpu.memory_space<vmem>>, %arg2: memref<16x64xf32, #tpu.memory_space<vmem>>, %arg3: memref<64x64xbf16, #tpu.memory_space<vmem>>, %arg4: memref<1x64xf32, #tpu.memory_space<vmem>>, %arg5: memref<1x64xf32, #tpu.memory_space<vmem>>, %arg6: memref<1x64xf32, #tpu.memory_space<vmem>>, %arg7: memref<64x4xbf16, #tpu.memory_space<vmem>>, %arg8: memref<16x64xf32, #tpu.memory_space<vmem>>, %arg9: memref<16x64xbf16, #tpu.memory_space<vmem>>, %arg10: memref<16x4xf32, #tpu.memory_space<vmem>>) attributes {dimension_semantics = [#tpu.dimension_semantics<parallel>], iteration_bounds = array<i64: 1>, scalar_prefetch = 0 : i64, scratch_operands = 0 : i64, tpu.core_type = #tpu.core_type<tc>, window_params = [{transform_indices = @transform_0, window_bounds = array<i64: 16, 64>}, {transform_indices = @transform_1, window_bounds = array<i64: 16, 64>}, {pipeline_mode = #tpu.pipeline_mode<synchronous>, transform_indices = @transform_2, window_bounds = array<i64: 64, 64>}, {pipeline_mode = #tpu.pipeline_mode<synchronous>, transform_indices = @transform_3, window_bounds = array<i64: 1, 64>}, {pipeline_mode = #tpu.pipeline_mode<synchronous>, transform_indices = @transform_4, window_bounds = array<i64: 1, 64>}, {pipeline_mode = #tpu.pipeline_mode<synchronous>, transform_indices = @transform_5, window_bounds = array<i64: 1, 64>}, {pipeline_mode = #tpu.pipeline_mode<synchronous>, transform_indices = @transform_6, window_bounds = array<i64: 64, 4>}, {transform_indices = @transform_7, window_bounds = array<i64: 16, 64>}, {transform_indices = @transform_8, window_bounds = array<i64: 16, 64>}, {transform_indices = @transform_9, window_bounds = array<i64: 16, 4>}]} {
    %c0 = arith.constant 0 : index
    %c0_0 = arith.constant 0 : index
    %0 = vector.load %arg1[%c0, %c0_0] : memref<16x64xf32, #tpu.memory_space<vmem>>, vector<16x64xf32>
    %1 = arith.truncf %0 : vector<16x64xf32> to vector<16x64xbf16>
    %c0_1 = arith.constant 0 : index
    %c0_2 = arith.constant 0 : index
    %2 = vector.load %arg3[%c0_1, %c0_2] : memref<64x64xbf16, #tpu.memory_space<vmem>>, vector<64x64xbf16>
    %cst = arith.constant dense<0.000000e+00> : vector<16x64xf32>
    %3 = tpu.matmul %1, %2, %cst {dimension_numbers = #tpu.dot_dimension_numbers<[1], [0], [0], [1], [0, 0, 1, 1], [], []>} : vector<16x64xbf16>, vector<64x64xbf16>, vector<16x64xf32> -> vector<16x64xf32>
    %c0_3 = arith.constant 0 : index
    %c0_4 = arith.constant 0 : index
    %4 = vector.load %arg4[%c0_3, %c0_4] : memref<1x64xf32, #tpu.memory_space<vmem>>, vector<1x64xf32>
    %5 = vector.broadcast %4 : vector<1x64xf32> to vector<16x64xf32>
    %6 = arith.addf %3, %5 : vector<16x64xf32>
    %c0_5 = arith.constant 0 : index
    %c0_6 = arith.constant 0 : index
    %7 = vector.load %arg2[%c0_5, %c0_6] : memref<16x64xf32, #tpu.memory_space<vmem>>, vector<16x64xf32>
    %8 = arith.addf %7, %6 : vector<16x64xf32>
    %c0_7 = arith.constant 0 : index
    %c0_8 = arith.constant 0 : index
    %9 = vector.load %arg8[%c0_7, %c0_8] : memref<16x64xf32, #tpu.memory_space<vmem>>, vector<16x64xf32>
    tpu.vector_store %arg8[%c0_7, %c0_8], %8 {strides = array<i32>} : memref<16x64xf32, #tpu.memory_space<vmem>>, vector<16x64xf32>,
    %c0_9 = arith.constant 0 : index
    %c0_10 = arith.constant 0 : index
    %10 = vector.load %arg5[%c0_9, %c0_10] : memref<1x64xf32, #tpu.memory_space<vmem>>, vector<1x64xf32>
    %c0_11 = arith.constant 0 : index
    %c0_12 = arith.constant 0 : index
    %11 = vector.load %arg6[%c0_11, %c0_12] : memref<1x64xf32, #tpu.memory_space<vmem>>, vector<1x64xf32>
    %cst_13 = arith.constant dense<0.000000e+00> : vector<16xf32>
    %12 = vector.multi_reduction <add>, %8, %cst_13 [1] : vector<16x64xf32> to vector<16xf32>
    %13 = vector.shape_cast %12 : vector<16xf32> to vector<16x1xf32>
    %cst_14 = arith.constant 6.400000e+01 : f32
    %14 = vector.broadcast %cst_14 : f32 to vector<16x1xf32>
    %15 = arith.divf %13, %14 : vector<16x1xf32>
    %16 = vector.broadcast %15 : vector<16x1xf32> to vector<16x64xf32>
    %17 = arith.subf %8, %16 : vector<16x64xf32>
    %18 = arith.mulf %17, %17 : vector<16x64xf32>
    %cst_15 = arith.constant dense<0.000000e+00> : vector<16xf32>
    %19 = vector.multi_reduction <add>, %18, %cst_15 [1] : vector<16x64xf32> to vector<16xf32>
    %20 = vector.shape_cast %19 : vector<16xf32> to vector<16x1xf32>
    %cst_16 = arith.constant 6.400000e+01 : f32
    %21 = vector.broadcast %cst_16 : f32 to vector<16x1xf32>
    %22 = arith.divf %20, %21 : vector<16x1xf32>
    %cst_17 = arith.constant 9.99999974E-6 : f32
    %23 = vector.broadcast %cst_17 : f32 to vector<16x1xf32>
    %24 = arith.addf %22, %23 : vector<16x1xf32>
    %25 = math.rsqrt %24 : vector<16x1xf32>
    %26 = vector.broadcast %25 : vector<16x1xf32> to vector<16x64xf32>
    %27 = arith.mulf %17, %26 : vector<16x64xf32>
    %28 = vector.broadcast %10 : vector<1x64xf32> to vector<16x64xf32>
    %29 = arith.mulf %27, %28 : vector<16x64xf32>
    %30 = vector.broadcast %11 : vector<1x64xf32> to vector<16x64xf32>
    %31 = arith.addf %29, %30 : vector<16x64xf32>
    %32 = arith.truncf %31 : vector<16x64xf32> to vector<16x64xbf16>
    %c0_18 = arith.constant 0 : index
    %c0_19 = arith.constant 0 : index
    %33 = vector.load %arg9[%c0_18, %c0_19] : memref<16x64xbf16, #tpu.memory_space<vmem>>, vector<16x64xbf16>
    tpu.vector_store %arg9[%c0_18, %c0_19], %32 {strides = array<i32>} : memref<16x64xbf16, #tpu.memory_space<vmem>>, vector<16x64xbf16>,
    %c0_20 = arith.constant 0 : index
    %c0_21 = arith.constant 0 : index
    %34 = vector.load %arg7[%c0_20, %c0_21] : memref<64x4xbf16, #tpu.memory_space<vmem>>, vector<64x4xbf16>
    %cst_22 = arith.constant dense<0.000000e+00> : vector<16x4xf32>
    %35 = tpu.matmul %32, %34, %cst_22 {dimension_numbers = #tpu.dot_dimension_numbers<[1], [0], [0], [1], [0, 0, 1, 1], [], []>} : vector<16x64xbf16>, vector<64x4xbf16>, vector<16x4xf32> -> vector<16x4xf32>
    %c0_23 = arith.constant 0 : index
    %c0_24 = arith.constant 0 : index
    %36 = vector.load %arg10[%c0_23, %c0_24] : memref<16x4xf32, #tpu.memory_space<vmem>>, vector<16x4xf32>
    tpu.vector_store %arg10[%c0_23, %c0_24], %35 {strides = array<i32>} : memref<16x4xf32, #tpu.memory_space<vmem>>, vector<16x4xf32>,
    return
  }
  func.func @transform_0(%arg0: i32) -> (i32, i32) {
    %c0_i32 = arith.constant 0 : i32
    %c0_i32_0 = arith.constant 0 : i32
    return %arg0, %c0_i32 : i32, i32
  }
  func.func @transform_1(%arg0: i32) -> (i32, i32) {
    %c0_i32 = arith.constant 0 : i32
    %c0_i32_0 = arith.constant 0 : i32
    return %arg0, %c0_i32 : i32, i32
  }
  func.func @transform_2(%arg0: i32) -> (i32, i32) {
    %c0_i32 = arith.constant 0 : i32
    %c0_i32_0 = arith.constant 0 : i32
    %c0_i32_1 = arith.constant 0 : i32
    return %c0_i32, %c0_i32_0 : i32, i32
  }
  func.func @transform_3(%arg0: i32) -> (i32, i32) {
    %c0_i32 = arith.constant 0 : i32
    %c0_i32_0 = arith.constant 0 : i32
    %c0_i32_1 = arith.constant 0 : i32
    return %c0_i32, %c0_i32_0 : i32, i32
  }
  func.func @transform_4(%arg0: i32) -> (i32, i32) {
    %c0_i32 = arith.constant 0 : i32
    %c0_i32_0 = arith.constant 0 : i32
    %c0_i32_1 = arith.constant 0 : i32
    return %c0_i32, %c0_i32_0 : i32, i32
  }
  func.func @transform_5(%arg0: i32) -> (i32, i32) {
    %c0_i32 = arith.constant 0 : i32
    %c0_i32_0 = arith.constant 0 : i32
    %c0_i32_1 = arith.constant 0 : i32
    return %c0_i32, %c0_i32_0 : i32, i32
  }
  func.func @transform_6(%arg0: i32) -> (i32, i32) {
    %c0_i32 = arith.constant 0 : i32
    %c0_i32_0 = arith.constant 0 : i32
    %c0_i32_1 = arith.constant 0 : i32
    return %c0_i32, %c0_i32_0 : i32, i32
  }
  func.func @transform_7(%arg0: i32) -> (i32, i32) {
    %c0_i32 = arith.constant 0 : i32
    %c0_i32_0 = arith.constant 0 : i32
    return %arg0, %c0_i32 : i32, i32
  }
  func.func @transform_8(%arg0: i32) -> (i32, i32) {
    %c0_i32 = arith.constant 0 : i32
    %c0_i32_0 = arith.constant 0 : i32
    return %arg0, %c0_i32 : i32, i32
  }
  func.func @transform_9(%arg0: i32) -> (i32, i32) {
    %c0_i32 = arith.constant 0 : i32
    %c0_i32_0 = arith.constant 0 : i32
    return %arg0, %c0_i32 : i32, i32
  }
}

module attributes {stable_mosaic.version = 11 : i64} {
  func.func @_attn_kernel(%arg0: i32, %arg1: memref<1x8x128xf32, #tpu.memory_space<vmem>>, %arg2: memref<8x16xf32, #tpu.memory_space<vmem>>, %arg3: memref<8x16xf32, #tpu.memory_space<vmem>>, %arg4: memref<8x8xf32, #tpu.memory_space<vmem>>, %arg5: memref<1x8x64xf32, #tpu.memory_space<vmem>>) attributes {dimension_semantics = [#tpu.dimension_semantics<parallel>], iteration_bounds = array<i64: 2>, scalar_prefetch = 0 : i64, scratch_operands = 0 : i64, tpu.core_type = #tpu.core_type<tc>, window_params = [{transform_indices = @transform_0, window_bounds = array<i64: 1, 8, 128>}, {pipeline_mode = #tpu.pipeline_mode<synchronous>, transform_indices = @transform_1, window_bounds = array<i64: 8, 16>}, {pipeline_mode = #tpu.pipeline_mode<synchronous>, transform_indices = @transform_2, window_bounds = array<i64: 8, 16>}, {pipeline_mode = #tpu.pipeline_mode<synchronous>, transform_indices = @transform_3, window_bounds = array<i64: 8, 8>}, {transform_indices = @transform_4, window_bounds = array<i64: 1, 8, 64>}]} {
    %c0 = arith.constant 0 : index
    %c0_0 = arith.constant 0 : index
    %c0_1 = arith.constant 0 : index
    %0 = vector.load %arg1[%c0, %c0_0, %c0_1] : memref<1x8x128xf32, #tpu.memory_space<vmem>>, vector<1x8x128xf32>
    %1 = vector.shape_cast %0 : vector<1x8x128xf32> to vector<8x128xf32>
    %c0_2 = arith.constant 0 : index
    %c0_3 = arith.constant 0 : index
    %2 = vector.load %arg2[%c0_2, %c0_3] : memref<8x16xf32, #tpu.memory_space<vmem>>, vector<8x16xf32>
    %c0_4 = arith.constant 0 : index
    %c0_5 = arith.constant 0 : index
    %3 = vector.load %arg3[%c0_4, %c0_5] : memref<8x16xf32, #tpu.memory_space<vmem>>, vector<8x16xf32>
    %c0_6 = arith.constant 0 : index
    %c0_7 = arith.constant 0 : index
    %4 = vector.load %arg4[%c0_6, %c0_7] : memref<8x8xf32, #tpu.memory_space<vmem>>, vector<8x8xf32>
    %5 = vector.extract_strided_slice %1 {offsets = [0, 64], sizes = [8, 16], strides = [1, 1]} : vector<8x128xf32> to vector<8x16xf32>
    %6 = vector.extract_strided_slice %5 {offsets = [0, 8], sizes = [8, 8], strides = [1, 1]} : vector<8x16xf32> to vector<8x8xf32>
    %cst = arith.constant 0.000000e+00 : f32
    %7 = vector.broadcast %cst : f32 to vector<8x8xf32>
    %8 = arith.subf %7, %6 : vector<8x8xf32>
    %9 = vector.extract_strided_slice %5 {offsets = [0, 0], sizes = [8, 8], strides = [1, 1]} : vector<8x16xf32> to vector<8x8xf32>
    %10 = tpu.concatenate %8, %9 in 1 : vector<8x8xf32>, vector<8x8xf32> -> vector<8x16xf32>
    %11 = arith.mulf %5, %2 : vector<8x16xf32>
    %12 = arith.mulf %10, %3 : vector<8x16xf32>
    %13 = arith.addf %11, %12 : vector<8x16xf32>
    %14 = vector.extract_strided_slice %1 {offsets = [0, 96], sizes = [8, 16], strides = [1, 1]} : vector<8x128xf32> to vector<8x16xf32>
    %15 = vector.extract_strided_slice %1 {offsets = [0, 0], sizes = [8, 16], strides = [1, 1]} : vector<8x128xf32> to vector<8x16xf32>
    %16 = vector.extract_strided_slice %15 {offsets = [0, 8], sizes = [8, 8], strides = [1, 1]} : vector<8x16xf32> to vector<8x8xf32>
    %cst_8 = arith.constant 0.000000e+00 : f32
    %17 = vector.broadcast %cst_8 : f32 to vector<8x8xf32>
    %18 = arith.subf %17, %16 : vector<8x8xf32>
    %19 = vector.extract_strided_slice %15 {offsets = [0, 0], sizes = [8, 8], strides = [1, 1]} : vector<8x16xf32> to vector<8x8xf32>
    %20 = tpu.concatenate %18, %19 in 1 : vector<8x8xf32>, vector<8x8xf32> -> vector<8x16xf32>
    %21 = arith.mulf %15, %2 : vector<8x16xf32>
    %22 = arith.mulf %20, %3 : vector<8x16xf32>
    %23 = arith.addf %21, %22 : vector<8x16xf32>
    %cst_9 = arith.constant dense<0.000000e+00> : vector<8x8xf32>
    %24 = tpu.matmul %23, %13, %cst_9 {dimension_numbers = #tpu.dot_dimension_numbers<[1], [1], [0], [0], [0, 0, 1, 0], [], []>} : vector<8x16xf32>, vector<8x16xf32>, vector<8x8xf32> -> vector<8x8xf32>
    %cst_10 = arith.constant 2.500000e-01 : f32
    %25 = vector.broadcast %cst_10 : f32 to vector<8x8xf32>
    %26 = arith.mulf %24, %25 : vector<8x8xf32>
    %27 = arith.addf %26, %4 : vector<8x8xf32>
    %cst_11 = arith.constant dense<0xFF800000> : vector<8xf32>
    %28 = vector.multi_reduction <maximumf>, %27, %cst_11 [1] : vector<8x8xf32> to vector<8xf32>
    %29 = vector.shape_cast %28 : vector<8xf32> to vector<8x1xf32>
    %30 = vector.broadcast %29 : vector<8x1xf32> to vector<8x8xf32>
    %31 = arith.subf %27, %30 : vector<8x8xf32>
    %32 = math.exp %31 : vector<8x8xf32>
    %cst_12 = arith.constant dense<0.000000e+00> : vector<8xf32>
    %33 = vector.multi_reduction <add>, %32, %cst_12 [1] : vector<8x8xf32> to vector<8xf32>
    %34 = vector.shape_cast %33 : vector<8xf32> to vector<8x1xf32>
    %35 = tpu.reciprocal %34 {approx = true} : vector<8x1xf32> -> vector<8x1xf32>
    %36 = vector.broadcast %35 : vector<8x1xf32> to vector<8x8xf32>
    %37 = arith.mulf %32, %36 : vector<8x8xf32>
    %cst_13 = arith.constant dense<0.000000e+00> : vector<8x16xf32>
    %38 = tpu.matmul %37, %14, %cst_13 {dimension_numbers = #tpu.dot_dimension_numbers<[1], [0], [0], [1], [0, 0, 1, 1], [], []>} : vector<8x8xf32>, vector<8x16xf32>, vector<8x16xf32> -> vector<8x16xf32>
    %39 = vector.extract_strided_slice %1 {offsets = [0, 16], sizes = [8, 16], strides = [1, 1]} : vector<8x128xf32> to vector<8x16xf32>
    %40 = vector.extract_strided_slice %39 {offsets = [0, 8], sizes = [8, 8], strides = [1, 1]} : vector<8x16xf32> to vector<8x8xf32>
    %cst_14 = arith.constant 0.000000e+00 : f32
    %41 = vector.broadcast %cst_14 : f32 to vector<8x8xf32>
    %42 = arith.subf %41, %40 : vector<8x8xf32>
    %43 = vector.extract_strided_slice %39 {offsets = [0, 0], sizes = [8, 8], strides = [1, 1]} : vector<8x16xf32> to vector<8x8xf32>
    %44 = tpu.concatenate %42, %43 in 1 : vector<8x8xf32>, vector<8x8xf32> -> vector<8x16xf32>
    %45 = arith.mulf %39, %2 : vector<8x16xf32>
    %46 = arith.mulf %44, %3 : vector<8x16xf32>
    %47 = arith.addf %45, %46 : vector<8x16xf32>
    %cst_15 = arith.constant dense<0.000000e+00> : vector<8x8xf32>
    %48 = tpu.matmul %47, %13, %cst_15 {dimension_numbers = #tpu.dot_dimension_numbers<[1], [1], [0], [0], [0, 0, 1, 0], [], []>} : vector<8x16xf32>, vector<8x16xf32>, vector<8x8xf32> -> vector<8x8xf32>
    %cst_16 = arith.constant 2.500000e-01 : f32
    %49 = vector.broadcast %cst_16 : f32 to vector<8x8xf32>
    %50 = arith.mulf %48, %49 : vector<8x8xf32>
    %51 = arith.addf %50, %4 : vector<8x8xf32>
    %cst_17 = arith.constant dense<0xFF800000> : vector<8xf32>
    %52 = vector.multi_reduction <maximumf>, %51, %cst_17 [1] : vector<8x8xf32> to vector<8xf32>
    %53 = vector.shape_cast %52 : vector<8xf32> to vector<8x1xf32>
    %54 = vector.broadcast %53 : vector<8x1xf32> to vector<8x8xf32>
    %55 = arith.subf %51, %54 : vector<8x8xf32>
    %56 = math.exp %55 : vector<8x8xf32>
    %cst_18 = arith.constant dense<0.000000e+00> : vector<8xf32>
    %57 = vector.multi_reduction <add>, %56, %cst_18 [1] : vector<8x8xf32> to vector<8xf32>
    %58 = vector.shape_cast %57 : vector<8xf32> to vector<8x1xf32>
    %59 = tpu.reciprocal %58 {approx = true} : vector<8x1xf32> -> vector<8x1xf32>
    %60 = vector.broadcast %59 : vector<8x1xf32> to vector<8x8xf32>
    %61 = arith.mulf %56, %60 : vector<8x8xf32>
    %cst_19 = arith.constant dense<0.000000e+00> : vector<8x16xf32>
    %62 = tpu.matmul %61, %14, %cst_19 {dimension_numbers = #tpu.dot_dimension_numbers<[1], [0], [0], [1], [0, 0, 1, 1], [], []>} : vector<8x8xf32>, vector<8x16xf32>, vector<8x16xf32> -> vector<8x16xf32>
    %63 = vector.extract_strided_slice %1 {offsets = [0, 80], sizes = [8, 16], strides = [1, 1]} : vector<8x128xf32> to vector<8x16xf32>
    %64 = vector.extract_strided_slice %63 {offsets = [0, 8], sizes = [8, 8], strides = [1, 1]} : vector<8x16xf32> to vector<8x8xf32>
    %cst_20 = arith.constant 0.000000e+00 : f32
    %65 = vector.broadcast %cst_20 : f32 to vector<8x8xf32>
    %66 = arith.subf %65, %64 : vector<8x8xf32>
    %67 = vector.extract_strided_slice %63 {offsets = [0, 0], sizes = [8, 8], strides = [1, 1]} : vector<8x16xf32> to vector<8x8xf32>
    %68 = tpu.concatenate %66, %67 in 1 : vector<8x8xf32>, vector<8x8xf32> -> vector<8x16xf32>
    %69 = arith.mulf %63, %2 : vector<8x16xf32>
    %70 = arith.mulf %68, %3 : vector<8x16xf32>
    %71 = arith.addf %69, %70 : vector<8x16xf32>
    %72 = vector.extract_strided_slice %1 {offsets = [0, 112], sizes = [8, 16], strides = [1, 1]} : vector<8x128xf32> to vector<8x16xf32>
    %73 = vector.extract_strided_slice %1 {offsets = [0, 32], sizes = [8, 16], strides = [1, 1]} : vector<8x128xf32> to vector<8x16xf32>
    %74 = vector.extract_strided_slice %73 {offsets = [0, 8], sizes = [8, 8], strides = [1, 1]} : vector<8x16xf32> to vector<8x8xf32>
    %cst_21 = arith.constant 0.000000e+00 : f32
    %75 = vector.broadcast %cst_21 : f32 to vector<8x8xf32>
    %76 = arith.subf %75, %74 : vector<8x8xf32>
    %77 = vector.extract_strided_slice %73 {offsets = [0, 0], sizes = [8, 8], strides = [1, 1]} : vector<8x16xf32> to vector<8x8xf32>
    %78 = tpu.concatenate %76, %77 in 1 : vector<8x8xf32>, vector<8x8xf32> -> vector<8x16xf32>
    %79 = arith.mulf %73, %2 : vector<8x16xf32>
    %80 = arith.mulf %78, %3 : vector<8x16xf32>
    %81 = arith.addf %79, %80 : vector<8x16xf32>
    %cst_22 = arith.constant dense<0.000000e+00> : vector<8x8xf32>
    %82 = tpu.matmul %81, %71, %cst_22 {dimension_numbers = #tpu.dot_dimension_numbers<[1], [1], [0], [0], [0, 0, 1, 0], [], []>} : vector<8x16xf32>, vector<8x16xf32>, vector<8x8xf32> -> vector<8x8xf32>
    %cst_23 = arith.constant 2.500000e-01 : f32
    %83 = vector.broadcast %cst_23 : f32 to vector<8x8xf32>
    %84 = arith.mulf %82, %83 : vector<8x8xf32>
    %85 = arith.addf %84, %4 : vector<8x8xf32>
    %cst_24 = arith.constant dense<0xFF800000> : vector<8xf32>
    %86 = vector.multi_reduction <maximumf>, %85, %cst_24 [1] : vector<8x8xf32> to vector<8xf32>
    %87 = vector.shape_cast %86 : vector<8xf32> to vector<8x1xf32>
    %88 = vector.broadcast %87 : vector<8x1xf32> to vector<8x8xf32>
    %89 = arith.subf %85, %88 : vector<8x8xf32>
    %90 = math.exp %89 : vector<8x8xf32>
    %cst_25 = arith.constant dense<0.000000e+00> : vector<8xf32>
    %91 = vector.multi_reduction <add>, %90, %cst_25 [1] : vector<8x8xf32> to vector<8xf32>
    %92 = vector.shape_cast %91 : vector<8xf32> to vector<8x1xf32>
    %93 = tpu.reciprocal %92 {approx = true} : vector<8x1xf32> -> vector<8x1xf32>
    %94 = vector.broadcast %93 : vector<8x1xf32> to vector<8x8xf32>
    %95 = arith.mulf %90, %94 : vector<8x8xf32>
    %cst_26 = arith.constant dense<0.000000e+00> : vector<8x16xf32>
    %96 = tpu.matmul %95, %72, %cst_26 {dimension_numbers = #tpu.dot_dimension_numbers<[1], [0], [0], [1], [0, 0, 1, 1], [], []>} : vector<8x8xf32>, vector<8x16xf32>, vector<8x16xf32> -> vector<8x16xf32>
    %97 = vector.extract_strided_slice %1 {offsets = [0, 48], sizes = [8, 16], strides = [1, 1]} : vector<8x128xf32> to vector<8x16xf32>
    %98 = vector.extract_strided_slice %97 {offsets = [0, 8], sizes = [8, 8], strides = [1, 1]} : vector<8x16xf32> to vector<8x8xf32>
    %cst_27 = arith.constant 0.000000e+00 : f32
    %99 = vector.broadcast %cst_27 : f32 to vector<8x8xf32>
    %100 = arith.subf %99, %98 : vector<8x8xf32>
    %101 = vector.extract_strided_slice %97 {offsets = [0, 0], sizes = [8, 8], strides = [1, 1]} : vector<8x16xf32> to vector<8x8xf32>
    %102 = tpu.concatenate %100, %101 in 1 : vector<8x8xf32>, vector<8x8xf32> -> vector<8x16xf32>
    %103 = arith.mulf %97, %2 : vector<8x16xf32>
    %104 = arith.mulf %102, %3 : vector<8x16xf32>
    %105 = arith.addf %103, %104 : vector<8x16xf32>
    %cst_28 = arith.constant dense<0.000000e+00> : vector<8x8xf32>
    %106 = tpu.matmul %105, %71, %cst_28 {dimension_numbers = #tpu.dot_dimension_numbers<[1], [1], [0], [0], [0, 0, 1, 0], [], []>} : vector<8x16xf32>, vector<8x16xf32>, vector<8x8xf32> -> vector<8x8xf32>
    %cst_29 = arith.constant 2.500000e-01 : f32
    %107 = vector.broadcast %cst_29 : f32 to vector<8x8xf32>
    %108 = arith.mulf %106, %107 : vector<8x8xf32>
    %109 = arith.addf %108, %4 : vector<8x8xf32>
    %cst_30 = arith.constant dense<0xFF800000> : vector<8xf32>
    %110 = vector.multi_reduction <maximumf>, %109, %cst_30 [1] : vector<8x8xf32> to vector<8xf32>
    %111 = vector.shape_cast %110 : vector<8xf32> to vector<8x1xf32>
    %112 = vector.broadcast %111 : vector<8x1xf32> to vector<8x8xf32>
    %113 = arith.subf %109, %112 : vector<8x8xf32>
    %114 = math.exp %113 : vector<8x8xf32>
    %cst_31 = arith.constant dense<0.000000e+00> : vector<8xf32>
    %115 = vector.multi_reduction <add>, %114, %cst_31 [1] : vector<8x8xf32> to vector<8xf32>
    %116 = vector.shape_cast %115 : vector<8xf32> to vector<8x1xf32>
    %117 = tpu.reciprocal %116 {approx = true} : vector<8x1xf32> -> vector<8x1xf32>
    %118 = vector.broadcast %117 : vector<8x1xf32> to vector<8x8xf32>
    %119 = arith.mulf %114, %118 : vector<8x8xf32>
    %cst_32 = arith.constant dense<0.000000e+00> : vector<8x16xf32>
    %120 = tpu.matmul %119, %72, %cst_32 {dimension_numbers = #tpu.dot_dimension_numbers<[1], [0], [0], [1], [0, 0, 1, 1], [], []>} : vector<8x8xf32>, vector<8x16xf32>, vector<8x16xf32> -> vector<8x16xf32>
    %121 = tpu.concatenate %38, %62, %96, %120 in 1 : vector<8x16xf32>, vector<8x16xf32>, vector<8x16xf32>, vector<8x16xf32> -> vector<8x64xf32>
    %c0_33 = arith.constant 0 : index
    %c0_34 = arith.constant 0 : index
    %c0_35 = arith.constant 0 : index
    %122 = vector.load %arg5[%c0_33, %c0_34, %c0_35] : memref<1x8x64xf32, #tpu.memory_space<vmem>>, vector<1x8x64xf32>
    %123 = vector.shape_cast %122 : vector<1x8x64xf32> to vector<8x64xf32>
    %124 = vector.shape_cast %121 : vector<8x64xf32> to vector<1x8x64xf32>
    tpu.vector_store %arg5[%c0_33, %c0_34, %c0_35], %124 {strides = array<i32>} : memref<1x8x64xf32, #tpu.memory_space<vmem>>, vector<1x8x64xf32>,
    return
  }
  func.func @transform_0(%arg0: i32) -> (i32, i32, i32) {
    %c0_i32 = arith.constant 0 : i32
    %c0_i32_0 = arith.constant 0 : i32
    %c0_i32_1 = arith.constant 0 : i32
    return %arg0, %c0_i32, %c0_i32_0 : i32, i32, i32
  }
  func.func @transform_1(%arg0: i32) -> (i32, i32) {
    %c0_i32 = arith.constant 0 : i32
    %c0_i32_0 = arith.constant 0 : i32
    %c0_i32_1 = arith.constant 0 : i32
    return %c0_i32, %c0_i32_0 : i32, i32
  }
  func.func @transform_2(%arg0: i32) -> (i32, i32) {
    %c0_i32 = arith.constant 0 : i32
    %c0_i32_0 = arith.constant 0 : i32
    %c0_i32_1 = arith.constant 0 : i32
    return %c0_i32, %c0_i32_0 : i32, i32
  }
  func.func @transform_3(%arg0: i32) -> (i32, i32) {
    %c0_i32 = arith.constant 0 : i32
    %c0_i32_0 = arith.constant 0 : i32
    %c0_i32_1 = arith.constant 0 : i32
    return %c0_i32, %c0_i32_0 : i32, i32
  }
  func.func @transform_4(%arg0: i32) -> (i32, i32, i32) {
    %c0_i32 = arith.constant 0 : i32
    %c0_i32_0 = arith.constant 0 : i32
    %c0_i32_1 = arith.constant 0 : i32
    return %arg0, %c0_i32, %c0_i32_0 : i32, i32, i32
  }
}

module attributes {stable_mosaic.version = 11 : i64} {
  func.func @_moe_kernel(%arg0: i32, %arg1: memref<16x64xbf16, #tpu.memory_space<vmem>>, %arg2: memref<1x16x1xf32, #tpu.memory_space<vmem>>, %arg3: memref<1x64x128xbf16, #tpu.memory_space<vmem>>, %arg4: memref<1x64x128xbf16, #tpu.memory_space<vmem>>, %arg5: memref<1x128x64xbf16, #tpu.memory_space<vmem>>, %arg6: memref<16x64xf32, #tpu.memory_space<vmem>>) attributes {dimension_semantics = [#tpu.dimension_semantics<arbitrary>], iteration_bounds = array<i64: 4>, scalar_prefetch = 0 : i64, scratch_operands = 0 : i64, tpu.core_type = #tpu.core_type<tc>, window_params = [{pipeline_mode = #tpu.pipeline_mode<synchronous>, transform_indices = @transform_0, window_bounds = array<i64: 16, 64>}, {transform_indices = @transform_1, window_bounds = array<i64: 1, 16, 1>}, {transform_indices = @transform_2, window_bounds = array<i64: 1, 64, 128>}, {transform_indices = @transform_3, window_bounds = array<i64: 1, 64, 128>}, {transform_indices = @transform_4, window_bounds = array<i64: 1, 128, 64>}, {pipeline_mode = #tpu.pipeline_mode<synchronous>, transform_indices = @transform_5, window_bounds = array<i64: 16, 64>}]} {
    %c0_i32 = arith.constant 0 : i32
    %0 = arith.cmpi eq, %arg0, %c0_i32 : i32
    %1 = arith.extui %0 : i1 to i32
    %c0_i32_0 = arith.constant 0 : i32
    %2 = arith.cmpi ne, %1, %c0_i32_0 : i32
    scf.if %2 {
      %cst_21 = arith.constant 0.000000e+00 : f32
      %28 = vector.broadcast %cst_21 : f32 to vector<16x64xf32>
      %c0_22 = arith.constant 0 : index
      %c0_23 = arith.constant 0 : index
      %29 = vector.load %arg6[%c0_22, %c0_23] : memref<16x64xf32, #tpu.memory_space<vmem>>, vector<16x64xf32>
      tpu.vector_store %arg6[%c0_22, %c0_23], %28 {strides = array<i32>} : memref<16x64xf32, #tpu.memory_space<vmem>>, vector<16x64xf32>,
    } else {
    }
    %c0 = arith.constant 0 : index
    %c0_1 = arith.constant 0 : index
    %3 = vector.load %arg1[%c0, %c0_1] : memref<16x64xbf16, #tpu.memory_space<vmem>>, vector<16x64xbf16>
    %c0_2 = arith.constant 0 : index
    %c0_3 = arith.constant 0 : index
    %c0_4 = arith.constant 0 : index
    %4 = vector.load %arg3[%c0_2, %c0_3, %c0_4] : memref<1x64x128xbf16, #tpu.memory_space<vmem>>, vector<1x64x128xbf16>
    %5 = vector.shape_cast %4 : vector<1x64x128xbf16> to vector<64x128xbf16>
    %cst = arith.constant dense<0.000000e+00> : vector<16x128xf32>
    %6 = tpu.matmul %3, %5, %cst {dimension_numbers = #tpu.dot_dimension_numbers<[1], [0], [0], [1], [0, 0, 1, 1], [], []>} : vector<16x64xbf16>, vector<64x128xbf16>, vector<16x128xf32> -> vector<16x128xf32>
    %c0_5 = arith.constant 0 : index
    %c0_6 = arith.constant 0 : index
    %c0_7 = arith.constant 0 : index
    %7 = vector.load %arg4[%c0_5, %c0_6, %c0_7] : memref<1x64x128xbf16, #tpu.memory_space<vmem>>, vector<1x64x128xbf16>
    %8 = vector.shape_cast %7 : vector<1x64x128xbf16> to vector<64x128xbf16>
    %cst_8 = arith.constant dense<0.000000e+00> : vector<16x128xf32>
    %9 = tpu.matmul %3, %8, %cst_8 {dimension_numbers = #tpu.dot_dimension_numbers<[1], [0], [0], [1], [0, 0, 1, 1], [], []>} : vector<16x64xbf16>, vector<64x128xbf16>, vector<16x128xf32> -> vector<16x128xf32>
    %10 = arith.negf %6 : vector<16x128xf32>
    %11 = math.exp %10 : vector<16x128xf32>
    %cst_9 = arith.constant 1.000000e+00 : f32
    %12 = vector.broadcast %cst_9 : f32 to vector<16x128xf32>
    %13 = arith.addf %12, %11 : vector<16x128xf32>
    %14 = arith.divf %12, %13 : vector<16x128xf32>
    %15 = arith.mulf %6, %14 : vector<16x128xf32>
    %16 = arith.mulf %15, %9 : vector<16x128xf32>
    %17 = arith.truncf %16 : vector<16x128xf32> to vector<16x128xbf16>
    %c0_10 = arith.constant 0 : index
    %c0_11 = arith.constant 0 : index
    %c0_12 = arith.constant 0 : index
    %18 = vector.load %arg5[%c0_10, %c0_11, %c0_12] : memref<1x128x64xbf16, #tpu.memory_space<vmem>>, vector<1x128x64xbf16>
    %19 = vector.shape_cast %18 : vector<1x128x64xbf16> to vector<128x64xbf16>
    %cst_13 = arith.constant dense<0.000000e+00> : vector<16x64xf32>
    %20 = tpu.matmul %17, %19, %cst_13 {dimension_numbers = #tpu.dot_dimension_numbers<[1], [0], [0], [1], [0, 0, 1, 1], [], []>} : vector<16x128xbf16>, vector<128x64xbf16>, vector<16x64xf32> -> vector<16x64xf32>
    %c0_14 = arith.constant 0 : index
    %c0_15 = arith.constant 0 : index
    %21 = vector.load %arg6[%c0_14, %c0_15] : memref<16x64xf32, #tpu.memory_space<vmem>>, vector<16x64xf32>
    %c0_16 = arith.constant 0 : index
    %c0_17 = arith.constant 0 : index
    %c0_18 = arith.constant 0 : index
    %22 = vector.load %arg2[%c0_16, %c0_17, %c0_18] : memref<1x16x1xf32, #tpu.memory_space<vmem>>, vector<1x16x1xf32>
    %23 = vector.shape_cast %22 : vector<1x16x1xf32> to vector<16x1xf32>
    %24 = vector.broadcast %23 : vector<16x1xf32> to vector<16x64xf32>
    %25 = arith.mulf %24, %20 : vector<16x64xf32>
    %26 = arith.addf %21, %25 : vector<16x64xf32>
    %c0_19 = arith.constant 0 : index
    %c0_20 = arith.constant 0 : index
    %27 = vector.load %arg6[%c0_19, %c0_20] : memref<16x64xf32, #tpu.memory_space<vmem>>, vector<16x64xf32>
    tpu.vector_store %arg6[%c0_19, %c0_20], %26 {strides = array<i32>} : memref<16x64xf32, #tpu.memory_space<vmem>>, vector<16x64xf32>,
    return
  }
  func.func @transform_0(%arg0: i32) -> (i32, i32) {
    %c0_i32 = arith.constant 0 : i32
    %c0_i32_0 = arith.constant 0 : i32
    %c0_i32_1 = arith.constant 0 : i32
    return %c0_i32, %c0_i32_0 : i32, i32
  }
  func.func @transform_1(%arg0: i32) -> (i32, i32, i32) {
    %c0_i32 = arith.constant 0 : i32
    %c0_i32_0 = arith.constant 0 : i32
    %c0_i32_1 = arith.constant 0 : i32
    return %arg0, %c0_i32, %c0_i32_0 : i32, i32, i32
  }
  func.func @transform_2(%arg0: i32) -> (i32, i32, i32) {
    %c0_i32 = arith.constant 0 : i32
    %c0_i32_0 = arith.constant 0 : i32
    %c0_i32_1 = arith.constant 0 : i32
    return %arg0, %c0_i32, %c0_i32_0 : i32, i32, i32
  }
  func.func @transform_3(%arg0: i32) -> (i32, i32, i32) {
    %c0_i32 = arith.constant 0 : i32
    %c0_i32_0 = arith.constant 0 : i32
    %c0_i32_1 = arith.constant 0 : i32
    return %arg0, %c0_i32, %c0_i32_0 : i32, i32, i32
  }
  func.func @transform_4(%arg0: i32) -> (i32, i32, i32) {
    %c0_i32 = arith.constant 0 : i32
    %c0_i32_0 = arith.constant 0 : i32
    %c0_i32_1 = arith.constant 0 : i32
    return %arg0, %c0_i32, %c0_i32_0 : i32, i32, i32
  }
  func.func @transform_5(%arg0: i32) -> (i32, i32) {
    %c0_i32 = arith.constant 0 : i32
    %c0_i32_0 = arith.constant 0 : i32
    %c0_i32_1 = arith.constant 0 : i32
    return %c0_i32, %c0_i32_0 : i32, i32
  }
}

module attributes {stable_mosaic.version = 11 : i64} {
  func.func @_final_kernel(%arg0: i32, %arg1: memref<16x64xf32, #tpu.memory_space<vmem>>, %arg2: memref<16x64xf32, #tpu.memory_space<vmem>>, %arg3: memref<1x64xf32, #tpu.memory_space<vmem>>, %arg4: memref<1x64xf32, #tpu.memory_space<vmem>>, %arg5: memref<64x128xbf16, #tpu.memory_space<vmem>>, %arg6: memref<1x128xf32, #tpu.memory_space<vmem>>, %arg7: memref<16x128xf32, #tpu.memory_space<vmem>>) attributes {dimension_semantics = [#tpu.dimension_semantics<parallel>], iteration_bounds = array<i64: 1>, scalar_prefetch = 0 : i64, scratch_operands = 0 : i64, tpu.core_type = #tpu.core_type<tc>, window_params = [{transform_indices = @transform_0, window_bounds = array<i64: 16, 64>}, {transform_indices = @transform_1, window_bounds = array<i64: 16, 64>}, {pipeline_mode = #tpu.pipeline_mode<synchronous>, transform_indices = @transform_2, window_bounds = array<i64: 1, 64>}, {pipeline_mode = #tpu.pipeline_mode<synchronous>, transform_indices = @transform_3, window_bounds = array<i64: 1, 64>}, {pipeline_mode = #tpu.pipeline_mode<synchronous>, transform_indices = @transform_4, window_bounds = array<i64: 64, 128>}, {pipeline_mode = #tpu.pipeline_mode<synchronous>, transform_indices = @transform_5, window_bounds = array<i64: 1, 128>}, {transform_indices = @transform_6, window_bounds = array<i64: 16, 128>}]} {
    %c0 = arith.constant 0 : index
    %c0_0 = arith.constant 0 : index
    %0 = vector.load %arg1[%c0, %c0_0] : memref<16x64xf32, #tpu.memory_space<vmem>>, vector<16x64xf32>
    %c0_1 = arith.constant 0 : index
    %c0_2 = arith.constant 0 : index
    %1 = vector.load %arg2[%c0_1, %c0_2] : memref<16x64xf32, #tpu.memory_space<vmem>>, vector<16x64xf32>
    %2 = arith.addf %0, %1 : vector<16x64xf32>
    %c0_3 = arith.constant 0 : index
    %c0_4 = arith.constant 0 : index
    %3 = vector.load %arg3[%c0_3, %c0_4] : memref<1x64xf32, #tpu.memory_space<vmem>>, vector<1x64xf32>
    %c0_5 = arith.constant 0 : index
    %c0_6 = arith.constant 0 : index
    %4 = vector.load %arg4[%c0_5, %c0_6] : memref<1x64xf32, #tpu.memory_space<vmem>>, vector<1x64xf32>
    %cst = arith.constant dense<0.000000e+00> : vector<16xf32>
    %5 = vector.multi_reduction <add>, %2, %cst [1] : vector<16x64xf32> to vector<16xf32>
    %6 = vector.shape_cast %5 : vector<16xf32> to vector<16x1xf32>
    %cst_7 = arith.constant 6.400000e+01 : f32
    %7 = vector.broadcast %cst_7 : f32 to vector<16x1xf32>
    %8 = arith.divf %6, %7 : vector<16x1xf32>
    %9 = vector.broadcast %8 : vector<16x1xf32> to vector<16x64xf32>
    %10 = arith.subf %2, %9 : vector<16x64xf32>
    %11 = arith.mulf %10, %10 : vector<16x64xf32>
    %cst_8 = arith.constant dense<0.000000e+00> : vector<16xf32>
    %12 = vector.multi_reduction <add>, %11, %cst_8 [1] : vector<16x64xf32> to vector<16xf32>
    %13 = vector.shape_cast %12 : vector<16xf32> to vector<16x1xf32>
    %cst_9 = arith.constant 6.400000e+01 : f32
    %14 = vector.broadcast %cst_9 : f32 to vector<16x1xf32>
    %15 = arith.divf %13, %14 : vector<16x1xf32>
    %cst_10 = arith.constant 9.99999974E-6 : f32
    %16 = vector.broadcast %cst_10 : f32 to vector<16x1xf32>
    %17 = arith.addf %15, %16 : vector<16x1xf32>
    %18 = math.rsqrt %17 : vector<16x1xf32>
    %19 = vector.broadcast %18 : vector<16x1xf32> to vector<16x64xf32>
    %20 = arith.mulf %10, %19 : vector<16x64xf32>
    %21 = vector.broadcast %3 : vector<1x64xf32> to vector<16x64xf32>
    %22 = arith.mulf %20, %21 : vector<16x64xf32>
    %23 = vector.broadcast %4 : vector<1x64xf32> to vector<16x64xf32>
    %24 = arith.addf %22, %23 : vector<16x64xf32>
    %25 = arith.truncf %24 : vector<16x64xf32> to vector<16x64xbf16>
    %c0_11 = arith.constant 0 : index
    %c0_12 = arith.constant 0 : index
    %26 = vector.load %arg5[%c0_11, %c0_12] : memref<64x128xbf16, #tpu.memory_space<vmem>>, vector<64x128xbf16>
    %cst_13 = arith.constant dense<0.000000e+00> : vector<16x128xf32>
    %27 = tpu.matmul %25, %26, %cst_13 {dimension_numbers = #tpu.dot_dimension_numbers<[1], [0], [0], [1], [0, 0, 1, 1], [], []>} : vector<16x64xbf16>, vector<64x128xbf16>, vector<16x128xf32> -> vector<16x128xf32>
    %c0_14 = arith.constant 0 : index
    %c0_15 = arith.constant 0 : index
    %28 = vector.load %arg6[%c0_14, %c0_15] : memref<1x128xf32, #tpu.memory_space<vmem>>, vector<1x128xf32>
    %29 = vector.broadcast %28 : vector<1x128xf32> to vector<16x128xf32>
    %30 = arith.addf %27, %29 : vector<16x128xf32>
    %c0_16 = arith.constant 0 : index
    %c0_17 = arith.constant 0 : index
    %31 = vector.load %arg7[%c0_16, %c0_17] : memref<16x128xf32, #tpu.memory_space<vmem>>, vector<16x128xf32>
    tpu.vector_store %arg7[%c0_16, %c0_17], %30 {strides = array<i32>} : memref<16x128xf32, #tpu.memory_space<vmem>>, vector<16x128xf32>,
    return
  }
  func.func @transform_0(%arg0: i32) -> (i32, i32) {
    %c0_i32 = arith.constant 0 : i32
    %c0_i32_0 = arith.constant 0 : i32
    return %arg0, %c0_i32 : i32, i32
  }
  func.func @transform_1(%arg0: i32) -> (i32, i32) {
    %c0_i32 = arith.constant 0 : i32
    %c0_i32_0 = arith.constant 0 : i32
    return %arg0, %c0_i32 : i32, i32
  }
  func.func @transform_2(%arg0: i32) -> (i32, i32) {
    %c0_i32 = arith.constant 0 : i32
    %c0_i32_0 = arith.constant 0 : i32
    %c0_i32_1 = arith.constant 0 : i32
    return %c0_i32, %c0_i32_0 : i32, i32
  }
  func.func @transform_3(%arg0: i32) -> (i32, i32) {
    %c0_i32 = arith.constant 0 : i32
    %c0_i32_0 = arith.constant 0 : i32
    %c0_i32_1 = arith.constant 0 : i32
    return %c0_i32, %c0_i32_0 : i32, i32
  }
  func.func @transform_4(%arg0: i32) -> (i32, i32) {
    %c0_i32 = arith.constant 0 : i32
    %c0_i32_0 = arith.constant 0 : i32
    %c0_i32_1 = arith.constant 0 : i32
    return %c0_i32, %c0_i32_0 : i32, i32
  }
  func.func @transform_5(%arg0: i32) -> (i32, i32) {
    %c0_i32 = arith.constant 0 : i32
    %c0_i32_0 = arith.constant 0 : i32
    %c0_i32_1 = arith.constant 0 : i32
    return %c0_i32, %c0_i32_0 : i32, i32
  }
  func.func @transform_6(%arg0: i32) -> (i32, i32) {
    %c0_i32 = arith.constant 0 : i32
    %c0_i32_0 = arith.constant 0 : i32
    return %arg0, %c0_i32 : i32, i32
  }
}

</mosaic_0001>

<llo_original>
// kernel: transformer_forward.9
$region0: #{transformer_forward.9}
  #allocation0 [shape = 'u32[]', space=smem, size = 0x4, offset = 0x4, fixed_abs, tag = 'smem constant byte address 0x4 - core index']
  #allocation1 [shape = 'u32[144,128]{1,0:T(1,128)}', space=vmem, size = 0x12000, scoped, tag = 'internal scratch']
  %s0 = inlined_call_operand.vmem [shape: f32[16,64], index: 0, kind: input, shape index: {}]
  %s1 = inlined_call_operand.vmem [shape: f32[16,64], index: 1, kind: input, shape index: {}]
  %s2 = inlined_call_operand.vmem [shape: f32[1,64], index: 2, kind: input, shape index: {}]
  %s3 = inlined_call_operand.vmem [shape: f32[1,64], index: 3, kind: input, shape index: {}]
  %s4 = inlined_call_operand.vmem [shape: bf16[64,128], index: 4, kind: input, shape index: {}]
  %s5 = inlined_call_operand.vmem [shape: f32[1,128], index: 5, kind: input, shape index: {}]
  %s6 = inlined_call_operand.vmem [shape: f32[16,64], index: 6, kind: output, shape index: {0}]
  %s7 = inlined_call_operand.vmem [shape: f32[16,128], index: 7, kind: output, shape index: {1}]
  %8 = xla_tuple %s6, %s7
  %s9 = sld [smem:[#allocation0]]
  $region42: #{transformer_forward.9} parent=0
    _
  %s11 = ssub.s32 1, %s9
  %s12 = scalar_select 0, %s11, %s9
  // Predicated region
  $region2: #{transformer_forward.9} parent=0 // pred_check
    _
  $region3: #{transformer_forward.9} parent=0 // pred_check_branch
    %14 = sbr.rel (0) target = $region5
  $region4: #{transformer_forward.9} parent=0 // pred_region
    _
  $region5: #{transformer_forward.9} parent=0 // pred_fallthru
    _
  // Predicated region
  $region6: #{transformer_forward.9} parent=0 // pred_check
    _
  $region7: #{transformer_forward.9} parent=0 // pred_check_branch
    %16 = sbr.rel (0) target = $region9
  $region8: #{transformer_forward.9} parent=0 // pred_region
    _
  $region9: #{transformer_forward.9} parent=0 // pred_fallthru
    _
  // Predicated region
  $region10: #{transformer_forward.9} parent=0 // pred_check
    _
  $region11: #{transformer_forward.9} parent=0 // pred_check_branch
    %18 = sbr.rel (0) target = $region13
  $region12: #{transformer_forward.9} parent=0 // pred_region
    _
  $region13: #{transformer_forward.9} parent=0 // pred_fallthru
    _
  // Predicated region
  $region14: #{transformer_forward.9} parent=0 // pred_check
    _
  $region15: #{transformer_forward.9} parent=0 // pred_check_branch
    %20 = sbr.rel (0) target = $region17
  $region16: #{transformer_forward.9} parent=0 // pred_region
    _
  $region17: #{transformer_forward.9} parent=0 // pred_fallthru
    _
  // Predicated region
  $region18: #{transformer_forward.9} parent=0 // pred_check
    _
  $region19: #{transformer_forward.9} parent=0 // pred_check_branch
    %22 = sbr.rel (0) target = $region21
  $region20: #{transformer_forward.9} parent=0 // pred_region
    _
  $region21: #{transformer_forward.9} parent=0 // pred_fallthru
    _
  // Predicated region
  $region22: #{transformer_forward.9} parent=0 // pred_check
    _
  $region23: #{transformer_forward.9} parent=0 // pred_check_branch
    %24 = sbr.rel (0) target = $region25
  $region24: #{transformer_forward.9} parent=0 // pred_region
    _
  $region25: #{transformer_forward.9} parent=0 // pred_fallthru
    _
  %v26 = vld [vmem:[%s0] sm:$0xff]
  %v27 = vld [vmem:[%s0 + $0x8] sm:$0xff]
  %v28 = vld [vmem:[%s1] sm:$0xff]
  %v29 = vld [vmem:[%s1 + $0x8] sm:$0xff]
  %v30 = vadd.f32 %v26, %v28
  %v31 = vadd.f32 %v27, %v29
  %vm32 = vcmask 523264
  %33 = vst.msk [vmem:[%s6] sm:$0xff] %vm32, %v30
  %34 = vst.msk [vmem:[%s6 + $0x8] sm:$0xff] %vm32, %v31
  %v35 = vld [vmem:[%s2] sm:$0x1]
  %v36 = vld [vmem:[%s3] sm:$0x1]
  %v37 = vsel %vm32, %v30, 0.0
  %38 = vadd.xlane.f32.xlu0 %v37
  %v39 = vpop.xlane.xlu0 %38
  %v40 = vsel %vm32, %v31, 0.0
  %41 = vadd.xlane.f32.xlu0 %v40
  %v42 = vpop.xlane.xlu0 %41
  %v43 = vrcp.pop 64.0
  %v44 = vmul.f32 %v39, %v43
  %v45 = vmul.f32 %v42, %v43
  %v46 = vsub.f32 %v30, %v44
  %v47 = vsub.f32 %v31, %v45
  %v48 = vmul.f32 %v46, %v46
  %v49 = vmul.f32 %v47, %v47
  %v50 = vsel %vm32, %v48, 0.0
  %51 = vadd.xlane.f32.xlu0 %v50
  %v52 = vpop.xlane.xlu0 %51
  %v53 = vsel %vm32, %v49, 0.0
  %54 = vadd.xlane.f32.xlu0 %v53
  %v55 = vpop.xlane.xlu0 %54
  %v56 = vmul.f32 %v52, %v43
  %v57 = vmul.f32 %v55, %v43
  %v58 = vadd.f32 %v56, 1e-05
  %v59 = vadd.f32 %v57, 1e-05
  %v60 = vrsqrt.pop %v58
  %v61 = vrsqrt.pop %v59
  %v62 = vmul.f32 %v46, %v60
  %v63 = vmul.f32 %v47, %v61
  %v65 = vlaneseq
  %v66 = vshrl.u32 %v65, 7
  %v67 = vsub.s32 0, %v66
  %v68 = vrot.slane %v35, %v67
  %v70 = vmul.f32 %v62, %v68
  %v71 = vmul.f32 %v63, %v68
  %v73 = vlaneseq
  %v74 = vshrl.u32 %v73, 7
  %v75 = vsub.s32 0, %v74
  %v76 = vrot.slane %v36, %v75
  %v78 = vadd.f32 %v70, %v76
  %v79 = vadd.f32 %v71, %v76
  %v80 = vpack.c.bf16 %v79, %v78
  %v81 = vld [vmem:[%s4] sm:$0xf]
  %v82 = vld [vmem:[%s4 + $0x4] sm:$0xf]
  %v83 = vld [vmem:[%s4 + $0x8] sm:$0xf]
  %v84 = vld [vmem:[%s4 + $0xc] sm:$0xf]
  %v85 = vld [vmem:[%s4 + $0x10] sm:$0xf]
  %v86 = vld [vmem:[%s4 + $0x14] sm:$0xf]
  %v87 = vld [vmem:[%s4 + $0x18] sm:$0xf]
  %v88 = vld [vmem:[%s4 + $0x1c] sm:$0xf]
  %v89 = vld [vmem:[%s5] sm:$0x1]
  %v91 = vlaneseq
  %v92 = vshrl.u32 %v91, 7
  %v93 = vsub.s32 0, %v92
  %v94 = vrot.slane %v89, %v93
  %v104 = vunpack.c.l.b16 %v81
  %v105 = vunpack.c.l.b16 %v82
  %v106 = vunpack.c.l.b16 %v83
  %v107 = vunpack.c.l.b16 %v84
  %v108 = vunpack.c.l.b16 %v85
  %v109 = vunpack.c.l.b16 %v86
  %v110 = vunpack.c.l.b16 %v87
  %v111 = vunpack.c.l.b16 %v88
  %v112 = vpack.c.b16 %v105, %v104
  %v113 = vpack.c.b16 %v107, %v106
  %v114 = vpack.c.b16 %v109, %v108
  %v115 = vpack.c.b16 %v111, %v110
  %v121 = vsel %vm32, %v80, 0
  %123 = vmatprep.subr.bf16.mxu0 0
  %124 = vmatpush1.bf16.msra.mxu0 %v112
  %125 = vmatprep.subr.bf16.mxu0 0
  %126 = vmatpush1.bf16.msra.mxu0 %v113
  %127 = vmatprep.subr.bf16.mxu0 0
  %128 = vmatpush1.bf16.msra.mxu0 %v114
  %129 = vmatprep.subr.bf16.mxu0 0
  %130 = vmatpush1.bf16.msra.mxu0 %v115
  %131 = vmatprep.subr.bf16.mxu0 0
  %132 = vmatpush1.bf16.msra.mxu0 0
  %133 = vmatprep.subr.bf16.mxu0 0
  %134 = vmatpush1.bf16.msra.mxu0 0
  %135 = vmatprep.subr.bf16.mxu0 0
  %136 = vmatpush1.bf16.msra.mxu0 0
  %137 = vmatprep.subr.bf16.mxu0 0
  %138 = vmatpush1.bf16.msra.mxu0 0
  %139 = vmatprep.subr.bf16.mxu0 0
  %140 = vmatpush1.bf16.msra.mxu0 0
  %141 = vmatprep.subr.bf16.mxu0 0
  %142 = vmatpush1.bf16.msra.mxu0 0
  %143 = vmatprep.subr.bf16.mxu0 0
  %144 = vmatpush1.bf16.msra.mxu0 0
  %145 = vmatprep.subr.bf16.mxu0 0
  %146 = vmatpush1.bf16.msra.mxu0 0
  %147 = vmatprep.subr.bf16.mxu0 0
  %148 = vmatpush1.bf16.msra.mxu0 0
  %149 = vmatprep.subr.bf16.mxu0 0
  %150 = vmatpush1.bf16.msra.mxu0 0
  %151 = vmatprep.subr.bf16.mxu0 0
  %152 = vmatpush1.bf16.msra.mxu0 0
  %153 = vmatprep.subr.bf16.mxu0 0
  %154 = vmatpush1.bf16.msra.mxu0 0
  %155 = vmatprep.mubr.bf16.mxu0 0
  %156 = vmatmul.mubr.bf16.gmra.mrb[0].mxu0 %v121
  %v157 = vpop.f32.mrb[0].mxu0
  %v158 = vadd.f32 %v94, %v157
  %v159 = vpop.f32.mrb[0].mxu0
  %v160 = vpop.f32.mrb[0].mxu0
  %v161 = vadd.f32 %v94, %v160
  %v162 = vpop.f32.mrb[0].mxu0
  %163 = vdwg.mxu0
  %164 = vst [vmem:[%s7] sm:$0xff] %v158
  %165 = vst [vmem:[%s7 + $0x8] sm:$0xff] %v161
  // Predicated region
  $region26: #{transformer_forward.9} parent=0 // pred_check
    _
  $region27: #{transformer_forward.9} parent=0 // pred_check_branch
    %167 = sbr.rel (0) target = $region29
  $region28: #{transformer_forward.9} parent=0 // pred_region
    _
  $region29: #{transformer_forward.9} parent=0 // pred_fallthru
    _
  // Predicated region
  $region30: #{transformer_forward.9} parent=0 // pred_check
    _
  $region31: #{transformer_forward.9} parent=0 // pred_check_branch
    %169 = sbr.rel (0) target = $region33
  $region32: #{transformer_forward.9} parent=0 // pred_region
    _
  $region33: #{transformer_forward.9} parent=0 // pred_fallthru
    _
  // Predicated region
  $region34: #{transformer_forward.9} parent=0 // pred_check
    _
  $region35: #{transformer_forward.9} parent=0 // pred_check_branch
    %171 = sbr.rel (0) target = $region37
  $region36: #{transformer_forward.9} parent=0 // pred_region
    _
  $region37: #{transformer_forward.9} parent=0 // pred_fallthru
    _
  // Predicated region
  $region38: #{transformer_forward.9} parent=0 // pred_check
    _
  $region39: #{transformer_forward.9} parent=0 // pred_check_branch
    %173 = sbr.rel (0) target = $region41
  $region40: #{transformer_forward.9} parent=0 // pred_region
    _
  $region41: #{transformer_forward.9} parent=0 // pred_fallthru
    _

// kernel: transformer_forward.11
$region0: #{transformer_forward.11}
  #allocation0 [shape = 'u32[]', space=smem, size = 0x4, offset = 0x4, fixed_abs, tag = 'smem constant byte address 0x4 - core index']
  #allocation1 [shape = 'u32[144,128]{1,0:T(1,128)}', space=vmem, size = 0x12000, scoped, tag = 'internal scratch']
  %s0 = inlined_call_operand.vmem [shape: f32[16,64], index: 0, kind: input, shape index: {}]
  %s1 = inlined_call_operand.vmem [shape: f32[16,64], index: 1, kind: input, shape index: {}]
  %s2 = inlined_call_operand.vmem [shape: bf16[64,64], index: 2, kind: input, shape index: {}]
  %s3 = inlined_call_operand.vmem [shape: f32[1,64], index: 3, kind: input, shape index: {}]
  %s4 = inlined_call_operand.vmem [shape: f32[1,64], index: 4, kind: input, shape index: {}]
  %s5 = inlined_call_operand.vmem [shape: f32[1,64], index: 5, kind: input, shape index: {}]
  %s6 = inlined_call_operand.vmem [shape: bf16[64,4], index: 6, kind: input, shape index: {}]
  %s7 = inlined_call_operand.vmem [shape: f32[16,64], index: 7, kind: output, shape index: {0}]
  %s8 = inlined_call_operand.vmem [shape: bf16[16,64], index: 8, kind: output, shape index: {1}]
  %s9 = inlined_call_operand.vmem [shape: f32[16,4], index: 9, kind: output, shape index: {2}]
  %10 = xla_tuple %s7, %s8, %s9
  %s11 = sld [smem:[#allocation0]]
  $region54: #{transformer_forward.11} parent=0
    _
  %s13 = ssub.s32 1, %s11
  %s14 = scalar_select 0, %s13, %s11
  // Predicated region
  $region2: #{transformer_forward.11} parent=0 // pred_check
    _
  $region3: #{transformer_forward.11} parent=0 // pred_check_branch
    %16 = sbr.rel (0) target = $region5
  $region4: #{transformer_forward.11} parent=0 // pred_region
    _
  $region5: #{transformer_forward.11} parent=0 // pred_fallthru
    _
  // Predicated region
  $region6: #{transformer_forward.11} parent=0 // pred_check
    _
  $region7: #{transformer_forward.11} parent=0 // pred_check_branch
    %18 = sbr.rel (0) target = $region9
  $region8: #{transformer_forward.11} parent=0 // pred_region
    _
  $region9: #{transformer_forward.11} parent=0 // pred_fallthru
    _
  // Predicated region
  $region10: #{transformer_forward.11} parent=0 // pred_check
    _
  $region11: #{transformer_forward.11} parent=0 // pred_check_branch
    %20 = sbr.rel (0) target = $region13
  $region12: #{transformer_forward.11} parent=0 // pred_region
    _
  $region13: #{transformer_forward.11} parent=0 // pred_fallthru
    _
  // Predicated region
  $region14: #{transformer_forward.11} parent=0 // pred_check
    _
  $region15: #{transformer_forward.11} parent=0 // pred_check_branch
    %22 = sbr.rel (0) target = $region17
  $region16: #{transformer_forward.11} parent=0 // pred_region
    _
  $region17: #{transformer_forward.11} parent=0 // pred_fallthru
    _
  // Predicated region
  $region18: #{transformer_forward.11} parent=0 // pred_check
    _
  $region19: #{transformer_forward.11} parent=0 // pred_check_branch
    %24 = sbr.rel (0) target = $region21
  $region20: #{transformer_forward.11} parent=0 // pred_region
    _
  $region21: #{transformer_forward.11} parent=0 // pred_fallthru
    _
  // Predicated region
  $region22: #{transformer_forward.11} parent=0 // pred_check
    _
  $region23: #{transformer_forward.11} parent=0 // pred_check_branch
    %26 = sbr.rel (0) target = $region25
  $region24: #{transformer_forward.11} parent=0 // pred_region
    _
  $region25: #{transformer_forward.11} parent=0 // pred_fallthru
    _
  // Predicated region
  $region26: #{transformer_forward.11} parent=0 // pred_check
    _
  $region27: #{transformer_forward.11} parent=0 // pred_check_branch
    %28 = sbr.rel (0) target = $region29
  $region28: #{transformer_forward.11} parent=0 // pred_region
    _
  $region29: #{transformer_forward.11} parent=0 // pred_fallthru
    _
  %v30 = vld [vmem:[%s0] sm:$0xff]
  %v31 = vld [vmem:[%s0 + $0x8] sm:$0xff]
  %v32 = vpack.c.bf16 %v31, %v30
  %v33 = vld [vmem:[%s2] sm:$0xf]
  %v34 = vld [vmem:[%s2 + $0x4] sm:$0xf]
  %v35 = vld [vmem:[%s2 + $0x8] sm:$0xf]
  %v36 = vld [vmem:[%s2 + $0xc] sm:$0xf]
  %v37 = vld [vmem:[%s2 + $0x10] sm:$0xf]
  %v38 = vld [vmem:[%s2 + $0x14] sm:$0xf]
  %v39 = vld [vmem:[%s2 + $0x18] sm:$0xf]
  %v40 = vld [vmem:[%s2 + $0x1c] sm:$0xf]
  %v41 = vld [vmem:[%s3] sm:$0x1]
  %v43 = vlaneseq
  %v44 = vshrl.u32 %v43, 7
  %v45 = vsub.s32 0, %v44
  %v46 = vrot.slane %v41, %v45
  %v56 = vunpack.c.l.b16 %v33
  %v57 = vunpack.c.l.b16 %v34
  %v58 = vunpack.c.l.b16 %v35
  %v59 = vunpack.c.l.b16 %v36
  %v60 = vunpack.c.l.b16 %v37
  %v61 = vunpack.c.l.b16 %v38
  %v62 = vunpack.c.l.b16 %v39
  %v63 = vunpack.c.l.b16 %v40
  %v64 = vpack.c.b16 %v57, %v56
  %v65 = vpack.c.b16 %v59, %v58
  %v66 = vpack.c.b16 %v61, %v60
  %v67 = vpack.c.b16 %v63, %v62
  %vm72 = vcmask 523264
  %v74 = vsel %vm72, %v32, 0
  %76 = vmatprep.subr.bf16.mxu0 0
  %77 = vmatpush1.bf16.msra.mxu0 %v64
  %78 = vmatprep.subr.bf16.mxu0 0
  %79 = vmatpush1.bf16.msra.mxu0 %v65
  %80 = vmatprep.subr.bf16.mxu0 0
  %81 = vmatpush1.bf16.msra.mxu0 %v66
  %82 = vmatprep.subr.bf16.mxu0 0
  %83 = vmatpush1.bf16.msra.mxu0 %v67
  %84 = vmatprep.subr.bf16.mxu0 0
  %85 = vmatpush1.bf16.msra.mxu0 0
  %86 = vmatprep.subr.bf16.mxu0 0
  %87 = vmatpush1.bf16.msra.mxu0 0
  %88 = vmatprep.subr.bf16.mxu0 0
  %89 = vmatpush1.bf16.msra.mxu0 0
  %90 = vmatprep.subr.bf16.mxu0 0
  %91 = vmatpush1.bf16.msra.mxu0 0
  %92 = vmatprep.subr.bf16.mxu0 0
  %93 = vmatpush1.bf16.msra.mxu0 0
  %94 = vmatprep.subr.bf16.mxu0 0
  %95 = vmatpush1.bf16.msra.mxu0 0
  %96 = vmatprep.subr.bf16.mxu0 0
  %97 = vmatpush1.bf16.msra.mxu0 0
  %98 = vmatprep.subr.bf16.mxu0 0
  %99 = vmatpush1.bf16.msra.mxu0 0
  %100 = vmatprep.subr.bf16.mxu0 0
  %101 = vmatpush1.bf16.msra.mxu0 0
  %102 = vmatprep.subr.bf16.mxu0 0
  %103 = vmatpush1.bf16.msra.mxu0 0
  %104 = vmatprep.subr.bf16.mxu0 0
  %105 = vmatpush1.bf16.msra.mxu0 0
  %106 = vmatprep.subr.bf16.mxu0 0
  %107 = vmatpush1.bf16.msra.mxu0 0
  %108 = vmatprep.mubr.bf16.mxu0 0
  %109 = vmatmul.mubr.bf16.gmra.mrb[0].mxu0 %v74
  %v110 = vpop.f32.mrb[0].mxu0
  %v111 = vadd.f32 %v46, %v110
  %v112 = vpop.f32.mrb[0].mxu0
  %v113 = vpop.f32.mrb[0].mxu0
  %v114 = vadd.f32 %v46, %v113
  %v115 = vpop.f32.mrb[0].mxu0
  %116 = vdwg.mxu0
  %v117 = vld [vmem:[%s1] sm:$0xff]
  %v118 = vld [vmem:[%s1 + $0x8] sm:$0xff]
  %v119 = vadd.f32 %v117, %v111
  %v120 = vadd.f32 %v118, %v114
  %121 = vst.msk [vmem:[%s7] sm:$0xff] %vm72, %v119
  %122 = vst.msk [vmem:[%s7 + $0x8] sm:$0xff] %vm72, %v120
  %v123 = vld [vmem:[%s4] sm:$0x1]
  %v124 = vld [vmem:[%s5] sm:$0x1]
  %v125 = vsel %vm72, %v119, 0.0
  %126 = vadd.xlane.f32.xlu0 %v125
  %v127 = vpop.xlane.xlu0 %126
  %v128 = vsel %vm72, %v120, 0.0
  %129 = vadd.xlane.f32.xlu0 %v128
  %v130 = vpop.xlane.xlu0 %129
  %v131 = vrcp.pop 64.0
  %v132 = vmul.f32 %v127, %v131
  %v133 = vmul.f32 %v130, %v131
  %v134 = vsub.f32 %v119, %v132
  %v135 = vsub.f32 %v120, %v133
  %v136 = vmul.f32 %v134, %v134
  %v137 = vmul.f32 %v135, %v135
  %v138 = vsel %vm72, %v136, 0.0
  %139 = vadd.xlane.f32.xlu0 %v138
  %v140 = vpop.xlane.xlu0 %139
  %v141 = vsel %vm72, %v137, 0.0
  %142 = vadd.xlane.f32.xlu0 %v141
  %v143 = vpop.xlane.xlu0 %142
  %v144 = vmul.f32 %v140, %v131
  %v145 = vmul.f32 %v143, %v131
  %v146 = vadd.f32 %v144, 1e-05
  %v147 = vadd.f32 %v145, 1e-05
  %v148 = vrsqrt.pop %v146
  %v149 = vrsqrt.pop %v147
  %v150 = vmul.f32 %v134, %v148
  %v151 = vmul.f32 %v135, %v149
  %v153 = vlaneseq
  %v154 = vshrl.u32 %v153, 7
  %v155 = vsub.s32 0, %v154
  %v156 = vrot.slane %v123, %v155
  %v158 = vmul.f32 %v150, %v156
  %v159 = vmul.f32 %v151, %v156
  %v161 = vlaneseq
  %v162 = vshrl.u32 %v161, 7
  %v163 = vsub.s32 0, %v162
  %v164 = vrot.slane %v124, %v163
  %v166 = vadd.f32 %v158, %v164
  %v167 = vadd.f32 %v159, %v164
  %v168 = vpack.c.bf16 %v167, %v166
  %v170 = vunpack.c.l.b16 %v168
  %v171 = vunpack.c.h.b16 %v168
  %v172 = vpack.c.b16 %v170, %v170
  %v173 = vpack.c.b16 %v171, %v171
  %vm176 = vcmask 519168
  %177 = vst.msk [vmem:[%s8] sm:$0xf] %vm176, %v172
  %178 = vst.msk [vmem:[%s8 + $0x4] sm:$0xf] %vm176, %v173
  %v179 = vld [vmem:[%s6] sm:$0xf]
  %v180 = vld [vmem:[%s6 + $0x4] sm:$0xf]
  %v181 = vld [vmem:[%s6 + $0x8] sm:$0xf]
  %v182 = vld [vmem:[%s6 + $0xc] sm:$0xf]
  %v183 = vld [vmem:[%s6 + $0x10] sm:$0xf]
  %v184 = vld [vmem:[%s6 + $0x14] sm:$0xf]
  %v185 = vld [vmem:[%s6 + $0x18] sm:$0xf]
  %v186 = vld [vmem:[%s6 + $0x1c] sm:$0xf]
  %v195 = vunpack.c.l.b16 %v179
  %v196 = vunpack.c.l.b16 %v180
  %v197 = vunpack.c.l.b16 %v181
  %v198 = vunpack.c.l.b16 %v182
  %v199 = vunpack.c.l.b16 %v183
  %v200 = vunpack.c.l.b16 %v184
  %v201 = vunpack.c.l.b16 %v185
  %v202 = vunpack.c.l.b16 %v186
  %v203 = vpack.c.b16 %v196, %v195
  %v204 = vpack.c.b16 %v198, %v197
  %v205 = vpack.c.b16 %v200, %v199
  %v206 = vpack.c.b16 %v202, %v201
  %v212 = vsel %vm72, %v168, 0
  %214 = vmatprep.subr.bf16.mxu0 0
  %215 = vmatpush1.bf16.msra.mxu0 %v203
  %216 = vmatprep.subr.bf16.mxu0 0
  %217 = vmatpush1.bf16.msra.mxu0 %v204
  %218 = vmatprep.subr.bf16.mxu0 0
  %219 = vmatpush1.bf16.msra.mxu0 %v205
  %220 = vmatprep.subr.bf16.mxu0 0
  %221 = vmatpush1.bf16.msra.mxu0 %v206
  %222 = vmatprep.subr.bf16.mxu0 0
  %223 = vmatpush1.bf16.msra.mxu0 0
  %224 = vmatprep.subr.bf16.mxu0 0
  %225 = vmatpush1.bf16.msra.mxu0 0
  %226 = vmatprep.subr.bf16.mxu0 0
  %227 = vmatpush1.bf16.msra.mxu0 0
  %228 = vmatprep.subr.bf16.mxu0 0
  %229 = vmatpush1.bf16.msra.mxu0 0
  %230 = vmatprep.subr.bf16.mxu0 0
  %231 = vmatpush1.bf16.msra.mxu0 0
  %232 = vmatprep.subr.bf16.mxu0 0
  %233 = vmatpush1.bf16.msra.mxu0 0
  %234 = vmatprep.subr.bf16.mxu0 0
  %235 = vmatpush1.bf16.msra.mxu0 0
  %236 = vmatprep.subr.bf16.mxu0 0
  %237 = vmatpush1.bf16.msra.mxu0 0
  %238 = vmatprep.subr.bf16.mxu0 0
  %239 = vmatpush1.bf16.msra.mxu0 0
  %240 = vmatprep.subr.bf16.mxu0 0
  %241 = vmatpush1.bf16.msra.mxu0 0
  %242 = vmatprep.subr.bf16.mxu0 0
  %243 = vmatpush1.bf16.msra.mxu0 0
  %244 = vmatprep.subr.bf16.mxu0 0
  %245 = vmatpush1.bf16.msra.mxu0 0
  %246 = vmatprep.mubr.bf16.mxu0 0
  %247 = vmatmul.mubr.bf16.gmra.mrb[0].mxu0 %v212
  %v248 = vpop.f32.mrb[0].mxu0
  %v249 = vadd.f32 0.0, %v248
  %v250 = vpop.f32.mrb[0].mxu0
  %v251 = vpop.f32.mrb[0].mxu0
  %v252 = vadd.f32 0.0, %v251
  %v253 = vpop.f32.mrb[0].mxu0
  %254 = vdwg.mxu0
  %vm255 = vcmask 31744
  %256 = vst.msk [vmem:[%s9] sm:$0xff] %vm255, %v249
  %257 = vst.msk [vmem:[%s9 + $0x8] sm:$0xff] %vm255, %v252
  // Predicated region
  $region30: #{transformer_forward.11} parent=0 // pred_check
    _
  $region31: #{transformer_forward.11} parent=0 // pred_check_branch
    %259 = sbr.rel (0) target = $region33
  $region32: #{transformer_forward.11} parent=0 // pred_region
    _
  $region33: #{transformer_forward.11} parent=0 // pred_fallthru
    _
  // Predicated region
  $region34: #{transformer_forward.11} parent=0 // pred_check
    _
  $region35: #{transformer_forward.11} parent=0 // pred_check_branch
    %261 = sbr.rel (0) target = $region37
  $region36: #{transformer_forward.11} parent=0 // pred_region
    _
  $region37: #{transformer_forward.11} parent=0 // pred_fallthru
    _
  // Predicated region
  $region38: #{transformer_forward.11} parent=0 // pred_check
    _
  $region39: #{transformer_forward.11} parent=0 // pred_check_branch
    %263 = sbr.rel (0) target = $region41
  $region40: #{transformer_forward.11} parent=0 // pred_region
    _
  $region41: #{transformer_forward.11} parent=0 // pred_fallthru
    _
  // Predicated region
  $region42: #{transformer_forward.11} parent=0 // pred_check
    _
  $region43: #{transformer_forward.11} parent=0 // pred_check_branch
    %265 = sbr.rel (0) target = $region45
  $region44: #{transformer_forward.11} parent=0 // pred_region
    _
  $region45: #{transformer_forward.11} parent=0 // pred_fallthru
    _
  // Predicated region
  $region46: #{transformer_forward.11} parent=0 // pred_check
    _
  $region47: #{transformer_forward.11} parent=0 // pred_check_branch
    %267 = sbr.rel (0) target = $region49
  $region48: #{transformer_forward.11} parent=0 // pred_region
    _
  $region49: #{transformer_forward.11} parent=0 // pred_fallthru
    _
  // Predicated region
  $region50: #{transformer_forward.11} parent=0 // pred_check
    _
  $region51: #{transformer_forward.11} parent=0 // pred_check_branch
    %269 = sbr.rel (0) target = $region53
  $region52: #{transformer_forward.11} parent=0 // pred_region
    _
  $region53: #{transformer_forward.11} parent=0 // pred_fallthru
    _

// kernel: transformer_forward.10
$region0: #{transformer_forward.10}
  #allocation0 [shape = 'u32[]', space=smem, size = 0x4, offset = 0x4, fixed_abs, tag = 'smem constant byte address 0x4 - core index']
  #allocation1 [shape = 'u32[144,128]{1,0:T(1,128)}', space=vmem, size = 0x12000, scoped, tag = 'internal scratch']
  %s0 = inlined_call_operand.vmem [shape: f32[2,8,128], index: 0, kind: input, shape index: {}]
  %s1 = inlined_call_operand.vmem [shape: f32[8,16], index: 1, kind: input, shape index: {}]
  %s2 = inlined_call_operand.vmem [shape: f32[8,16], index: 2, kind: input, shape index: {}]
  %s3 = inlined_call_operand.vmem [shape: f32[8,8], index: 3, kind: input, shape index: {}]
  %s4 = inlined_call_operand.vmem [shape: f32[2,8,64], index: 4, kind: output, shape index: {}]
  %s5 = sld [smem:[#allocation0]]
  $region49: #{transformer_forward.10} parent=0
    _
  %s7 = ssub.s32 1, %s5
  %s8 = scalar_select 0, %s7, %s5
  loop: start=0, step=1, limit=4
  $region2: #{transformer_forward.10} parent=0 // loop_pre_header
    _
  $region3: #{transformer_forward.10} parent=0 // loop_header
    %s10 = sphi 0, %s14
    %p11 = scmp.ge.s32.totalorder %s10, 4
    %s20 = sphi 0, %s22
    %s23 = sphi 0, %s20
    %s24 = sphi 0, %s23
    %s40 = sphi 0, %s24
    %s44 = sphi 0, %s44
    %s46 = sphi 0, %s44
    %s47 = sphi 0, %s46
    %s61 = sphi 0, %s47
    %s65 = sphi 0, %s65
    %s67 = sphi 0, %s65
    %s68 = sphi 0, %s67
    %s82 = sphi 0, %s68
    %s86 = sphi 0, %s86
    %s88 = sphi 0, %s86
    %s89 = sphi 0, %s88
    %s103 = sphi 0, %s89
    %s109 = sphi 0, %s111
    %s112 = sphi 0, %s109
    %s113 = sphi 0, %s112
    %s129 = sphi 0, %s113
  $region4: #{transformer_forward.10} parent=0 // loop_header_branch
    %13 = sbr.rel (%p11) target = $region8
  $region5: #{transformer_forward.10} parent=0 // loop_body
    %s15 = ssub.s32 %s10, 1
    %s16 = ssub.s32 %s10, 2
    %s17 = sadd.s32 %s10, 1
    %s18 = ssub.s32 %s10, %s17
    %p19 = scmp.eq.s32.totalorder %s18, 0
    %s21 = sadd.s32 %s20, 1
    %s22 = scalar_select %p19, %s20, %s21
    %p25 = pneg %p19
    %p26 = scmp.eq.s32.totalorder %s10, 1
    %p27 = por %p25, %p26
    %p28 = scmp.ne.s32.totalorder %s20, %s23
    %p29 = scmp.eq.s32.totalorder %s10, 0
    %p30 = por %p28, %p29
    %p31 = scmp.ne.s32.totalorder %s20, %s23
    %p32 = scmp.eq.s32.totalorder %s15, 1
    %p33 = por %p31, %p32
    %p34 = scmp.ne.s32.totalorder %s23, %s24
    %p35 = scmp.eq.s32.totalorder %s15, 0
    %p36 = por %p34, %p35
    %p37 = scmp.ne.s32.totalorder %s23, %s24
    %p38 = scmp.eq.s32.totalorder %s16, 1
    %p39 = por %p37, %p38
    %p41 = scmp.ne.s32.totalorder %s24, %s40
    %p42 = scmp.eq.s32.totalorder %s16, 0
    %p43 = por %p41, %p42
    %s45 = sadd.s32 %s44, 1
    %p48 = scmp.eq.s32.totalorder %s10, 1
    %p49 = scmp.ne.s32.totalorder %s44, %s46
    %p50 = scmp.eq.s32.totalorder %s10, 0
    %p51 = por %p49, %p50
    %p52 = scmp.ne.s32.totalorder %s44, %s46
    %p53 = scmp.eq.s32.totalorder %s15, 1
    %p54 = por %p52, %p53
    %p55 = scmp.ne.s32.totalorder %s46, %s47
    %p56 = scmp.eq.s32.totalorder %s15, 0
    %p57 = por %p55, %p56
    %p58 = scmp.ne.s32.totalorder %s46, %s47
    %p59 = scmp.eq.s32.totalorder %s16, 1
    %p60 = por %p58, %p59
    %p62 = scmp.ne.s32.totalorder %s47, %s61
    %p63 = scmp.eq.s32.totalorder %s16, 0
    %p64 = por %p62, %p63
    %s66 = sadd.s32 %s65, 1
    %p69 = scmp.eq.s32.totalorder %s10, 1
    %p70 = scmp.ne.s32.totalorder %s65, %s67
    %p71 = scmp.eq.s32.totalorder %s10, 0
    %p72 = por %p70, %p71
    %p73 = scmp.ne.s32.totalorder %s65, %s67
    %p74 = scmp.eq.s32.totalorder %s15, 1
    %p75 = por %p73, %p74
    %p76 = scmp.ne.s32.totalorder %s67, %s68
    %p77 = scmp.eq.s32.totalorder %s15, 0
    %p78 = por %p76, %p77
    %p79 = scmp.ne.s32.totalorder %s67, %s68
    %p80 = scmp.eq.s32.totalorder %s16, 1
    %p81 = por %p79, %p80
    %p83 = scmp.ne.s32.totalorder %s68, %s82
    %p84 = scmp.eq.s32.totalorder %s16, 0
    %p85 = por %p83, %p84
    %s87 = sadd.s32 %s86, 1
    %p90 = scmp.eq.s32.totalorder %s10, 1
    %p91 = scmp.ne.s32.totalorder %s86, %s88
    %p92 = scmp.eq.s32.totalorder %s10, 0
    %p93 = por %p91, %p92
    %p94 = scmp.ne.s32.totalorder %s86, %s88
    %p95 = scmp.eq.s32.totalorder %s15, 1
    %p96 = por %p94, %p95
    %p97 = scmp.ne.s32.totalorder %s88, %s89
    %p98 = scmp.eq.s32.totalorder %s15, 0
    %p99 = por %p97, %p98
    %p100 = scmp.ne.s32.totalorder %s88, %s89
    %p101 = scmp.eq.s32.totalorder %s16, 1
    %p102 = por %p100, %p101
    %p104 = scmp.ne.s32.totalorder %s89, %s103
    %p105 = scmp.eq.s32.totalorder %s16, 0
    %p106 = por %p104, %p105
    %s107 = ssub.s32 %s10, %s17
    %p108 = scmp.eq.s32.totalorder %s107, 0
    %s110 = sadd.s32 %s109, 1
    %s111 = scalar_select %p108, %s109, %s110
    %p114 = pneg %p108
    %p115 = scmp.eq.s32.totalorder %s10, 1
    %p116 = por %p114, %p115
    %p117 = scmp.ne.s32.totalorder %s109, %s112
    %p118 = scmp.eq.s32.totalorder %s10, 0
    %p119 = por %p117, %p118
    %p120 = scmp.ne.s32.totalorder %s109, %s112
    %p121 = scmp.eq.s32.totalorder %s15, 1
    %p122 = por %p120, %p121
    %p123 = scmp.ne.s32.totalorder %s112, %s113
    %p124 = scmp.eq.s32.totalorder %s15, 0
    %p125 = por %p123, %p124
    %p126 = scmp.ne.s32.totalorder %s112, %s113
    %p127 = scmp.eq.s32.totalorder %s16, 1
    %p128 = por %p126, %p127
    %p130 = scmp.ne.s32.totalorder %s113, %s129
    %p131 = scmp.eq.s32.totalorder %s16, 0
    %p132 = por %p130, %p131
    %p133 = scmp.le.s32.totalorder 1, %s10
    %p134 = scmp.lt.s32.totalorder %s10, 3
    %p135 = pnand %p133, %p134
    %p136 = pneg %p135
    // Predicated region
    $region9: #{transformer_forward.10} parent=5 // pred_check
      _
    $region10: #{transformer_forward.10} parent=5 // pred_check_branch
      %138 = sbr.rel (%p135) target = $region12
    $region11: #{transformer_forward.10} parent=5 // pred_region
      %s139 = ssub.s32 %s10, 1
      // Predicated region
      $region13: #{transformer_forward.10} parent=11 // pred_check
        %p140 = pneg %p57
      $region14: #{transformer_forward.10} parent=11 // pred_check_branch
        %142 = sbr.rel (%p140) target = $region16
      $region15: #{transformer_forward.10} parent=11 // pred_region
        _
      $region16: #{transformer_forward.10} parent=11 // pred_fallthru
        _
      // Predicated region
      $region17: #{transformer_forward.10} parent=11 // pred_check
        %p143 = pneg %p78
      $region18: #{transformer_forward.10} parent=11 // pred_check_branch
        %145 = sbr.rel (%p143) target = $region20
      $region19: #{transformer_forward.10} parent=11 // pred_region
        _
      $region20: #{transformer_forward.10} parent=11 // pred_fallthru
        _
      // Predicated region
      $region21: #{transformer_forward.10} parent=11 // pred_check
        %p146 = pneg %p99
      $region22: #{transformer_forward.10} parent=11 // pred_check_branch
        %148 = sbr.rel (%p146) target = $region24
      $region23: #{transformer_forward.10} parent=11 // pred_region
        _
      $region24: #{transformer_forward.10} parent=11 // pred_fallthru
        _
    $region12: #{transformer_forward.10} parent=5 // pred_fallthru
      _
    %p149 = scmp.lt.s32.totalorder %s10, 2
    // Predicated region
    $region25: #{transformer_forward.10} parent=5 // pred_check
      %p150 = pneg %p149
    $region26: #{transformer_forward.10} parent=5 // pred_check_branch
      %152 = sbr.rel (%p150) target = $region28
    $region27: #{transformer_forward.10} parent=5 // pred_region
      // Predicated region
      $region29: #{transformer_forward.10} parent=27 // pred_check
        %p153 = pneg %p30
      $region30: #{transformer_forward.10} parent=27 // pred_check_branch
        %155 = sbr.rel (%p153) target = $region32
      $region31: #{transformer_forward.10} parent=27 // pred_region
        %p156 = scmp.lt.s32.totalorder %s10, 1
        %s157 = scalar_select %p156, %s10, 1
        %s158 = smul.addr %s157, 8
        %s159 = scalar_lea.vmem %s0, %s158
      $region32: #{transformer_forward.10} parent=27 // pred_fallthru
        _
    $region28: #{transformer_forward.10} parent=5 // pred_fallthru
      _
    %p160 = scmp.le.s32.totalorder 1, %s10
    %p161 = scmp.lt.s32.totalorder %s10, 3
    %p162 = pnand %p160, %p161
    %p163 = pneg %p162
    // Predicated region
    $region33: #{transformer_forward.10} parent=5 // pred_check
      _
    $region34: #{transformer_forward.10} parent=5 // pred_check_branch
      %165 = sbr.rel (%p162) target = $region36
    $region35: #{transformer_forward.10} parent=5 // pred_region
      %s166 = ssub.s32 %s10, 1
      %p167 = scmp.lt.s32.totalorder %s15, 1
      %s168 = scalar_select %p167, %s15, 1
      %s169 = smul.addr %s168, 8
      %s170 = scalar_lea.vmem %s0, %s169
      %p171 = pneg %p36
      %p172 = pneg %p33
      %p173 = pneg %p57
      %p174 = pneg %p54
      %p175 = pneg %p78
      %p176 = pneg %p75
      %p177 = pneg %p99
      %p178 = pneg %p96
      %p179 = pneg %p125
      %p180 = pneg %p122
      %p181 = scmp.lt.s32.totalorder %s15, 1
      %s182 = scalar_select %p181, %s15, 1
      %s183 = smul.addr %s182, 8
      %s184 = scalar_lea.vmem %s4, %s183
      %p185 = scmp.lt.s32.totalorder %s15, 1
      %s186 = scalar_select %p185, %s15, 1
      %s187 = smul.addr %s186, 8
      %s188 = scalar_lea.vmem %s0, %s187
      %p189 = scmp.lt.s32.totalorder %s15, 1
      %s190 = scalar_select %p189, %s15, 1
      %s191 = smul.addr %s190, 8
      %s192 = scalar_lea.vmem %s4, %s191
      %v193 = vld [vmem:[%s188] sm:$0xff]
      %v194 = vld [vmem:[%s1] sm:$0xff]
      %v195 = vld [vmem:[%s2] sm:$0xff]
      %v196 = vld [vmem:[%s3] sm:$0xff]
      %v197 = vsub.f32 0.0, %v193
      %199 = vrot.lane.b32.xlu0 %v197, 56
      %v200 = vpop.permute.xlu0 %199
      %203 = vrot.lane.b32.xlu0 %v193, 72
      %v204 = vpop.permute.xlu0 %203
      %vm206 = vcmask 64512
      %v207 = vsel %vm206, %v200, %v204
      %209 = vrot.lane.b32.xlu0 %v194, 64
      %v210 = vpop.permute.xlu0 %209
      %v212 = vmul.f32 %v193, %v210
      %v213 = vmul.f32 %v207, %v195
      %215 = vrot.lane.b32.xlu0 %v213, 64
      %v216 = vpop.permute.xlu0 %215
      %v218 = vadd.f32 %v212, %v216
      %219 = vrot.lane.b32.xlu0 %v197, 120
      %v220 = vpop.permute.xlu0 %219
      %222 = vrot.lane.b32.xlu0 %v193, 8
      %v223 = vpop.permute.xlu0 %222
      %v225 = vsel %vm206, %v220, %v223
      %v226 = vmul.f32 %v193, %v194
      %v227 = vmul.f32 %v225, %v195
      %v228 = vadd.f32 %v226, %v227
      %230 = vrot.lane.b32.xlu0 %v218, 64
      %v231 = vpop.permute.xlu0 %230
      %vm232 = vcmask 130048
      %v234 = vsel %vm232, %v228, 0
      %v236 = vsel %vm232, %v231, 0
      %238 = vmatprep.subr.mxu0 0.0
      %239 = vmatpush1.xpose.msra.mxu0 %v236
      %240 = vmatprep.subr.mxu0 0.0
      %241 = vmatpush1.xpose.msra.mxu0 0.0
      %242 = vmatprep.subr.mxu0 0.0
      %243 = vmatpush1.xpose.msra.mxu0 0.0
      %244 = vmatprep.subr.mxu0 0.0
      %245 = vmatpush1.xpose.msra.mxu0 0.0
      %246 = vmatprep.subr.mxu0 0.0
      %247 = vmatpush1.xpose.msra.mxu0 0.0
      %248 = vmatprep.subr.mxu0 0.0
      %249 = vmatpush1.xpose.msra.mxu0 0.0
      %250 = vmatprep.subr.mxu0 0.0
      %251 = vmatpush1.xpose.msra.mxu0 0.0
      %252 = vmatprep.subr.mxu0 0.0
      %253 = vmatpush1.xpose.msra.mxu0 0.0
      %254 = vmatprep.subr.mxu0 0.0
      %255 = vmatpush1.xpose.msra.mxu0 0.0
      %256 = vmatprep.subr.mxu0 0.0
      %257 = vmatpush1.xpose.msra.mxu0 0.0
      %258 = vmatprep.subr.mxu0 0.0
      %259 = vmatpush1.xpose.msra.mxu0 0.0
      %260 = vmatprep.subr.mxu0 0.0
      %261 = vmatpush1.xpose.msra.mxu0 0.0
      %262 = vmatprep.subr.mxu0 0.0
      %263 = vmatpush1.xpose.msra.mxu0 0.0
      %264 = vmatprep.subr.mxu0 0.0
      %265 = vmatpush1.xpose.msra.mxu0 0.0
      %266 = vmatprep.subr.mxu0 0.0
      %267 = vmatpush1.xpose.msra.mxu0 0.0
      %268 = vmatprep.subr.mxu0 0.0
      %269 = vmatpush1.xpose.msra.mxu0 0.0
      %270 = vmatprep.subr.mxu0 0.0
      %271 = vmatpush1.xpose.msra.mxu0 0.0
      %272 = vmatprep.subr.mxu0 0.0
      %273 = vmatpush1.xpose.msra.mxu0 0.0
      %274 = vmatprep.subr.mxu0 0.0
      %275 = vmatpush1.xpose.msra.mxu0 0.0
      %276 = vmatprep.subr.mxu0 0.0
      %277 = vmatpush1.xpose.msra.mxu0 0.0
      %278 = vmatprep.subr.mxu0 0.0
      %279 = vmatpush1.xpose.msra.mxu0 0.0
      %280 = vmatprep.subr.mxu0 0.0
      %281 = vmatpush1.xpose.msra.mxu0 0.0
      %282 = vmatprep.subr.mxu0 0.0
      %283 = vmatpush1.xpose.msra.mxu0 0.0
      %284 = vmatprep.subr.mxu0 0.0
      %285 = vmatpush1.xpose.msra.mxu0 0.0
      %286 = vmatprep.subr.mxu0 0.0
      %287 = vmatpush1.xpose.msra.mxu0 0.0
      %288 = vmatprep.subr.mxu0 0.0
      %289 = vmatpush1.xpose.msra.mxu0 0.0
      %290 = vmatprep.subr.mxu0 0.0
      %291 = vmatpush1.xpose.msra.mxu0 0.0
      %292 = vmatprep.subr.mxu0 0.0
      %293 = vmatpush1.xpose.msra.mxu0 0.0
      %294 = vmatprep.subr.mxu0 0.0
      %295 = vmatpush1.xpose.msra.mxu0 0.0
      %296 = vmatprep.subr.mxu0 0.0
      %297 = vmatpush1.xpose.msra.mxu0 0.0
      %298 = vmatprep.subr.mxu0 0.0
      %299 = vmatpush1.xpose.msra.mxu0 0.0
      %300 = vmatprep.subr.mxu0 0.0
      %301 = vmatpush1.xpose.msra.mxu0 0.0
      %302 = vmatprep.mubr.f32.mxu0 0.0
      %303 = vmatmul.mubr.f32.gmra.mrb[0].mxu0 %v234
      %v304 = vpop.f32.mrb[0].mxu0
      %v305 = vadd.f32 0.0, %v304
      %v306 = vpop.f32.mrb[0].mxu0
      %307 = vdwg.mxu0
      %v308 = vmul.f32 %v305, 0.25
      %v309 = vadd.f32 %v308, %v196
      %v310 = vsel %vm206, %v309, -inf
      %311 = vmax.xlane.f32.xlu0 %v310
      %v312 = vpop.xlane.xlu0 %311
      %v313 = vsub.f32 %v309, %v312
      %v314 = vmul.f32 %v313, 1.442695
      %v315 = vpow.pop %v314
      %v316 = vsel %vm206, %v315, 0.0
      %317 = vadd.xlane.f32.xlu0 %v316
      %v318 = vpop.xlane.xlu0 %317
      %v319 = vrcp.pop %v318
      %v320 = vmul.f32 %v315, %v319
      %321 = vrot.lane.b32.xlu0 %v193, 32
      %v322 = vpop.permute.xlu0 %321
      %v325 = vsel %vm206, %v320, 0
      %327 = vmatprep.subr.mxu0 0.0
      %328 = vmatpush1.msra.mxu0 %v322
      %329 = vmatprep.subr.mxu0 0.0
      %330 = vmatpush1.msra.mxu0 0.0
      %331 = vmatprep.subr.mxu0 0.0
      %332 = vmatpush1.msra.mxu0 0.0
      %333 = vmatprep.subr.mxu0 0.0
      %334 = vmatpush1.msra.mxu0 0.0
      %335 = vmatprep.subr.mxu0 0.0
      %336 = vmatpush1.msra.mxu0 0.0
      %337 = vmatprep.subr.mxu0 0.0
      %338 = vmatpush1.msra.mxu0 0.0
      %339 = vmatprep.subr.mxu0 0.0
      %340 = vmatpush1.msra.mxu0 0.0
      %341 = vmatprep.subr.mxu0 0.0
      %342 = vmatpush1.msra.mxu0 0.0
      %343 = vmatprep.subr.mxu0 0.0
      %344 = vmatpush1.msra.mxu0 0.0
      %345 = vmatprep.subr.mxu0 0.0
      %346 = vmatpush1.msra.mxu0 0.0
      %347 = vmatprep.subr.mxu0 0.0
      %348 = vmatpush1.msra.mxu0 0.0
      %349 = vmatprep.subr.mxu0 0.0
      %350 = vmatpush1.msra.mxu0 0.0
      %351 = vmatprep.subr.mxu0 0.0
      %352 = vmatpush1.msra.mxu0 0.0
      %353 = vmatprep.subr.mxu0 0.0
      %354 = vmatpush1.msra.mxu0 0.0
      %355 = vmatprep.subr.mxu0 0.0
      %356 = vmatpush1.msra.mxu0 0.0
      %357 = vmatprep.subr.mxu0 0.0
      %358 = vmatpush1.msra.mxu0 0.0
      %359 = vmatprep.subr.mxu0 0.0
      %360 = vmatpush1.msra.mxu0 0.0
      %361 = vmatprep.subr.mxu0 0.0
      %362 = vmatpush1.msra.mxu0 0.0
      %363 = vmatprep.subr.mxu0 0.0
      %364 = vmatpush1.msra.mxu0 0.0
      %365 = vmatprep.subr.mxu0 0.0
      %366 = vmatpush1.msra.mxu0 0.0
      %367 = vmatprep.subr.mxu0 0.0
      %368 = vmatpush1.msra.mxu0 0.0
      %369 = vmatprep.subr.mxu0 0.0
      %370 = vmatpush1.msra.mxu0 0.0
      %371 = vmatprep.subr.mxu0 0.0
      %372 = vmatpush1.msra.mxu0 0.0
      %373 = vmatprep.subr.mxu0 0.0
      %374 = vmatpush1.msra.mxu0 0.0
      %375 = vmatprep.subr.mxu0 0.0
      %376 = vmatpush1.msra.mxu0 0.0
      %377 = vmatprep.subr.mxu0 0.0
      %378 = vmatpush1.msra.mxu0 0.0
      %379 = vmatprep.subr.mxu0 0.0
      %380 = vmatpush1.msra.mxu0 0.0
      %381 = vmatprep.subr.mxu0 0.0
      %382 = vmatpush1.msra.mxu0 0.0
      %383 = vmatprep.subr.mxu0 0.0
      %384 = vmatpush1.msra.mxu0 0.0
      %385 = vmatprep.subr.mxu0 0.0
      %386 = vmatpush1.msra.mxu0 0.0
      %387 = vmatprep.subr.mxu0 0.0
      %388 = vmatpush1.msra.mxu0 0.0
      %389 = vmatprep.subr.mxu0 0.0
      %390 = vmatpush1.msra.mxu0 0.0
      %391 = vmatprep.mubr.f32.mxu0 0.0
      %392 = vmatmul.mubr.f32.gmra.mrb[0].mxu0 %v325
      %v393 = vpop.f32.mrb[0].mxu0
      %v394 = vadd.f32 0.0, %v393
      %v395 = vpop.f32.mrb[0].mxu0
      %396 = vdwg.mxu0
      %397 = vrot.lane.b32.xlu0 %v197, 104
      %v398 = vpop.permute.xlu0 %397
      %400 = vrot.lane.b32.xlu0 %v193, 120
      %v401 = vpop.permute.xlu0 %400
      %v403 = vsel %vm206, %v398, %v401
      %404 = vrot.lane.b32.xlu0 %v194, 16
      %v405 = vpop.permute.xlu0 %404
      %v407 = vmul.f32 %v193, %v405
      %v408 = vmul.f32 %v403, %v195
      %410 = vrot.lane.b32.xlu0 %v408, 16
      %v411 = vpop.permute.xlu0 %410
      %v413 = vadd.f32 %v407, %v411
      %415 = vrot.lane.b32.xlu0 %v413, 112
      %v416 = vpop.permute.xlu0 %415
      %v417 = vsel %vm232, %v416, 0
      %419 = vmatprep.subr.mxu0 0.0
      %420 = vmatpush1.xpose.msra.mxu0 %v236
      %421 = vmatprep.subr.mxu0 0.0
      %422 = vmatpush1.xpose.msra.mxu0 0.0
      %423 = vmatprep.subr.mxu0 0.0
      %424 = vmatpush1.xpose.msra.mxu0 0.0
      %425 = vmatprep.subr.mxu0 0.0
      %426 = vmatpush1.xpose.msra.mxu0 0.0
      %427 = vmatprep.subr.mxu0 0.0
      %428 = vmatpush1.xpose.msra.mxu0 0.0
      %429 = vmatprep.subr.mxu0 0.0
      %430 = vmatpush1.xpose.msra.mxu0 0.0
      %431 = vmatprep.subr.mxu0 0.0
      %432 = vmatpush1.xpose.msra.mxu0 0.0
      %433 = vmatprep.subr.mxu0 0.0
      %434 = vmatpush1.xpose.msra.mxu0 0.0
      %435 = vmatprep.subr.mxu0 0.0
      %436 = vmatpush1.xpose.msra.mxu0 0.0
      %437 = vmatprep.subr.mxu0 0.0
      %438 = vmatpush1.xpose.msra.mxu0 0.0
      %439 = vmatprep.subr.mxu0 0.0
      %440 = vmatpush1.xpose.msra.mxu0 0.0
      %441 = vmatprep.subr.mxu0 0.0
      %442 = vmatpush1.xpose.msra.mxu0 0.0
      %443 = vmatprep.subr.mxu0 0.0
      %444 = vmatpush1.xpose.msra.mxu0 0.0
      %445 = vmatprep.subr.mxu0 0.0
      %446 = vmatpush1.xpose.msra.mxu0 0.0
      %447 = vmatprep.subr.mxu0 0.0
      %448 = vmatpush1.xpose.msra.mxu0 0.0
      %449 = vmatprep.subr.mxu0 0.0
      %450 = vmatpush1.xpose.msra.mxu0 0.0
      %451 = vmatprep.subr.mxu0 0.0
      %452 = vmatpush1.xpose.msra.mxu0 0.0
      %453 = vmatprep.subr.mxu0 0.0
      %454 = vmatpush1.xpose.msra.mxu0 0.0
      %455 = vmatprep.subr.mxu0 0.0
      %456 = vmatpush1.xpose.msra.mxu0 0.0
      %457 = vmatprep.subr.mxu0 0.0
      %458 = vmatpush1.xpose.msra.mxu0 0.0
      %459 = vmatprep.subr.mxu0 0.0
      %460 = vmatpush1.xpose.msra.mxu0 0.0
      %461 = vmatprep.subr.mxu0 0.0
      %462 = vmatpush1.xpose.msra.mxu0 0.0
      %463 = vmatprep.subr.mxu0 0.0
      %464 = vmatpush1.xpose.msra.mxu0 0.0
      %465 = vmatprep.subr.mxu0 0.0
      %466 = vmatpush1.xpose.msra.mxu0 0.0
      %467 = vmatprep.subr.mxu0 0.0
      %468 = vmatpush1.xpose.msra.mxu0 0.0
      %469 = vmatprep.subr.mxu0 0.0
      %470 = vmatpush1.xpose.msra.mxu0 0.0
      %471 = vmatprep.subr.mxu0 0.0
      %472 = vmatpush1.xpose.msra.mxu0 0.0
      %473 = vmatprep.subr.mxu0 0.0
      %474 = vmatpush1.xpose.msra.mxu0 0.0
      %475 = vmatprep.subr.mxu0 0.0
      %476 = vmatpush1.xpose.msra.mxu0 0.0
      %477 = vmatprep.subr.mxu0 0.0
      %478 = vmatpush1.xpose.msra.mxu0 0.0
      %479 = vmatprep.subr.mxu0 0.0
      %480 = vmatpush1.xpose.msra.mxu0 0.0
      %481 = vmatprep.subr.mxu0 0.0
      %482 = vmatpush1.xpose.msra.mxu0 0.0
      %483 = vmatprep.mubr.f32.mxu0 0.0
      %484 = vmatmul.mubr.f32.gmra.mrb[0].mxu0 %v417
      %v485 = vpop.f32.mrb[0].mxu0
      %v486 = vadd.f32 0.0, %v485
      %v487 = vpop.f32.mrb[0].mxu0
      %488 = vdwg.mxu0
      %v489 = vmul.f32 %v486, 0.25
      %v490 = vadd.f32 %v489, %v196
      %v491 = vsel %vm206, %v490, -inf
      %492 = vmax.xlane.f32.xlu0 %v491
      %v493 = vpop.xlane.xlu0 %492
      %v494 = vsub.f32 %v490, %v493
      %v495 = vmul.f32 %v494, 1.442695
      %v496 = vpow.pop %v495
      %v497 = vsel %vm206, %v496, 0.0
      %498 = vadd.xlane.f32.xlu0 %v497
      %v499 = vpop.xlane.xlu0 %498
      %v500 = vrcp.pop %v499
      %v501 = vmul.f32 %v496, %v500
      %v503 = vsel %vm206, %v501, 0
      %505 = vmatprep.subr.mxu0 0.0
      %506 = vmatpush1.msra.mxu0 %v322
      %507 = vmatprep.subr.mxu0 0.0
      %508 = vmatpush1.msra.mxu0 0.0
      %509 = vmatprep.subr.mxu0 0.0
      %510 = vmatpush1.msra.mxu0 0.0
      %511 = vmatprep.subr.mxu0 0.0
      %512 = vmatpush1.msra.mxu0 0.0
      %513 = vmatprep.subr.mxu0 0.0
      %514 = vmatpush1.msra.mxu0 0.0
      %515 = vmatprep.subr.mxu0 0.0
      %516 = vmatpush1.msra.mxu0 0.0
      %517 = vmatprep.subr.mxu0 0.0
      %518 = vmatpush1.msra.mxu0 0.0
      %519 = vmatprep.subr.mxu0 0.0
      %520 = vmatpush1.msra.mxu0 0.0
      %521 = vmatprep.subr.mxu0 0.0
      %522 = vmatpush1.msra.mxu0 0.0
      %523 = vmatprep.subr.mxu0 0.0
      %524 = vmatpush1.msra.mxu0 0.0
      %525 = vmatprep.subr.mxu0 0.0
      %526 = vmatpush1.msra.mxu0 0.0
      %527 = vmatprep.subr.mxu0 0.0
      %528 = vmatpush1.msra.mxu0 0.0
      %529 = vmatprep.subr.mxu0 0.0
      %530 = vmatpush1.msra.mxu0 0.0
      %531 = vmatprep.subr.mxu0 0.0
      %532 = vmatpush1.msra.mxu0 0.0
      %533 = vmatprep.subr.mxu0 0.0
      %534 = vmatpush1.msra.mxu0 0.0
      %535 = vmatprep.subr.mxu0 0.0
      %536 = vmatpush1.msra.mxu0 0.0
      %537 = vmatprep.subr.mxu0 0.0
      %538 = vmatpush1.msra.mxu0 0.0
      %539 = vmatprep.subr.mxu0 0.0
      %540 = vmatpush1.msra.mxu0 0.0
      %541 = vmatprep.subr.mxu0 0.0
      %542 = vmatpush1.msra.mxu0 0.0
      %543 = vmatprep.subr.mxu0 0.0
      %544 = vmatpush1.msra.mxu0 0.0
      %545 = vmatprep.subr.mxu0 0.0
      %546 = vmatpush1.msra.mxu0 0.0
      %547 = vmatprep.subr.mxu0 0.0
      %548 = vmatpush1.msra.mxu0 0.0
      %549 = vmatprep.subr.mxu0 0.0
      %550 = vmatpush1.msra.mxu0 0.0
      %551 = vmatprep.subr.mxu0 0.0
      %552 = vmatpush1.msra.mxu0 0.0
      %553 = vmatprep.subr.mxu0 0.0
      %554 = vmatpush1.msra.mxu0 0.0
      %555 = vmatprep.subr.mxu0 0.0
      %556 = vmatpush1.msra.mxu0 0.0
      %557 = vmatprep.subr.mxu0 0.0
      %558 = vmatpush1.msra.mxu0 0.0
      %559 = vmatprep.subr.mxu0 0.0
      %560 = vmatpush1.msra.mxu0 0.0
      %561 = vmatprep.subr.mxu0 0.0
      %562 = vmatpush1.msra.mxu0 0.0
      %563 = vmatprep.subr.mxu0 0.0
      %564 = vmatpush1.msra.mxu0 0.0
      %565 = vmatprep.subr.mxu0 0.0
      %566 = vmatpush1.msra.mxu0 0.0
      %567 = vmatprep.subr.mxu0 0.0
      %568 = vmatpush1.msra.mxu0 0.0
      %569 = vmatprep.mubr.f32.mxu0 0.0
      %570 = vmatmul.mubr.f32.gmra.mrb[0].mxu0 %v503
      %v571 = vpop.f32.mrb[0].mxu0
      %v572 = vadd.f32 0.0, %v571
      %v573 = vpop.f32.mrb[0].mxu0
      %574 = vdwg.mxu0
      %575 = vrot.lane.b32.xlu0 %v197, 40
      %v576 = vpop.permute.xlu0 %575
      %578 = vrot.lane.b32.xlu0 %v193, 56
      %v579 = vpop.permute.xlu0 %578
      %v581 = vsel %vm206, %v576, %v579
      %582 = vrot.lane.b32.xlu0 %v194, 80
      %v583 = vpop.permute.xlu0 %582
      %v585 = vmul.f32 %v193, %v583
      %v586 = vmul.f32 %v581, %v195
      %588 = vrot.lane.b32.xlu0 %v586, 80
      %v589 = vpop.permute.xlu0 %588
      %v591 = vadd.f32 %v585, %v589
      %592 = vrot.lane.b32.xlu0 %v197, 88
      %v593 = vpop.permute.xlu0 %592
      %595 = vrot.lane.b32.xlu0 %v193, 104
      %v596 = vpop.permute.xlu0 %595
      %v598 = vsel %vm206, %v593, %v596
      %599 = vrot.lane.b32.xlu0 %v194, 32
      %v600 = vpop.permute.xlu0 %599
      %v602 = vmul.f32 %v193, %v600
      %v603 = vmul.f32 %v598, %v195
      %605 = vrot.lane.b32.xlu0 %v603, 32
      %v606 = vpop.permute.xlu0 %605
      %v608 = vadd.f32 %v602, %v606
      %610 = vrot.lane.b32.xlu0 %v608, 96
      %v611 = vpop.permute.xlu0 %610
      %613 = vrot.lane.b32.xlu0 %v591, 48
      %v614 = vpop.permute.xlu0 %613
      %v615 = vsel %vm232, %v611, 0
      %v617 = vsel %vm232, %v614, 0
      %619 = vmatprep.subr.mxu0 0.0
      %620 = vmatpush1.xpose.msra.mxu0 %v617
      %621 = vmatprep.subr.mxu0 0.0
      %622 = vmatpush1.xpose.msra.mxu0 0.0
      %623 = vmatprep.subr.mxu0 0.0
      %624 = vmatpush1.xpose.msra.mxu0 0.0
      %625 = vmatprep.subr.mxu0 0.0
      %626 = vmatpush1.xpose.msra.mxu0 0.0
      %627 = vmatprep.subr.mxu0 0.0
      %628 = vmatpush1.xpose.msra.mxu0 0.0
      %629 = vmatprep.subr.mxu0 0.0
      %630 = vmatpush1.xpose.msra.mxu0 0.0
      %631 = vmatprep.subr.mxu0 0.0
      %632 = vmatpush1.xpose.msra.mxu0 0.0
      %633 = vmatprep.subr.mxu0 0.0
      %634 = vmatpush1.xpose.msra.mxu0 0.0
      %635 = vmatprep.subr.mxu0 0.0
      %636 = vmatpush1.xpose.msra.mxu0 0.0
      %637 = vmatprep.subr.mxu0 0.0
      %638 = vmatpush1.xpose.msra.mxu0 0.0
      %639 = vmatprep.subr.mxu0 0.0
      %640 = vmatpush1.xpose.msra.mxu0 0.0
      %641 = vmatprep.subr.mxu0 0.0
      %642 = vmatpush1.xpose.msra.mxu0 0.0
      %643 = vmatprep.subr.mxu0 0.0
      %644 = vmatpush1.xpose.msra.mxu0 0.0
      %645 = vmatprep.subr.mxu0 0.0
      %646 = vmatpush1.xpose.msra.mxu0 0.0
      %647 = vmatprep.subr.mxu0 0.0
      %648 = vmatpush1.xpose.msra.mxu0 0.0
      %649 = vmatprep.subr.mxu0 0.0
      %650 = vmatpush1.xpose.msra.mxu0 0.0
      %651 = vmatprep.subr.mxu0 0.0
      %652 = vmatpush1.xpose.msra.mxu0 0.0
      %653 = vmatprep.subr.mxu0 0.0
      %654 = vmatpush1.xpose.msra.mxu0 0.0
      %655 = vmatprep.subr.mxu0 0.0
      %656 = vmatpush1.xpose.msra.mxu0 0.0
      %657 = vmatprep.subr.mxu0 0.0
      %658 = vmatpush1.xpose.msra.mxu0 0.0
      %659 = vmatprep.subr.mxu0 0.0
      %660 = vmatpush1.xpose.msra.mxu0 0.0
      %661 = vmatprep.subr.mxu0 0.0
      %662 = vmatpush1.xpose.msra.mxu0 0.0
      %663 = vmatprep.subr.mxu0 0.0
      %664 = vmatpush1.xpose.msra.mxu0 0.0
      %665 = vmatprep.subr.mxu0 0.0
      %666 = vmatpush1.xpose.msra.mxu0 0.0
      %667 = vmatprep.subr.mxu0 0.0
      %668 = vmatpush1.xpose.msra.mxu0 0.0
      %669 = vmatprep.subr.mxu0 0.0
      %670 = vmatpush1.xpose.msra.mxu0 0.0
      %671 = vmatprep.subr.mxu0 0.0
      %672 = vmatpush1.xpose.msra.mxu0 0.0
      %673 = vmatprep.subr.mxu0 0.0
      %674 = vmatpush1.xpose.msra.mxu0 0.0
      %675 = vmatprep.subr.mxu0 0.0
      %676 = vmatpush1.xpose.msra.mxu0 0.0
      %677 = vmatprep.subr.mxu0 0.0
      %678 = vmatpush1.xpose.msra.mxu0 0.0
      %679 = vmatprep.subr.mxu0 0.0
      %680 = vmatpush1.xpose.msra.mxu0 0.0
      %681 = vmatprep.subr.mxu0 0.0
      %682 = vmatpush1.xpose.msra.mxu0 0.0
      %683 = vmatprep.mubr.f32.mxu0 0.0
      %684 = vmatmul.mubr.f32.gmra.mrb[0].mxu0 %v615
      %v685 = vpop.f32.mrb[0].mxu0
      %v686 = vadd.f32 0.0, %v685
      %v687 = vpop.f32.mrb[0].mxu0
      %688 = vdwg.mxu0
      %v689 = vmul.f32 %v686, 0.25
      %v690 = vadd.f32 %v689, %v196
      %v691 = vsel %vm206, %v690, -inf
      %692 = vmax.xlane.f32.xlu0 %v691
      %v693 = vpop.xlane.xlu0 %692
      %v694 = vsub.f32 %v690, %v693
      %v695 = vmul.f32 %v694, 1.442695
      %v696 = vpow.pop %v695
      %v697 = vsel %vm206, %v696, 0.0
      %698 = vadd.xlane.f32.xlu0 %v697
      %v699 = vpop.xlane.xlu0 %698
      %v700 = vrcp.pop %v699
      %v701 = vmul.f32 %v696, %v700
      %702 = vrot.lane.b32.xlu0 %v193, 16
      %v703 = vpop.permute.xlu0 %702
      %v706 = vsel %vm206, %v701, 0
      %708 = vmatprep.subr.mxu0 0.0
      %709 = vmatpush1.msra.mxu0 %v703
      %710 = vmatprep.subr.mxu0 0.0
      %711 = vmatpush1.msra.mxu0 0.0
      %712 = vmatprep.subr.mxu0 0.0
      %713 = vmatpush1.msra.mxu0 0.0
      %714 = vmatprep.subr.mxu0 0.0
      %715 = vmatpush1.msra.mxu0 0.0
      %716 = vmatprep.subr.mxu0 0.0
      %717 = vmatpush1.msra.mxu0 0.0
      %718 = vmatprep.subr.mxu0 0.0
      %719 = vmatpush1.msra.mxu0 0.0
      %720 = vmatprep.subr.mxu0 0.0
      %721 = vmatpush1.msra.mxu0 0.0
      %722 = vmatprep.subr.mxu0 0.0
      %723 = vmatpush1.msra.mxu0 0.0
      %724 = vmatprep.subr.mxu0 0.0
      %725 = vmatpush1.msra.mxu0 0.0
      %726 = vmatprep.subr.mxu0 0.0
      %727 = vmatpush1.msra.mxu0 0.0
      %728 = vmatprep.subr.mxu0 0.0
      %729 = vmatpush1.msra.mxu0 0.0
      %730 = vmatprep.subr.mxu0 0.0
      %731 = vmatpush1.msra.mxu0 0.0
      %732 = vmatprep.subr.mxu0 0.0
      %733 = vmatpush1.msra.mxu0 0.0
      %734 = vmatprep.subr.mxu0 0.0
      %735 = vmatpush1.msra.mxu0 0.0
      %736 = vmatprep.subr.mxu0 0.0
      %737 = vmatpush1.msra.mxu0 0.0
      %738 = vmatprep.subr.mxu0 0.0
      %739 = vmatpush1.msra.mxu0 0.0
      %740 = vmatprep.subr.mxu0 0.0
      %741 = vmatpush1.msra.mxu0 0.0
      %742 = vmatprep.subr.mxu0 0.0
      %743 = vmatpush1.msra.mxu0 0.0
      %744 = vmatprep.subr.mxu0 0.0
      %745 = vmatpush1.msra.mxu0 0.0
      %746 = vmatprep.subr.mxu0 0.0
      %747 = vmatpush1.msra.mxu0 0.0
      %748 = vmatprep.subr.mxu0 0.0
      %749 = vmatpush1.msra.mxu0 0.0
      %750 = vmatprep.subr.mxu0 0.0
      %751 = vmatpush1.msra.mxu0 0.0
      %752 = vmatprep.subr.mxu0 0.0
      %753 = vmatpush1.msra.mxu0 0.0
      %754 = vmatprep.subr.mxu0 0.0
      %755 = vmatpush1.msra.mxu0 0.0
      %756 = vmatprep.subr.mxu0 0.0
      %757 = vmatpush1.msra.mxu0 0.0
      %758 = vmatprep.subr.mxu0 0.0
      %759 = vmatpush1.msra.mxu0 0.0
      %760 = vmatprep.subr.mxu0 0.0
      %761 = vmatpush1.msra.mxu0 0.0
      %762 = vmatprep.subr.mxu0 0.0
      %763 = vmatpush1.msra.mxu0 0.0
      %764 = vmatprep.subr.mxu0 0.0
      %765 = vmatpush1.msra.mxu0 0.0
      %766 = vmatprep.subr.mxu0 0.0
      %767 = vmatpush1.msra.mxu0 0.0
      %768 = vmatprep.subr.mxu0 0.0
      %769 = vmatpush1.msra.mxu0 0.0
      %770 = vmatprep.subr.mxu0 0.0
      %771 = vmatpush1.msra.mxu0 0.0
      %772 = vmatprep.mubr.f32.mxu0 0.0
      %773 = vmatmul.mubr.f32.gmra.mrb[0].mxu0 %v706
      %v774 = vpop.f32.mrb[0].mxu0
      %v775 = vadd.f32 0.0, %v774
      %v776 = vpop.f32.mrb[0].mxu0
      %777 = vdwg.mxu0
      %778 = vrot.lane.b32.xlu0 %v197, 72
      %v779 = vpop.permute.xlu0 %778
      %781 = vrot.lane.b32.xlu0 %v193, 88
      %v782 = vpop.permute.xlu0 %781
      %v784 = vsel %vm206, %v779, %v782
      %785 = vrot.lane.b32.xlu0 %v194, 48
      %v786 = vpop.permute.xlu0 %785
      %v788 = vmul.f32 %v193, %v786
      %v789 = vmul.f32 %v784, %v195
      %791 = vrot.lane.b32.xlu0 %v789, 48
      %v792 = vpop.permute.xlu0 %791
      %v794 = vadd.f32 %v788, %v792
      %796 = vrot.lane.b32.xlu0 %v794, 80
      %v797 = vpop.permute.xlu0 %796
      %v798 = vsel %vm232, %v797, 0
      %800 = vmatprep.subr.mxu0 0.0
      %801 = vmatpush1.xpose.msra.mxu0 %v617
      %802 = vmatprep.subr.mxu0 0.0
      %803 = vmatpush1.xpose.msra.mxu0 0.0
      %804 = vmatprep.subr.mxu0 0.0
      %805 = vmatpush1.xpose.msra.mxu0 0.0
      %806 = vmatprep.subr.mxu0 0.0
      %807 = vmatpush1.xpose.msra.mxu0 0.0
      %808 = vmatprep.subr.mxu0 0.0
      %809 = vmatpush1.xpose.msra.mxu0 0.0
      %810 = vmatprep.subr.mxu0 0.0
      %811 = vmatpush1.xpose.msra.mxu0 0.0
      %812 = vmatprep.subr.mxu0 0.0
      %813 = vmatpush1.xpose.msra.mxu0 0.0
      %814 = vmatprep.subr.mxu0 0.0
      %815 = vmatpush1.xpose.msra.mxu0 0.0
      %816 = vmatprep.subr.mxu0 0.0
      %817 = vmatpush1.xpose.msra.mxu0 0.0
      %818 = vmatprep.subr.mxu0 0.0
      %819 = vmatpush1.xpose.msra.mxu0 0.0
      %820 = vmatprep.subr.mxu0 0.0
      %821 = vmatpush1.xpose.msra.mxu0 0.0
      %822 = vmatprep.subr.mxu0 0.0
      %823 = vmatpush1.xpose.msra.mxu0 0.0
      %824 = vmatprep.subr.mxu0 0.0
      %825 = vmatpush1.xpose.msra.mxu0 0.0
      %826 = vmatprep.subr.mxu0 0.0
      %827 = vmatpush1.xpose.msra.mxu0 0.0
      %828 = vmatprep.subr.mxu0 0.0
      %829 = vmatpush1.xpose.msra.mxu0 0.0
      %830 = vmatprep.subr.mxu0 0.0
      %831 = vmatpush1.xpose.msra.mxu0 0.0
      %832 = vmatprep.subr.mxu0 0.0
      %833 = vmatpush1.xpose.msra.mxu0 0.0
      %834 = vmatprep.subr.mxu0 0.0
      %835 = vmatpush1.xpose.msra.mxu0 0.0
      %836 = vmatprep.subr.mxu0 0.0
      %837 = vmatpush1.xpose.msra.mxu0 0.0
      %838 = vmatprep.subr.mxu0 0.0
      %839 = vmatpush1.xpose.msra.mxu0 0.0
      %840 = vmatprep.subr.mxu0 0.0
      %841 = vmatpush1.xpose.msra.mxu0 0.0
      %842 = vmatprep.subr.mxu0 0.0
      %843 = vmatpush1.xpose.msra.mxu0 0.0
      %844 = vmatprep.subr.mxu0 0.0
      %845 = vmatpush1.xpose.msra.mxu0 0.0
      %846 = vmatprep.subr.mxu0 0.0
      %847 = vmatpush1.xpose.msra.mxu0 0.0
      %848 = vmatprep.subr.mxu0 0.0
      %849 = vmatpush1.xpose.msra.mxu0 0.0
      %850 = vmatprep.subr.mxu0 0.0
      %851 = vmatpush1.xpose.msra.mxu0 0.0
      %852 = vmatprep.subr.mxu0 0.0
      %853 = vmatpush1.xpose.msra.mxu0 0.0
      %854 = vmatprep.subr.mxu0 0.0
      %855 = vmatpush1.xpose.msra.mxu0 0.0
      %856 = vmatprep.subr.mxu0 0.0
      %857 = vmatpush1.xpose.msra.mxu0 0.0
      %858 = vmatprep.subr.mxu0 0.0
      %859 = vmatpush1.xpose.msra.mxu0 0.0
      %860 = vmatprep.subr.mxu0 0.0
      %861 = vmatpush1.xpose.msra.mxu0 0.0
      %862 = vmatprep.subr.mxu0 0.0
      %863 = vmatpush1.xpose.msra.mxu0 0.0
      %864 = vmatprep.mubr.f32.mxu0 0.0
      %865 = vmatmul.mubr.f32.gmra.mrb[0].mxu0 %v798
      %v866 = vpop.f32.mrb[0].mxu0
      %v867 = vadd.f32 0.0, %v866
      %v868 = vpop.f32.mrb[0].mxu0
      %869 = vdwg.mxu0
      %v870 = vmul.f32 %v867, 0.25
      %v871 = vadd.f32 %v870, %v196
      %v872 = vsel %vm206, %v871, -inf
      %873 = vmax.xlane.f32.xlu0 %v872
      %v874 = vpop.xlane.xlu0 %873
      %v875 = vsub.f32 %v871, %v874
      %v876 = vmul.f32 %v875, 1.442695
      %v877 = vpow.pop %v876
      %v878 = vsel %vm206, %v877, 0.0
      %879 = vadd.xlane.f32.xlu0 %v878
      %v880 = vpop.xlane.xlu0 %879
      %v881 = vrcp.pop %v880
      %v882 = vmul.f32 %v877, %v881
      %v884 = vsel %vm206, %v882, 0
      %886 = vmatprep.subr.mxu0 0.0
      %887 = vmatpush1.msra.mxu0 %v703
      %888 = vmatprep.subr.mxu0 0.0
      %889 = vmatpush1.msra.mxu0 0.0
      %890 = vmatprep.subr.mxu0 0.0
      %891 = vmatpush1.msra.mxu0 0.0
      %892 = vmatprep.subr.mxu0 0.0
      %893 = vmatpush1.msra.mxu0 0.0
      %894 = vmatprep.subr.mxu0 0.0
      %895 = vmatpush1.msra.mxu0 0.0
      %896 = vmatprep.subr.mxu0 0.0
      %897 = vmatpush1.msra.mxu0 0.0
      %898 = vmatprep.subr.mxu0 0.0
      %899 = vmatpush1.msra.mxu0 0.0
      %900 = vmatprep.subr.mxu0 0.0
      %901 = vmatpush1.msra.mxu0 0.0
      %902 = vmatprep.subr.mxu0 0.0
      %903 = vmatpush1.msra.mxu0 0.0
      %904 = vmatprep.subr.mxu0 0.0
      %905 = vmatpush1.msra.mxu0 0.0
      %906 = vmatprep.subr.mxu0 0.0
      %907 = vmatpush1.msra.mxu0 0.0
      %908 = vmatprep.subr.mxu0 0.0
      %909 = vmatpush1.msra.mxu0 0.0
      %910 = vmatprep.subr.mxu0 0.0
      %911 = vmatpush1.msra.mxu0 0.0
      %912 = vmatprep.subr.mxu0 0.0
      %913 = vmatpush1.msra.mxu0 0.0
      %914 = vmatprep.subr.mxu0 0.0
      %915 = vmatpush1.msra.mxu0 0.0
      %916 = vmatprep.subr.mxu0 0.0
      %917 = vmatpush1.msra.mxu0 0.0
      %918 = vmatprep.subr.mxu0 0.0
      %919 = vmatpush1.msra.mxu0 0.0
      %920 = vmatprep.subr.mxu0 0.0
      %921 = vmatpush1.msra.mxu0 0.0
      %922 = vmatprep.subr.mxu0 0.0
      %923 = vmatpush1.msra.mxu0 0.0
      %924 = vmatprep.subr.mxu0 0.0
      %925 = vmatpush1.msra.mxu0 0.0
      %926 = vmatprep.subr.mxu0 0.0
      %927 = vmatpush1.msra.mxu0 0.0
      %928 = vmatprep.subr.mxu0 0.0
      %929 = vmatpush1.msra.mxu0 0.0
      %930 = vmatprep.subr.mxu0 0.0
      %931 = vmatpush1.msra.mxu0 0.0
      %932 = vmatprep.subr.mxu0 0.0
      %933 = vmatpush1.msra.mxu0 0.0
      %934 = vmatprep.subr.mxu0 0.0
      %935 = vmatpush1.msra.mxu0 0.0
      %936 = vmatprep.subr.mxu0 0.0
      %937 = vmatpush1.msra.mxu0 0.0
      %938 = vmatprep.subr.mxu0 0.0
      %939 = vmatpush1.msra.mxu0 0.0
      %940 = vmatprep.subr.mxu0 0.0
      %941 = vmatpush1.msra.mxu0 0.0
      %942 = vmatprep.subr.mxu0 0.0
      %943 = vmatpush1.msra.mxu0 0.0
      %944 = vmatprep.subr.mxu0 0.0
      %945 = vmatpush1.msra.mxu0 0.0
      %946 = vmatprep.subr.mxu0 0.0
      %947 = vmatpush1.msra.mxu0 0.0
      %948 = vmatprep.subr.mxu0 0.0
      %949 = vmatpush1.msra.mxu0 0.0
      %950 = vmatprep.mubr.f32.mxu0 0.0
      %951 = vmatmul.mubr.f32.gmra.mrb[0].mxu0 %v884
      %v952 = vpop.f32.mrb[0].mxu0
      %v953 = vadd.f32 0.0, %v952
      %v954 = vpop.f32.mrb[0].mxu0
      %955 = vdwg.mxu0
      %957 = vrot.lane.b32.xlu0 %v572, 16
      %v958 = vpop.permute.xlu0 %957
      %961 = vrot.lane.b32.xlu0 %v775, 32
      %v962 = vpop.permute.xlu0 %961
      %965 = vrot.lane.b32.xlu0 %v953, 48
      %v966 = vpop.permute.xlu0 %965
      %v968 = vsel %vm232, %v394, %v958
      %vm969 = vcmask 261120
      %v970 = vsel %vm969, %v968, %v962
      %vm971 = vcmask 392192
      %v972 = vsel %vm971, %v970, %v966
      %vm973 = vcmask 523264
      %974 = vst.msk [vmem:[%s192] sm:$0xff] %vm973, %v972
      %p975 = scmp.lt.s32.totalorder %s15, 1
      %s976 = scalar_select %p975, %s15, 1
      %s977 = smul.addr %s976, 8
      %s978 = scalar_lea.vmem %s4, %s977
      // Predicated region
      $region37: #{transformer_forward.10} parent=35 // pred_check
        %p979 = pneg %p122
      $region38: #{transformer_forward.10} parent=35 // pred_check_branch
        %981 = sbr.rel (%p979) target = $region40
      $region39: #{transformer_forward.10} parent=35 // pred_region
        _
      $region40: #{transformer_forward.10} parent=35 // pred_fallthru
        _
    $region36: #{transformer_forward.10} parent=5 // pred_fallthru
      _
    %p982 = scmp.le.s32.totalorder 2, %s10
    // Predicated region
    $region41: #{transformer_forward.10} parent=5 // pred_check
      %p983 = pneg %p982
    $region42: #{transformer_forward.10} parent=5 // pred_check_branch
      %985 = sbr.rel (%p983) target = $region44
    $region43: #{transformer_forward.10} parent=5 // pred_region
      %s986 = ssub.s32 %s10, 2
      // Predicated region
      $region45: #{transformer_forward.10} parent=43 // pred_check
        %p987 = pneg %p128
      $region46: #{transformer_forward.10} parent=43 // pred_check_branch
        %989 = sbr.rel (%p987) target = $region48
      $region47: #{transformer_forward.10} parent=43 // pred_region
        %p990 = scmp.lt.s32.totalorder %s16, 1
        %s991 = scalar_select %p990, %s16, 1
        %s992 = smul.addr %s991, 8
        %s993 = scalar_lea.vmem %s4, %s992
      $region48: #{transformer_forward.10} parent=43 // pred_fallthru
        _
    $region44: #{transformer_forward.10} parent=5 // pred_fallthru
      _
  $region6: #{transformer_forward.10} parent=0 // loop_footer
    %s14 = sadd.s32 1, %s10
  $region7: #{transformer_forward.10} parent=0 // loop_footer_branch
    %9 = sbr.rel target = $region3
  $region8: #{transformer_forward.10} parent=0 // loop_exit
    _

// kernel: transformer_forward.17
$region0: #{transformer_forward.17}
  #allocation0 [shape = 'u32[]', space=smem, size = 0x4, offset = 0x4, fixed_abs, tag = 'smem constant byte address 0x4 - core index']
  #allocation1 [shape = 'u32[144,128]{1,0:T(1,128)}', space=vmem, size = 0x12000, scoped, tag = 'internal scratch']
  %s0 = inlined_call_operand.vmem [shape: f32[16,64], index: 0, kind: input, shape index: {}]
  %s1 = inlined_call_operand.vmem [shape: f32[16,64], index: 1, kind: input, shape index: {}]
  %s2 = inlined_call_operand.vmem [shape: f32[1,64], index: 2, kind: input, shape index: {}]
  %s3 = inlined_call_operand.vmem [shape: f32[1,64], index: 3, kind: input, shape index: {}]
  %s4 = inlined_call_operand.vmem [shape: bf16[64,128], index: 4, kind: input, shape index: {}]
  %s5 = inlined_call_operand.vmem [shape: f32[1,128], index: 5, kind: input, shape index: {}]
  %s6 = inlined_call_operand.hbm [shape: f32[16,128], index: 6, kind: output, shape index: {}]
  %s7 = sld [smem:[#allocation0]]
  $region34: #{transformer_forward.17} parent=0
    _
  %s9 = ssub.s32 1, %s7
  %s10 = scalar_select 0, %s9, %s7
  $region1: #{transformer_forward.17} parent=0
    #allocation2 [shape = 'u8[8192]{0}', space=vmem, size = 0x2000, scoped, tag = 'output window, operand 0, single buffered']
    #allocation3 [shape = 's32[1]{0}', space=sflag, size = 0x4, scoped, tag = 'scoped memory for transformer_forward.17']
    %11 = vsyncpa [#allocation3], 0
    // Predicated region
    $region2: #{transformer_forward.17} parent=1 // pred_check
      _
    $region3: #{transformer_forward.17} parent=1 // pred_check_branch
      %13 = sbr.rel (0) target = $region5
    $region4: #{transformer_forward.17} parent=1 // pred_region
      _
    $region5: #{transformer_forward.17} parent=1 // pred_fallthru
      _
    // Predicated region
    $region6: #{transformer_forward.17} parent=1 // pred_check
      _
    $region7: #{transformer_forward.17} parent=1 // pred_check_branch
      %15 = sbr.rel (0) target = $region9
    $region8: #{transformer_forward.17} parent=1 // pred_region
      _
    $region9: #{transformer_forward.17} parent=1 // pred_fallthru
      _
    // Predicated region
    $region10: #{transformer_forward.17} parent=1 // pred_check
      _
    $region11: #{transformer_forward.17} parent=1 // pred_check_branch
      %17 = sbr.rel (0) target = $region13
    $region12: #{transformer_forward.17} parent=1 // pred_region
      _
    $region13: #{transformer_forward.17} parent=1 // pred_fallthru
      _
    // Predicated region
    $region14: #{transformer_forward.17} parent=1 // pred_check
      _
    $region15: #{transformer_forward.17} parent=1 // pred_check_branch
      %19 = sbr.rel (0) target = $region17
    $region16: #{transformer_forward.17} parent=1 // pred_region
      _
    $region17: #{transformer_forward.17} parent=1 // pred_fallthru
      _
    // Predicated region
    $region18: #{transformer_forward.17} parent=1 // pred_check
      _
    $region19: #{transformer_forward.17} parent=1 // pred_check_branch
      %21 = sbr.rel (0) target = $region21
    $region20: #{transformer_forward.17} parent=1 // pred_region
      _
    $region21: #{transformer_forward.17} parent=1 // pred_fallthru
      _
    // Predicated region
    $region22: #{transformer_forward.17} parent=1 // pred_check
      _
    $region23: #{transformer_forward.17} parent=1 // pred_check_branch
      %23 = sbr.rel (0) target = $region25
    $region24: #{transformer_forward.17} parent=1 // pred_region
      _
    $region25: #{transformer_forward.17} parent=1 // pred_fallthru
      _
    %v25 = vld [vmem:[%s0] sm:$0xff]
    %v26 = vld [vmem:[%s0 + $0x8] sm:$0xff]
    %v27 = vld [vmem:[%s1] sm:$0xff]
    %v28 = vld [vmem:[%s1 + $0x8] sm:$0xff]
    %v29 = vadd.f32 %v25, %v27
    %v30 = vadd.f32 %v26, %v28
    %v31 = vld [vmem:[%s2] sm:$0x1]
    %v32 = vld [vmem:[%s3] sm:$0x1]
    %vm33 = vcmask 523264
    %v34 = vsel %vm33, %v29, 0.0
    %35 = vadd.xlane.f32.xlu0 %v34
    %v36 = vpop.xlane.xlu0 %35
    %v37 = vsel %vm33, %v30, 0.0
    %38 = vadd.xlane.f32.xlu0 %v37
    %v39 = vpop.xlane.xlu0 %38
    %v40 = vrcp.pop 64.0
    %v41 = vmul.f32 %v36, %v40
    %v42 = vmul.f32 %v39, %v40
    %v43 = vsub.f32 %v29, %v41
    %v44 = vsub.f32 %v30, %v42
    %v45 = vmul.f32 %v43, %v43
    %v46 = vmul.f32 %v44, %v44
    %v47 = vsel %vm33, %v45, 0.0
    %48 = vadd.xlane.f32.xlu0 %v47
    %v49 = vpop.xlane.xlu0 %48
    %v50 = vsel %vm33, %v46, 0.0
    %51 = vadd.xlane.f32.xlu0 %v50
    %v52 = vpop.xlane.xlu0 %51
    %v53 = vmul.f32 %v49, %v40
    %v54 = vmul.f32 %v52, %v40
    %v55 = vadd.f32 %v53, 1e-05
    %v56 = vadd.f32 %v54, 1e-05
    %v57 = vrsqrt.pop %v55
    %v58 = vrsqrt.pop %v56
    %v59 = vmul.f32 %v43, %v57
    %v60 = vmul.f32 %v44, %v58
    %v62 = vlaneseq
    %v63 = vshrl.u32 %v62, 7
    %v64 = vsub.s32 0, %v63
    %v65 = vrot.slane %v31, %v64
    %v67 = vmul.f32 %v59, %v65
    %v68 = vmul.f32 %v60, %v65
    %v70 = vlaneseq
    %v71 = vshrl.u32 %v70, 7
    %v72 = vsub.s32 0, %v71
    %v73 = vrot.slane %v32, %v72
    %v75 = vadd.f32 %v67, %v73
    %v76 = vadd.f32 %v68, %v73
    %v77 = vpack.c.bf16 %v76, %v75
    %v78 = vld [vmem:[%s4] sm:$0xf]
    %v79 = vld [vmem:[%s4 + $0x4] sm:$0xf]
    %v80 = vld [vmem:[%s4 + $0x8] sm:$0xf]
    %v81 = vld [vmem:[%s4 + $0xc] sm:$0xf]
    %v82 = vld [vmem:[%s4 + $0x10] sm:$0xf]
    %v83 = vld [vmem:[%s4 + $0x14] sm:$0xf]
    %v84 = vld [vmem:[%s4 + $0x18] sm:$0xf]
    %v85 = vld [vmem:[%s4 + $0x1c] sm:$0xf]
    %v86 = vld [vmem:[%s5] sm:$0x1]
    %v88 = vlaneseq
    %v89 = vshrl.u32 %v88, 7
    %v90 = vsub.s32 0, %v89
    %v91 = vrot.slane %v86, %v90
    %v101 = vunpack.c.l.b16 %v78
    %v102 = vunpack.c.l.b16 %v79
    %v103 = vunpack.c.l.b16 %v80
    %v104 = vunpack.c.l.b16 %v81
    %v105 = vunpack.c.l.b16 %v82
    %v106 = vunpack.c.l.b16 %v83
    %v107 = vunpack.c.l.b16 %v84
    %v108 = vunpack.c.l.b16 %v85
    %v109 = vpack.c.b16 %v102, %v101
    %v110 = vpack.c.b16 %v104, %v103
    %v111 = vpack.c.b16 %v106, %v105
    %v112 = vpack.c.b16 %v108, %v107
    %v118 = vsel %vm33, %v77, 0
    %120 = vmatprep.subr.bf16.mxu0 0
    %121 = vmatpush1.bf16.msra.mxu0 %v109
    %122 = vmatprep.subr.bf16.mxu0 0
    %123 = vmatpush1.bf16.msra.mxu0 %v110
    %124 = vmatprep.subr.bf16.mxu0 0
    %125 = vmatpush1.bf16.msra.mxu0 %v111
    %126 = vmatprep.subr.bf16.mxu0 0
    %127 = vmatpush1.bf16.msra.mxu0 %v112
    %128 = vmatprep.subr.bf16.mxu0 0
    %129 = vmatpush1.bf16.msra.mxu0 0
    %130 = vmatprep.subr.bf16.mxu0 0
    %131 = vmatpush1.bf16.msra.mxu0 0
    %132 = vmatprep.subr.bf16.mxu0 0
    %133 = vmatpush1.bf16.msra.mxu0 0
    %134 = vmatprep.subr.bf16.mxu0 0
    %135 = vmatpush1.bf16.msra.mxu0 0
    %136 = vmatprep.subr.bf16.mxu0 0
    %137 = vmatpush1.bf16.msra.mxu0 0
    %138 = vmatprep.subr.bf16.mxu0 0
    %139 = vmatpush1.bf16.msra.mxu0 0
    %140 = vmatprep.subr.bf16.mxu0 0
    %141 = vmatpush1.bf16.msra.mxu0 0
    %142 = vmatprep.subr.bf16.mxu0 0
    %143 = vmatpush1.bf16.msra.mxu0 0
    %144 = vmatprep.subr.bf16.mxu0 0
    %145 = vmatpush1.bf16.msra.mxu0 0
    %146 = vmatprep.subr.bf16.mxu0 0
    %147 = vmatpush1.bf16.msra.mxu0 0
    %148 = vmatprep.subr.bf16.mxu0 0
    %149 = vmatpush1.bf16.msra.mxu0 0
    %150 = vmatprep.subr.bf16.mxu0 0
    %151 = vmatpush1.bf16.msra.mxu0 0
    %152 = vmatprep.mubr.bf16.mxu0 0
    %153 = vmatmul.mubr.bf16.gmra.mrb[0].mxu0 %v118
    %v154 = vpop.f32.mrb[0].mxu0
    %v155 = vadd.f32 %v91, %v154
    %v156 = vpop.f32.mrb[0].mxu0
    %v157 = vpop.f32.mrb[0].mxu0
    %v158 = vadd.f32 %v91, %v157
    %v159 = vpop.f32.mrb[0].mxu0
    %160 = vdwg.mxu0
    %161 = vst [vmem:[#allocation2] sm:$0xff] %v155
    %162 = vst [vmem:[#allocation2 + $0x8] sm:$0xff] %v158
    // Predicated region
    $region26: #{transformer_forward.17} parent=1 // pred_check
      _
    $region27: #{transformer_forward.17} parent=1 // pred_check_branch
      %164 = sbr.rel (0) target = $region29
    $region28: #{transformer_forward.17} parent=1 // pred_region
      %s166 = ssub.s32 256, 256
      %167 = vsyncadd [#allocation3], %s166
      %s168 = sshll.u32 [#allocation2], 4
      %s169 = int_to_ptr.vmem [resolvable:$true] %s168
      %174 = dma.vmem_to_hbm [thread:$0]  %s169, 256, %s6, [#allocation3], 128, 128, 8
    $region29: #{transformer_forward.17} parent=1 // pred_fallthru
      _
    // Predicated region
    $region30: #{transformer_forward.17} parent=1 // pred_check
      _
    $region31: #{transformer_forward.17} parent=1 // pred_check_branch
      %176 = sbr.rel (0) target = $region33
    $region32: #{transformer_forward.17} parent=1 // pred_region
      %177 = dma.done [#allocation3], 256
    $region33: #{transformer_forward.17} parent=1 // pred_fallthru
      _
    %178 = vsyncpa [#allocation3], 1

// kernel: transformer_forward.12
$region0: #{transformer_forward.12}
  #allocation0 [shape = 'u32[]', space=smem, size = 0x4, offset = 0x4, fixed_abs, tag = 'smem constant byte address 0x4 - core index']
  #allocation1 [shape = 'u32[144,128]{1,0:T(1,128)}', space=vmem, size = 0x12000, scoped, tag = 'internal scratch']
  %s0 = inlined_call_operand.vmem [shape: bf16[16,64], index: 0, kind: input, shape index: {}]
  %s1 = inlined_call_operand.vmem [shape: f32[4,16,1], index: 1, kind: input, shape index: {}]
  %s2 = inlined_call_operand.vmem [shape: bf16[4,64,128], index: 2, kind: input, shape index: {}]
  %s3 = inlined_call_operand.vmem [shape: bf16[4,64,128], index: 3, kind: input, shape index: {}]
  %s4 = inlined_call_operand.vmem [shape: bf16[4,128,64], index: 4, kind: input, shape index: {}]
  %s5 = inlined_call_operand.vmem [shape: f32[16,64], index: 5, kind: output, shape index: {}]
  %s6 = sld [smem:[#allocation0]]
  $region57: #{transformer_forward.12} parent=0
    _
  %s8 = ssub.s32 1, %s6
  %s9 = scalar_select 0, %s8, %s6
  loop: start=0, step=1, limit=6
  $region2: #{transformer_forward.12} parent=0 // loop_pre_header
    _
  $region3: #{transformer_forward.12} parent=0 // loop_header
    %s11 = sphi 0, %s15
    %p12 = scmp.ge.s32.totalorder %s11, 6
    %s19 = sphi 0, %s19
    %s21 = sphi 0, %s19
    %s22 = sphi 0, %s21
    %s36 = sphi 0, %s22
    %s42 = sphi 0, %s44
    %s45 = sphi 0, %s42
    %s46 = sphi 0, %s45
    %s62 = sphi 0, %s46
    %s68 = sphi 0, %s70
    %s71 = sphi 0, %s68
    %s72 = sphi 0, %s71
    %s88 = sphi 0, %s72
    %s94 = sphi 0, %s96
    %s97 = sphi 0, %s94
    %s98 = sphi 0, %s97
    %s114 = sphi 0, %s98
    %s120 = sphi 0, %s122
    %s123 = sphi 0, %s120
    %s124 = sphi 0, %s123
    %s140 = sphi 0, %s124
    %s144 = sphi 0, %s144
    %s146 = sphi 0, %s144
    %s147 = sphi 0, %s146
    %s161 = sphi 0, %s147
  $region4: #{transformer_forward.12} parent=0 // loop_header_branch
    %14 = sbr.rel (%p12) target = $region8
  $region5: #{transformer_forward.12} parent=0 // loop_body
    %s16 = ssub.s32 %s11, 1
    %s17 = ssub.s32 %s11, 2
    %s18 = sadd.s32 %s11, 1
    %s20 = sadd.s32 %s19, 1
    %p23 = scmp.eq.s32.totalorder %s11, 3
    %p24 = scmp.ne.s32.totalorder %s19, %s21
    %p25 = scmp.eq.s32.totalorder %s11, 0
    %p26 = por %p24, %p25
    %p27 = scmp.ne.s32.totalorder %s19, %s21
    %p28 = scmp.eq.s32.totalorder %s16, 3
    %p29 = por %p27, %p28
    %p30 = scmp.ne.s32.totalorder %s21, %s22
    %p31 = scmp.eq.s32.totalorder %s16, 0
    %p32 = por %p30, %p31
    %p33 = scmp.ne.s32.totalorder %s21, %s22
    %p34 = scmp.eq.s32.totalorder %s17, 3
    %p35 = por %p33, %p34
    %p37 = scmp.ne.s32.totalorder %s22, %s36
    %p38 = scmp.eq.s32.totalorder %s17, 0
    %p39 = por %p37, %p38
    %s40 = ssub.s32 %s11, %s18
    %p41 = scmp.eq.s32.totalorder %s40, 0
    %s43 = sadd.s32 %s42, 1
    %s44 = scalar_select %p41, %s42, %s43
    %p47 = pneg %p41
    %p48 = scmp.eq.s32.totalorder %s11, 3
    %p49 = por %p47, %p48
    %p50 = scmp.ne.s32.totalorder %s42, %s45
    %p51 = scmp.eq.s32.totalorder %s11, 0
    %p52 = por %p50, %p51
    %p53 = scmp.ne.s32.totalorder %s42, %s45
    %p54 = scmp.eq.s32.totalorder %s16, 3
    %p55 = por %p53, %p54
    %p56 = scmp.ne.s32.totalorder %s45, %s46
    %p57 = scmp.eq.s32.totalorder %s16, 0
    %p58 = por %p56, %p57
    %p59 = scmp.ne.s32.totalorder %s45, %s46
    %p60 = scmp.eq.s32.totalorder %s17, 3
    %p61 = por %p59, %p60
    %p63 = scmp.ne.s32.totalorder %s46, %s62
    %p64 = scmp.eq.s32.totalorder %s17, 0
    %p65 = por %p63, %p64
    %s66 = ssub.s32 %s11, %s18
    %p67 = scmp.eq.s32.totalorder %s66, 0
    %s69 = sadd.s32 %s68, 1
    %s70 = scalar_select %p67, %s68, %s69
    %p73 = pneg %p67
    %p74 = scmp.eq.s32.totalorder %s11, 3
    %p75 = por %p73, %p74
    %p76 = scmp.ne.s32.totalorder %s68, %s71
    %p77 = scmp.eq.s32.totalorder %s11, 0
    %p78 = por %p76, %p77
    %p79 = scmp.ne.s32.totalorder %s68, %s71
    %p80 = scmp.eq.s32.totalorder %s16, 3
    %p81 = por %p79, %p80
    %p82 = scmp.ne.s32.totalorder %s71, %s72
    %p83 = scmp.eq.s32.totalorder %s16, 0
    %p84 = por %p82, %p83
    %p85 = scmp.ne.s32.totalorder %s71, %s72
    %p86 = scmp.eq.s32.totalorder %s17, 3
    %p87 = por %p85, %p86
    %p89 = scmp.ne.s32.totalorder %s72, %s88
    %p90 = scmp.eq.s32.totalorder %s17, 0
    %p91 = por %p89, %p90
    %s92 = ssub.s32 %s11, %s18
    %p93 = scmp.eq.s32.totalorder %s92, 0
    %s95 = sadd.s32 %s94, 1
    %s96 = scalar_select %p93, %s94, %s95
    %p99 = pneg %p93
    %p100 = scmp.eq.s32.totalorder %s11, 3
    %p101 = por %p99, %p100
    %p102 = scmp.ne.s32.totalorder %s94, %s97
    %p103 = scmp.eq.s32.totalorder %s11, 0
    %p104 = por %p102, %p103
    %p105 = scmp.ne.s32.totalorder %s94, %s97
    %p106 = scmp.eq.s32.totalorder %s16, 3
    %p107 = por %p105, %p106
    %p108 = scmp.ne.s32.totalorder %s97, %s98
    %p109 = scmp.eq.s32.totalorder %s16, 0
    %p110 = por %p108, %p109
    %p111 = scmp.ne.s32.totalorder %s97, %s98
    %p112 = scmp.eq.s32.totalorder %s17, 3
    %p113 = por %p111, %p112
    %p115 = scmp.ne.s32.totalorder %s98, %s114
    %p116 = scmp.eq.s32.totalorder %s17, 0
    %p117 = por %p115, %p116
    %s118 = ssub.s32 %s11, %s18
    %p119 = scmp.eq.s32.totalorder %s118, 0
    %s121 = sadd.s32 %s120, 1
    %s122 = scalar_select %p119, %s120, %s121
    %p125 = pneg %p119
    %p126 = scmp.eq.s32.totalorder %s11, 3
    %p127 = por %p125, %p126
    %p128 = scmp.ne.s32.totalorder %s120, %s123
    %p129 = scmp.eq.s32.totalorder %s11, 0
    %p130 = por %p128, %p129
    %p131 = scmp.ne.s32.totalorder %s120, %s123
    %p132 = scmp.eq.s32.totalorder %s16, 3
    %p133 = por %p131, %p132
    %p134 = scmp.ne.s32.totalorder %s123, %s124
    %p135 = scmp.eq.s32.totalorder %s16, 0
    %p136 = por %p134, %p135
    %p137 = scmp.ne.s32.totalorder %s123, %s124
    %p138 = scmp.eq.s32.totalorder %s17, 3
    %p139 = por %p137, %p138
    %p141 = scmp.ne.s32.totalorder %s124, %s140
    %p142 = scmp.eq.s32.totalorder %s17, 0
    %p143 = por %p141, %p142
    %s145 = sadd.s32 %s144, 1
    %p148 = scmp.eq.s32.totalorder %s11, 3
    %p149 = scmp.ne.s32.totalorder %s144, %s146
    %p150 = scmp.eq.s32.totalorder %s11, 0
    %p151 = por %p149, %p150
    %p152 = scmp.ne.s32.totalorder %s144, %s146
    %p153 = scmp.eq.s32.totalorder %s16, 3
    %p154 = por %p152, %p153
    %p155 = scmp.ne.s32.totalorder %s146, %s147
    %p156 = scmp.eq.s32.totalorder %s16, 0
    %p157 = por %p155, %p156
    %p158 = scmp.ne.s32.totalorder %s146, %s147
    %p159 = scmp.eq.s32.totalorder %s17, 3
    %p160 = por %p158, %p159
    %p162 = scmp.ne.s32.totalorder %s147, %s161
    %p163 = scmp.eq.s32.totalorder %s17, 0
    %p164 = por %p162, %p163
    %p165 = scmp.le.s32.totalorder 1, %s11
    %p166 = scmp.lt.s32.totalorder %s11, 5
    %p167 = pnand %p165, %p166
    %p168 = pneg %p167
    // Predicated region
    $region9: #{transformer_forward.12} parent=5 // pred_check
      _
    $region10: #{transformer_forward.12} parent=5 // pred_check_branch
      %170 = sbr.rel (%p167) target = $region12
    $region11: #{transformer_forward.12} parent=5 // pred_region
      %s171 = ssub.s32 %s11, 1
      // Predicated region
      $region13: #{transformer_forward.12} parent=11 // pred_check
        %p172 = pneg %p32
      $region14: #{transformer_forward.12} parent=11 // pred_check_branch
        %174 = sbr.rel (%p172) target = $region16
      $region15: #{transformer_forward.12} parent=11 // pred_region
        _
      $region16: #{transformer_forward.12} parent=11 // pred_fallthru
        _
    $region12: #{transformer_forward.12} parent=5 // pred_fallthru
      _
    %p175 = scmp.lt.s32.totalorder %s11, 4
    // Predicated region
    $region17: #{transformer_forward.12} parent=5 // pred_check
      %p176 = pneg %p175
    $region18: #{transformer_forward.12} parent=5 // pred_check_branch
      %178 = sbr.rel (%p176) target = $region20
    $region19: #{transformer_forward.12} parent=5 // pred_region
      // Predicated region
      $region21: #{transformer_forward.12} parent=19 // pred_check
        %p179 = pneg %p52
      $region22: #{transformer_forward.12} parent=19 // pred_check_branch
        %181 = sbr.rel (%p179) target = $region24
      $region23: #{transformer_forward.12} parent=19 // pred_region
        %p182 = scmp.lt.s32.totalorder %s11, 3
        %s183 = scalar_select %p182, %s11, 3
        %s184 = smul.addr %s183, 2
        %s185 = smul.addr %s184, 8
        %s186 = scalar_lea.vmem %s1, %s185
      $region24: #{transformer_forward.12} parent=19 // pred_fallthru
        _
      // Predicated region
      $region25: #{transformer_forward.12} parent=19 // pred_check
        %p187 = pneg %p78
      $region26: #{transformer_forward.12} parent=19 // pred_check_branch
        %189 = sbr.rel (%p187) target = $region28
      $region27: #{transformer_forward.12} parent=19 // pred_region
        %p190 = scmp.lt.s32.totalorder %s11, 3
        %s191 = scalar_select %p190, %s11, 3
        %s192 = smul.addr %s191, 8
        %s193 = smul.addr %s192, 4
        %s194 = scalar_lea.vmem %s2, %s193
      $region28: #{transformer_forward.12} parent=19 // pred_fallthru
        _
      // Predicated region
      $region29: #{transformer_forward.12} parent=19 // pred_check
        %p195 = pneg %p104
      $region30: #{transformer_forward.12} parent=19 // pred_check_branch
        %197 = sbr.rel (%p195) target = $region32
      $region31: #{transformer_forward.12} parent=19 // pred_region
        %p198 = scmp.lt.s32.totalorder %s11, 3
        %s199 = scalar_select %p198, %s11, 3
        %s200 = smul.addr %s199, 8
        %s201 = smul.addr %s200, 4
        %s202 = scalar_lea.vmem %s3, %s201
      $region32: #{transformer_forward.12} parent=19 // pred_fallthru
        _
      // Predicated region
      $region33: #{transformer_forward.12} parent=19 // pred_check
        %p203 = pneg %p130
      $region34: #{transformer_forward.12} parent=19 // pred_check_branch
        %205 = sbr.rel (%p203) target = $region36
      $region35: #{transformer_forward.12} parent=19 // pred_region
        %p206 = scmp.lt.s32.totalorder %s11, 3
        %s207 = scalar_select %p206, %s11, 3
        %s208 = smul.addr %s207, 16
        %s209 = smul.addr %s208, 4
        %s210 = scalar_lea.vmem %s4, %s209
      $region36: #{transformer_forward.12} parent=19 // pred_fallthru
        _
    $region20: #{transformer_forward.12} parent=5 // pred_fallthru
      _
    %p211 = scmp.le.s32.totalorder 1, %s11
    %p212 = scmp.lt.s32.totalorder %s11, 5
    %p213 = pnand %p211, %p212
    %p214 = pneg %p213
    // Predicated region
    $region37: #{transformer_forward.12} parent=5 // pred_check
      _
    $region38: #{transformer_forward.12} parent=5 // pred_check_branch
      %216 = sbr.rel (%p213) target = $region40
    $region39: #{transformer_forward.12} parent=5 // pred_region
      %s217 = ssub.s32 %s11, 1
      %p218 = pneg %p32
      %p219 = pneg %p29
      %p220 = scmp.lt.s32.totalorder %s16, 3
      %s221 = scalar_select %p220, %s16, 3
      %s222 = smul.addr %s221, 2
      %s223 = smul.addr %s222, 8
      %s224 = scalar_lea.vmem %s1, %s223
      %p225 = pneg %p58
      %p226 = pneg %p55
      %p227 = scmp.lt.s32.totalorder %s16, 3
      %s228 = scalar_select %p227, %s16, 3
      %s229 = smul.addr %s228, 8
      %s230 = smul.addr %s229, 4
      %s231 = scalar_lea.vmem %s2, %s230
      %p232 = pneg %p84
      %p233 = pneg %p81
      %p234 = scmp.lt.s32.totalorder %s16, 3
      %s235 = scalar_select %p234, %s16, 3
      %s236 = smul.addr %s235, 8
      %s237 = smul.addr %s236, 4
      %s238 = scalar_lea.vmem %s3, %s237
      %p239 = pneg %p110
      %p240 = pneg %p107
      %p241 = scmp.lt.s32.totalorder %s16, 3
      %s242 = scalar_select %p241, %s16, 3
      %s243 = smul.addr %s242, 16
      %s244 = smul.addr %s243, 4
      %s245 = scalar_lea.vmem %s4, %s244
      %p246 = pneg %p136
      %p247 = pneg %p133
      %p248 = pneg %p157
      %p249 = pneg %p154
      %p250 = scmp.lt.s32.totalorder %s16, 3
      %s251 = scalar_select %p250, %s16, 3
      %s252 = smul.addr %s251, 2
      %s253 = smul.addr %s252, 8
      %s254 = scalar_lea.vmem %s1, %s253
      %p255 = scmp.lt.s32.totalorder %s16, 3
      %s256 = scalar_select %p255, %s16, 3
      %s257 = smul.addr %s256, 8
      %s258 = smul.addr %s257, 4
      %s259 = scalar_lea.vmem %s2, %s258
      %p260 = scmp.lt.s32.totalorder %s16, 3
      %s261 = scalar_select %p260, %s16, 3
      %s262 = smul.addr %s261, 8
      %s263 = smul.addr %s262, 4
      %s264 = scalar_lea.vmem %s3, %s263
      %p265 = scmp.lt.s32.totalorder %s16, 3
      %s266 = scalar_select %p265, %s16, 3
      %s267 = smul.addr %s266, 16
      %s268 = smul.addr %s267, 4
      %s269 = scalar_lea.vmem %s4, %s268
      %p271 = scmp.eq.s32.totalorder %s16, 0
      // Predicated region
      $region41: #{transformer_forward.12} parent=39 // pred_check
        %p272 = pneg %p271
      $region42: #{transformer_forward.12} parent=39 // pred_check_branch
        %274 = sbr.rel (%p272) target = $region44
      $region43: #{transformer_forward.12} parent=39 // pred_region
        %vm275 = vcmask 523264
        %276 = vst.msk [vmem:[%s5] sm:$0xff] %vm275, 0.0
        %277 = vst.msk [vmem:[%s5 + $0x8] sm:$0xff] %vm275, 0.0
      $region44: #{transformer_forward.12} parent=39 // pred_fallthru
        _
      %v278 = vld [vmem:[%s0] sm:$0xf]
      %v279 = vld [vmem:[%s0 + $0x4] sm:$0xf]
      %v280 = vld [vmem:[%s259] sm:$0xf]
      %v281 = vld [vmem:[%s259 + $0x4] sm:$0xf]
      %v282 = vld [vmem:[%s259 + $0x8] sm:$0xf]
      %v283 = vld [vmem:[%s259 + $0xc] sm:$0xf]
      %v284 = vld [vmem:[%s259 + $0x10] sm:$0xf]
      %v285 = vld [vmem:[%s259 + $0x14] sm:$0xf]
      %v286 = vld [vmem:[%s259 + $0x18] sm:$0xf]
      %v287 = vld [vmem:[%s259 + $0x1c] sm:$0xf]
      %v290 = vunpack.c.l.b16 %v278
      %v291 = vunpack.c.l.b16 %v279
      %v292 = vpack.c.b16 %v291, %v290
      %v301 = vunpack.c.l.b16 %v280
      %v302 = vunpack.c.l.b16 %v281
      %v303 = vunpack.c.l.b16 %v282
      %v304 = vunpack.c.l.b16 %v283
      %v305 = vunpack.c.l.b16 %v284
      %v306 = vunpack.c.l.b16 %v285
      %v307 = vunpack.c.l.b16 %v286
      %v308 = vunpack.c.l.b16 %v287
      %v309 = vpack.c.b16 %v302, %v301
      %v310 = vpack.c.b16 %v304, %v303
      %v311 = vpack.c.b16 %v306, %v305
      %v312 = vpack.c.b16 %v308, %v307
      %vm317 = vcmask 523264
      %v319 = vsel %vm317, %v292, 0
      %321 = vmatprep.subr.bf16.mxu0 0
      %322 = vmatpush1.bf16.msra.mxu0 %v309
      %323 = vmatprep.subr.bf16.mxu0 0
      %324 = vmatpush1.bf16.msra.mxu0 %v310
      %325 = vmatprep.subr.bf16.mxu0 0
      %326 = vmatpush1.bf16.msra.mxu0 %v311
      %327 = vmatprep.subr.bf16.mxu0 0
      %328 = vmatpush1.bf16.msra.mxu0 %v312
      %329 = vmatprep.subr.bf16.mxu0 0
      %330 = vmatpush1.bf16.msra.mxu0 0
      %331 = vmatprep.subr.bf16.mxu0 0
      %332 = vmatpush1.bf16.msra.mxu0 0
      %333 = vmatprep.subr.bf16.mxu0 0
      %334 = vmatpush1.bf16.msra.mxu0 0
      %335 = vmatprep.subr.bf16.mxu0 0
      %336 = vmatpush1.bf16.msra.mxu0 0
      %337 = vmatprep.subr.bf16.mxu0 0
      %338 = vmatpush1.bf16.msra.mxu0 0
      %339 = vmatprep.subr.bf16.mxu0 0
      %340 = vmatpush1.bf16.msra.mxu0 0
      %341 = vmatprep.subr.bf16.mxu0 0
      %342 = vmatpush1.bf16.msra.mxu0 0
      %343 = vmatprep.subr.bf16.mxu0 0
      %344 = vmatpush1.bf16.msra.mxu0 0
      %345 = vmatprep.subr.bf16.mxu0 0
      %346 = vmatpush1.bf16.msra.mxu0 0
      %347 = vmatprep.subr.bf16.mxu0 0
      %348 = vmatpush1.bf16.msra.mxu0 0
      %349 = vmatprep.subr.bf16.mxu0 0
      %350 = vmatpush1.bf16.msra.mxu0 0
      %351 = vmatprep.subr.bf16.mxu0 0
      %352 = vmatpush1.bf16.msra.mxu0 0
      %353 = vmatprep.mubr.bf16.mxu0 0
      %354 = vmatmul.mubr.bf16.gmra.mrb[0].mxu0 %v319
      %v355 = vpop.f32.mrb[0].mxu0
      %v356 = vadd.f32 0.0, %v355
      %v357 = vpop.f32.mrb[0].mxu0
      %v358 = vpop.f32.mrb[0].mxu0
      %v359 = vadd.f32 0.0, %v358
      %v360 = vpop.f32.mrb[0].mxu0
      %361 = vdwg.mxu0
      %v362 = vld [vmem:[%s264] sm:$0xf]
      %v363 = vld [vmem:[%s264 + $0x4] sm:$0xf]
      %v364 = vld [vmem:[%s264 + $0x8] sm:$0xf]
      %v365 = vld [vmem:[%s264 + $0xc] sm:$0xf]
      %v366 = vld [vmem:[%s264 + $0x10] sm:$0xf]
      %v367 = vld [vmem:[%s264 + $0x14] sm:$0xf]
      %v368 = vld [vmem:[%s264 + $0x18] sm:$0xf]
      %v369 = vld [vmem:[%s264 + $0x1c] sm:$0xf]
      %v378 = vunpack.c.l.b16 %v362
      %v379 = vunpack.c.l.b16 %v363
      %v380 = vunpack.c.l.b16 %v364
      %v381 = vunpack.c.l.b16 %v365
      %v382 = vunpack.c.l.b16 %v366
      %v383 = vunpack.c.l.b16 %v367
      %v384 = vunpack.c.l.b16 %v368
      %v385 = vunpack.c.l.b16 %v369
      %v386 = vpack.c.b16 %v379, %v378
      %v387 = vpack.c.b16 %v381, %v380
      %v388 = vpack.c.b16 %v383, %v382
      %v389 = vpack.c.b16 %v385, %v384
      %394 = vmatprep.subr.bf16.mxu0 0
      %395 = vmatpush1.bf16.msra.mxu0 %v386
      %396 = vmatprep.subr.bf16.mxu0 0
      %397 = vmatpush1.bf16.msra.mxu0 %v387
      %398 = vmatprep.subr.bf16.mxu0 0
      %399 = vmatpush1.bf16.msra.mxu0 %v388
      %400 = vmatprep.subr.bf16.mxu0 0
      %401 = vmatpush1.bf16.msra.mxu0 %v389
      %402 = vmatprep.subr.bf16.mxu0 0
      %403 = vmatpush1.bf16.msra.mxu0 0
      %404 = vmatprep.subr.bf16.mxu0 0
      %405 = vmatpush1.bf16.msra.mxu0 0
      %406 = vmatprep.subr.bf16.mxu0 0
      %407 = vmatpush1.bf16.msra.mxu0 0
      %408 = vmatprep.subr.bf16.mxu0 0
      %409 = vmatpush1.bf16.msra.mxu0 0
      %410 = vmatprep.subr.bf16.mxu0 0
      %411 = vmatpush1.bf16.msra.mxu0 0
      %412 = vmatprep.subr.bf16.mxu0 0
      %413 = vmatpush1.bf16.msra.mxu0 0
      %414 = vmatprep.subr.bf16.mxu0 0
      %415 = vmatpush1.bf16.msra.mxu0 0
      %416 = vmatprep.subr.bf16.mxu0 0
      %417 = vmatpush1.bf16.msra.mxu0 0
      %418 = vmatprep.subr.bf16.mxu0 0
      %419 = vmatpush1.bf16.msra.mxu0 0
      %420 = vmatprep.subr.bf16.mxu0 0
      %421 = vmatpush1.bf16.msra.mxu0 0
      %422 = vmatprep.subr.bf16.mxu0 0
      %423 = vmatpush1.bf16.msra.mxu0 0
      %424 = vmatprep.subr.bf16.mxu0 0
      %425 = vmatpush1.bf16.msra.mxu0 0
      %426 = vmatprep.mubr.bf16.mxu0 0
      %427 = vmatmul.mubr.bf16.gmra.mrb[0].mxu0 %v319
      %v428 = vpop.f32.mrb[0].mxu0
      %v429 = vadd.f32 0.0, %v428
      %v430 = vpop.f32.mrb[0].mxu0
      %v431 = vpop.f32.mrb[0].mxu0
      %v432 = vadd.f32 0.0, %v431
      %v433 = vpop.f32.mrb[0].mxu0
      %434 = vdwg.mxu0
      %v435 = vxor.u32 %v356, 2147483648
      %v436 = vxor.u32 %v359, 2147483648
      %v437 = vmul.f32 %v435, 1.442695
      %v438 = vpow.pop %v437
      %v439 = vmul.f32 %v436, 1.442695
      %v440 = vpow.pop %v439
      %v441 = vadd.f32 %v438, 1.0
      %v442 = vadd.f32 %v440, 1.0
      %v443 = vrcp.pop %v441
      %v444 = vmul.f32 1.0, %v443
      %v445 = vrcp.pop %v442
      %v446 = vmul.f32 1.0, %v445
      %v447 = vmul.f32 %v356, %v444
      %v448 = vmul.f32 %v359, %v446
      %v449 = vmul.f32 %v447, %v429
      %v450 = vmul.f32 %v448, %v432
      %v451 = vpack.c.bf16 %v450, %v449
      %v452 = vld [vmem:[%s269] sm:$0xf]
      %v453 = vld [vmem:[%s269 + $0x4] sm:$0xf]
      %v454 = vld [vmem:[%s269 + $0x8] sm:$0xf]
      %v455 = vld [vmem:[%s269 + $0xc] sm:$0xf]
      %v456 = vld [vmem:[%s269 + $0x10] sm:$0xf]
      %v457 = vld [vmem:[%s269 + $0x14] sm:$0xf]
      %v458 = vld [vmem:[%s269 + $0x18] sm:$0xf]
      %v459 = vld [vmem:[%s269 + $0x1c] sm:$0xf]
      %v460 = vld [vmem:[%s269 + $0x20] sm:$0xf]
      %v461 = vld [vmem:[%s269 + $0x24] sm:$0xf]
      %v462 = vld [vmem:[%s269 + $0x28] sm:$0xf]
      %v463 = vld [vmem:[%s269 + $0x2c] sm:$0xf]
      %v464 = vld [vmem:[%s269 + $0x30] sm:$0xf]
      %v465 = vld [vmem:[%s269 + $0x34] sm:$0xf]
      %v466 = vld [vmem:[%s269 + $0x38] sm:$0xf]
      %v467 = vld [vmem:[%s269 + $0x3c] sm:$0xf]
      %v484 = vunpack.c.l.b16 %v452
      %v485 = vunpack.c.l.b16 %v453
      %v486 = vunpack.c.l.b16 %v454
      %v487 = vunpack.c.l.b16 %v455
      %v488 = vunpack.c.l.b16 %v456
      %v489 = vunpack.c.l.b16 %v457
      %v490 = vunpack.c.l.b16 %v458
      %v491 = vunpack.c.l.b16 %v459
      %v492 = vunpack.c.l.b16 %v460
      %v493 = vunpack.c.l.b16 %v461
      %v494 = vunpack.c.l.b16 %v462
      %v495 = vunpack.c.l.b16 %v463
      %v496 = vunpack.c.l.b16 %v464
      %v497 = vunpack.c.l.b16 %v465
      %v498 = vunpack.c.l.b16 %v466
      %v499 = vunpack.c.l.b16 %v467
      %v500 = vpack.c.b16 %v485, %v484
      %v501 = vpack.c.b16 %v487, %v486
      %v502 = vpack.c.b16 %v489, %v488
      %v503 = vpack.c.b16 %v491, %v490
      %v504 = vpack.c.b16 %v493, %v492
      %v505 = vpack.c.b16 %v495, %v494
      %v506 = vpack.c.b16 %v497, %v496
      %v507 = vpack.c.b16 %v499, %v498
      %516 = vmatprep.subr.bf16.mxu0 0
      %517 = vmatpush1.bf16.msra.mxu0 %v500
      %518 = vmatprep.subr.bf16.mxu0 0
      %519 = vmatpush1.bf16.msra.mxu0 %v501
      %520 = vmatprep.subr.bf16.mxu0 0
      %521 = vmatpush1.bf16.msra.mxu0 %v502
      %522 = vmatprep.subr.bf16.mxu0 0
      %523 = vmatpush1.bf16.msra.mxu0 %v503
      %524 = vmatprep.subr.bf16.mxu0 0
      %525 = vmatpush1.bf16.msra.mxu0 %v504
      %526 = vmatprep.subr.bf16.mxu0 0
      %527 = vmatpush1.bf16.msra.mxu0 %v505
      %528 = vmatprep.subr.bf16.mxu0 0
      %529 = vmatpush1.bf16.msra.mxu0 %v506
      %530 = vmatprep.subr.bf16.mxu0 0
      %531 = vmatpush1.bf16.msra.mxu0 %v507
      %532 = vmatprep.subr.bf16.mxu0 0
      %533 = vmatpush1.bf16.msra.mxu0 0
      %534 = vmatprep.subr.bf16.mxu0 0
      %535 = vmatpush1.bf16.msra.mxu0 0
      %536 = vmatprep.subr.bf16.mxu0 0
      %537 = vmatpush1.bf16.msra.mxu0 0
      %538 = vmatprep.subr.bf16.mxu0 0
      %539 = vmatpush1.bf16.msra.mxu0 0
      %540 = vmatprep.subr.bf16.mxu0 0
      %541 = vmatpush1.bf16.msra.mxu0 0
      %542 = vmatprep.subr.bf16.mxu0 0
      %543 = vmatpush1.bf16.msra.mxu0 0
      %544 = vmatprep.subr.bf16.mxu0 0
      %545 = vmatpush1.bf16.msra.mxu0 0
      %546 = vmatprep.subr.bf16.mxu0 0
      %547 = vmatpush1.bf16.msra.mxu0 0
      %548 = vmatprep.mubr.bf16.mxu0 0
      %549 = vmatmul.mubr.bf16.gmra.mrb[0].mxu0 %v451
      %v550 = vpop.f32.mrb[0].mxu0
      %v551 = vadd.f32 0.0, %v550
      %v552 = vpop.f32.mrb[0].mxu0
      %v553 = vpop.f32.mrb[0].mxu0
      %v554 = vadd.f32 0.0, %v553
      %v555 = vpop.f32.mrb[0].mxu0
      %556 = vdwg.mxu0
      %v557 = vld [vmem:[%s5] sm:$0xff]
      %v558 = vld [vmem:[%s5 + $0x8] sm:$0xff]
      %v559 = vld [vmem:[%s254] sm:$0xff]
      %v560 = vld [vmem:[%s254 + $0x8] sm:$0xff]
      %562 = vset.pattern.permute.xlu0 0
      %563 = vperm.xlu0 %562, %v559
      %v564 = vpop.permute.xlu0 %563
      %567 = vset.pattern.permute.xlu0 0
      %568 = vperm.xlu0 %567, %v560
      %v569 = vpop.permute.xlu0 %568
      %v571 = vmul.f32 %v564, %v551
      %v572 = vmul.f32 %v569, %v554
      %v573 = vadd.f32 %v557, %v571
      %v574 = vadd.f32 %v558, %v572
      %575 = vst.msk [vmem:[%s5] sm:$0xff] %vm317, %v573
      %576 = vst.msk [vmem:[%s5 + $0x8] sm:$0xff] %vm317, %v574
      // Predicated region
      $region45: #{transformer_forward.12} parent=39 // pred_check
        %p577 = pneg %p154
      $region46: #{transformer_forward.12} parent=39 // pred_check_branch
        %579 = sbr.rel (%p577) target = $region48
      $region47: #{transformer_forward.12} parent=39 // pred_region
        _
      $region48: #{transformer_forward.12} parent=39 // pred_fallthru
        _
      // Predicated region
      $region49: #{transformer_forward.12} parent=39 // pred_check
        %p580 = pneg %p154
      $region50: #{transformer_forward.12} parent=39 // pred_check_branch
        %582 = sbr.rel (%p580) target = $region52
      $region51: #{transformer_forward.12} parent=39 // pred_region
        _
      $region52: #{transformer_forward.12} parent=39 // pred_fallthru
        _
    $region40: #{transformer_forward.12} parent=5 // pred_fallthru
      _
    %p583 = scmp.le.s32.totalorder 2, %s11
    // Predicated region
    $region53: #{transformer_forward.12} parent=5 // pred_check
      %p584 = pneg %p583
    $region54: #{transformer_forward.12} parent=5 // pred_check_branch
      %586 = sbr.rel (%p584) target = $region56
    $region55: #{transformer_forward.12} parent=5 // pred_region
      %s587 = ssub.s32 %s11, 2
    $region56: #{transformer_forward.12} parent=5 // pred_fallthru
      _
  $region6: #{transformer_forward.12} parent=0 // loop_footer
    %s15 = sadd.s32 1, %s11
  $region7: #{transformer_forward.12} parent=0 // loop_footer_branch
    %10 = sbr.rel target = $region3
  $region8: #{transformer_forward.12} parent=0 // loop_exit
    _

</llo_original>
